<compile_context>
chip_gen: v5e
topology: v5e:2x2
jax: 0.10.0
libtpu: 0.0.40
codegen_flags: <defaults>
</compile_context>

<pallas_src>
import jax
import jax.numpy as jnp
from jax.experimental import pallas as pl
from jax.experimental.pallas import tpu as pltpu

HIDDEN = 768          # BERT hidden size
EMBED = 256           # Config.text_embed_dim
BN_EPS = 1e-5
LEAKY_SLOPE = 0.2


# --------------------------------------------------------------------------
# Pass 1: per-batch-tile encoder (gather + pooling + pooler + fc) -> z tile
# --------------------------------------------------------------------------
def encode_block_kernel(ids_ref, mask_ref, table_ref, wp_ref, bp_ref,
                        wfc_ref, bfc_ref, z_ref):
    # ids_ref  : (TB, S)   int32   token ids for this batch tile
    # mask_ref : (TB, S)   float32 attention mask (lane-dense, S on lanes)
    # table_ref: (V, H)    bf16    embedding table (grid-invariant, resident)
    # wp_ref   : (H, H)    bf16    pooler weight
    # bp_ref   : (1, H)    f32     pooler bias
    # wfc_ref  : (H, E)    bf16    fc weight
    # bfc_ref  : (1, E)    f32     fc bias
    # z_ref    : (TB, E)   f32     pre-BN activations
    tb, s = ids_ref.shape
    vocab = table_ref.shape[0]

    ids = ids_ref[...]                                       # (TB, S) int32
    mask = mask_ref[...]                                     # (TB, S) f32

    # masked-mean weights: mask / count  (1/count on the EUP vrcp slot)
    count = jnp.sum(mask, axis=1, keepdims=True)             # (TB, 1)
    inv_count = pl.reciprocal(jnp.maximum(count, 1.0), approx=True)
    w = mask * inv_count                                     # (TB, S)

    # Fused "gather": scatter the normalized weights into vocab columns via a
    # one-hot compare, then contract with the resident embedding table on the
    # MXU.  hidden[b] = sum_s mask[b,s] * table[ids[b,s]] / count[b].
    vocab_iota = jax.lax.broadcasted_iota(jnp.int32, (tb, s, vocab), 2)
    sel = ids[:, :, None] == vocab_iota                      # (TB, S, V)
    w_vocab = jnp.sum(jnp.where(sel, w[:, :, None], 0.0), axis=1)  # (TB, V)

    hidden = jnp.dot(w_vocab.astype(jnp.bfloat16), table_ref[...],
                     preferred_element_type=jnp.float32)     # (TB, H)

    # BERT-style pooler: tanh(hidden @ W_pool + b_pool)   (bf16 MXU, f32 acc)
    pooled = jnp.tanh(
        jnp.dot(hidden.astype(jnp.bfloat16), wp_ref[...],
                preferred_element_type=jnp.float32) + bp_ref[...])

    # fc Linear: pooled @ W_fc + b_fc  (768 -> 256)
    z_ref[...] = (
        jnp.dot(pooled.astype(jnp.bfloat16), wfc_ref[...],
                preferred_element_type=jnp.float32) + bfc_ref[...])


# --------------------------------------------------------------------------
# Pass 2: whole-batch BatchNorm1d (training-mode stats) + LeakyReLU(0.2)
# --------------------------------------------------------------------------
def bn_lrelu_kernel(z_ref, gamma_ref, beta_ref, out_ref):
    z = z_ref[...]                                           # (B, E) f32
    mu = jnp.mean(z, axis=0, keepdims=True)                  # (1, E)
    centered = z - mu
    var = jnp.mean(centered * centered, axis=0, keepdims=True)
    y = centered * jax.lax.rsqrt(var + BN_EPS) * gamma_ref[...] + beta_ref[...]
    out_ref[...] = jnp.where(y >= 0.0, y, LEAKY_SLOPE * y)


# --------------------------------------------------------------------------
# Wrapper
# --------------------------------------------------------------------------
def text_encoder_forward(input_ids, attention_mask, params, *, batch_tile=8):
    """input_ids: (B, S) int32, attention_mask: (B, S) int/float."""
    B, S = input_ids.shape
    vocab = params["emb_table"].shape[0]

    # batch tile: multiple of 8 (sublane), full rows for the MXU.  For real
    # workloads pick ~128 (v5e) / ~256 (v6e, v7x) rows per grid step and raise
    # vmem_limit_bytes if the tile + resident weights exceed the scoped limit.
    assert B % batch_tile == 0
    assert batch_tile % 8 == 0 or batch_tile == B

    mask_f = attention_mask.astype(jnp.float32)              # (B, S) lane-dense

    grid = (B // batch_tile,)
    z = pl.pallas_call(
        encode_block_kernel,
        out_shape=jax.ShapeDtypeStruct((B, EMBED), jnp.float32),
        grid=grid,
        in_specs=[
            pl.BlockSpec((batch_tile, S), lambda i: (i, 0)),        # ids tile
            pl.BlockSpec((batch_tile, S), lambda i: (i, 0)),        # mask tile
            pl.BlockSpec((vocab, HIDDEN), lambda i: (0, 0)),        # emb table
            pl.BlockSpec((HIDDEN, HIDDEN), lambda i: (0, 0)),       # w_pool
            pl.BlockSpec((1, HIDDEN), lambda i: (0, 0)),            # b_pool
            pl.BlockSpec((HIDDEN, EMBED), lambda i: (0, 0)),        # w_fc
            pl.BlockSpec((1, EMBED), lambda i: (0, 0)),             # b_fc
        ],
        out_specs=pl.BlockSpec((batch_tile, EMBED), lambda i: (i, 0)),
        compiler_params=pltpu.CompilerParams(
            dimension_semantics=("parallel",)),
    )(input_ids, mask_f,
      params["emb_table"], params["w_pool"], params["b_pool"],
      params["w_fc"], params["b_fc"])

    # BN statistics must cover the full batch -> single small second pass.
    out = pl.pallas_call(
        bn_lrelu_kernel,
        out_shape=jax.ShapeDtypeStruct((B, EMBED), jnp.float32),
        in_specs=[pl.BlockSpec(memory_space=pltpu.MemorySpace.VMEM)] * 3,
        out_specs=pl.BlockSpec(memory_space=pltpu.MemorySpace.VMEM),
    )(z, params["bn_gamma"], params["bn_beta"])
    return out


def init_params(key, vocab_size):
    ks = jax.random.split(key, 6)
    scale = 1.0 / jnp.sqrt(jnp.float32(HIDDEN))
    return {
        # matmul weights stored bf16 in HBM (halves DMA bytes / VMEM)
        "emb_table": jax.random.normal(ks[0], (vocab_size, HIDDEN),
                                       jnp.float32).astype(jnp.bfloat16),
        "w_pool":    (scale * jax.random.normal(ks[1], (HIDDEN, HIDDEN),
                                                jnp.float32)).astype(jnp.bfloat16),
        "b_pool":    0.02 * jax.random.normal(ks[2], (1, HIDDEN), jnp.float32),
        "w_fc":      (scale * jax.random.normal(ks[3], (HIDDEN, EMBED),
                                                jnp.float32)).astype(jnp.bfloat16),
        "b_fc":      0.02 * jax.random.normal(ks[4], (1, EMBED), jnp.float32),
        "bn_gamma":  jnp.ones((1, EMBED), jnp.float32)
                     + 0.1 * jax.random.normal(ks[5], (1, EMBED), jnp.float32),
        "bn_beta":   jnp.zeros((1, EMBED), jnp.float32),
    }


def reference_forward(input_ids, attention_mask, params):
    """Pure-JAX f32 reference with identical semantics."""
    table = params["emb_table"].astype(jnp.float32)
    emb = jnp.take(table, input_ids, axis=0)                  # (B, S, H)
    m = attention_mask.astype(jnp.float32)[:, :, None]
    hidden = jnp.sum(emb * m, axis=1) / jnp.maximum(jnp.sum(m, axis=1), 1.0)
    pooled = jnp.tanh(hidden @ params["w_pool"].astype(jnp.float32)
                      + params["b_pool"])
    z = pooled @ params["w_fc"].astype(jnp.float32) + params["b_fc"]
    mu = jnp.mean(z, axis=0, keepdims=True)
    var = jnp.mean((z - mu) ** 2, axis=0, keepdims=True)
    y = (z - mu) / jnp.sqrt(var + BN_EPS) * params["bn_gamma"] + params["bn_beta"]
    return jnp.where(y >= 0.0, y, LEAKY_SLOPE * y)


if __name__ == "__main__":
    B, S, VOCAB = 16, 16, 512          # small demo shapes; grid = (2,)

    key = jax.random.PRNGKey(0)
    k_ids, k_len, k_par = jax.random.split(key, 3)

    params = init_params(k_par, VOCAB)

    input_ids = jax.random.randint(k_ids, (B, S), 0, VOCAB, dtype=jnp.int32)
    lengths = jax.random.randint(k_len, (B,), 4, S + 1, dtype=jnp.int32)
    attention_mask = (jnp.arange(S)[None, :] < lengths[:, None]).astype(jnp.int32)

    out = text_encoder_forward(input_ids, attention_mask, params, batch_tile=8)
    out = jax.block_until_ready(out)

    ref = reference_forward(input_ids, attention_mask, params)
    assert out.shape == (B, EMBED) and out.dtype == jnp.float32
    # tolerance relaxed vs f32 reference: kernel uses bf16 MXU operands
    # (f32 accumulation) and the EUP approximate reciprocal.
    max_err = float(jnp.max(jnp.abs(out - ref)))
    assert jnp.allclose(out, ref, atol=3e-2, rtol=3e-2), max_err

    print("KERNEL_OK")
</pallas_src>

<mosaic_0001>
module attributes {stable_mosaic.version = 11 : i64} {
  func.func @encode_block_kernel(%arg0: i32, %arg1: memref<8x16xi32, #tpu.memory_space<vmem>>, %arg2: memref<8x16xf32, #tpu.memory_space<vmem>>, %arg3: memref<512x768xbf16, #tpu.memory_space<vmem>>, %arg4: memref<768x768xbf16, #tpu.memory_space<vmem>>, %arg5: memref<1x768xf32, #tpu.memory_space<vmem>>, %arg6: memref<768x256xbf16, #tpu.memory_space<vmem>>, %arg7: memref<1x256xf32, #tpu.memory_space<vmem>>, %arg8: memref<8x256xf32, #tpu.memory_space<vmem>>) attributes {dimension_semantics = [#tpu.dimension_semantics<parallel>], iteration_bounds = array<i64: 2>, scalar_prefetch = 0 : i64, scratch_operands = 0 : i64, tpu.core_type = #tpu.core_type<tc>, window_params = [{transform_indices = @transform_0, window_bounds = array<i64: 8, 16>}, {transform_indices = @transform_1, window_bounds = array<i64: 8, 16>}, {pipeline_mode = #tpu.pipeline_mode<synchronous>, transform_indices = @transform_2, window_bounds = array<i64: 512, 768>}, {pipeline_mode = #tpu.pipeline_mode<synchronous>, transform_indices = @transform_3, window_bounds = array<i64: 768, 768>}, {pipeline_mode = #tpu.pipeline_mode<synchronous>, transform_indices = @transform_4, window_bounds = array<i64: 1, 768>}, {pipeline_mode = #tpu.pipeline_mode<synchronous>, transform_indices = @transform_5, window_bounds = array<i64: 768, 256>}, {pipeline_mode = #tpu.pipeline_mode<synchronous>, transform_indices = @transform_6, window_bounds = array<i64: 1, 256>}, {transform_indices = @transform_7, window_bounds = array<i64: 8, 256>}]} {
    %c0 = arith.constant 0 : index
    %c0_0 = arith.constant 0 : index
    %0 = vector.load %arg1[%c0, %c0_0] : memref<8x16xi32, #tpu.memory_space<vmem>>, vector<8x16xi32>
    %c0_1 = arith.constant 0 : index
    %c0_2 = arith.constant 0 : index
    %1 = vector.load %arg2[%c0_1, %c0_2] : memref<8x16xf32, #tpu.memory_space<vmem>>, vector<8x16xf32>
    %cst = arith.constant dense<0.000000e+00> : vector<8xf32>
    %2 = vector.multi_reduction <add>, %1, %cst [1] : vector<8x16xf32> to vector<8xf32>
    %3 = vector.shape_cast %2 : vector<8xf32> to vector<8x1xf32>
    %cst_3 = arith.constant 1.000000e+00 : f32
    %4 = vector.broadcast %cst_3 : f32 to vector<8x1xf32>
    %5 = arith.maximumf %3, %4 : vector<8x1xf32>
    %6 = tpu.reciprocal %5 {approx = true} : vector<8x1xf32> -> vector<8x1xf32>
    %7 = vector.broadcast %6 : vector<8x1xf32> to vector<8x16xf32>
    %8 = arith.mulf %1, %7 : vector<8x16xf32>
    %9 = tpu.iota {dimensions = array<i32: 2>} : vector<8x16x512xi32>
    %10 = vector.shape_cast %0 : vector<8x16xi32> to vector<8x16x1xi32>
    %11 = vector.broadcast %10 : vector<8x16x1xi32> to vector<8x16x512xi32>
    %12 = arith.cmpi eq, %11, %9 : vector<8x16x512xi32>
    %13 = vector.shape_cast %8 : vector<8x16xf32> to vector<8x16x1xf32>
    %cst_4 = arith.constant 0.000000e+00 : f32
    %14 = vector.shape_cast %13 : vector<8x16x1xf32> to vector<8x16x1xf32>
    %15 = vector.broadcast %14 : vector<8x16x1xf32> to vector<8x16x512xf32>
    %16 = vector.broadcast %cst_4 : f32 to vector<8x16x512xf32>
    %17 = arith.select %12, %15, %16 : vector<8x16x512xi1>, vector<8x16x512xf32>
    %cst_5 = arith.constant dense<0.000000e+00> : vector<8x512xf32>
    %18 = vector.multi_reduction <add>, %17, %cst_5 [1] : vector<8x16x512xf32> to vector<8x512xf32>
    %19 = arith.truncf %18 : vector<8x512xf32> to vector<8x512xbf16>
    %c0_6 = arith.constant 0 : index
    %c0_7 = arith.constant 0 : index
    %20 = vector.load %arg3[%c0_6, %c0_7] : memref<512x768xbf16, #tpu.memory_space<vmem>>, vector<512x768xbf16>
    %cst_8 = arith.constant dense<0.000000e+00> : vector<8x768xf32>
    %21 = tpu.matmul %19, %20, %cst_8 {dimension_numbers = #tpu.dot_dimension_numbers<[1], [0], [0], [1], [0, 0, 1, 1], [], []>} : vector<8x512xbf16>, vector<512x768xbf16>, vector<8x768xf32> -> vector<8x768xf32>
    %22 = arith.truncf %21 : vector<8x768xf32> to vector<8x768xbf16>
    %c0_9 = arith.constant 0 : index
    %c0_10 = arith.constant 0 : index
    %23 = vector.load %arg4[%c0_9, %c0_10] : memref<768x768xbf16, #tpu.memory_space<vmem>>, vector<768x768xbf16>
    %cst_11 = arith.constant dense<0.000000e+00> : vector<8x768xf32>
    %24 = tpu.matmul %22, %23, %cst_11 {dimension_numbers = #tpu.dot_dimension_numbers<[1], [0], [0], [1], [0, 0, 1, 1], [], []>} : vector<8x768xbf16>, vector<768x768xbf16>, vector<8x768xf32> -> vector<8x768xf32>
    %c0_12 = arith.constant 0 : index
    %c0_13 = arith.constant 0 : index
    %25 = vector.load %arg5[%c0_12, %c0_13] : memref<1x768xf32, #tpu.memory_space<vmem>>, vector<1x768xf32>
    %26 = vector.broadcast %25 : vector<1x768xf32> to vector<8x768xf32>
    %27 = arith.addf %24, %26 : vector<8x768xf32>
    %28 = math.tanh %27 : vector<8x768xf32>
    %29 = arith.truncf %28 : vector<8x768xf32> to vector<8x768xbf16>
    %c0_14 = arith.constant 0 : index
    %c0_15 = arith.constant 0 : index
    %30 = vector.load %arg6[%c0_14, %c0_15] : memref<768x256xbf16, #tpu.memory_space<vmem>>, vector<768x256xbf16>
    %cst_16 = arith.constant dense<0.000000e+00> : vector<8x256xf32>
    %31 = tpu.matmul %29, %30, %cst_16 {dimension_numbers = #tpu.dot_dimension_numbers<[1], [0], [0], [1], [0, 0, 1, 1], [], []>} : vector<8x768xbf16>, vector<768x256xbf16>, vector<8x256xf32> -> vector<8x256xf32>
    %c0_17 = arith.constant 0 : index
    %c0_18 = arith.constant 0 : index
    %32 = vector.load %arg7[%c0_17, %c0_18] : memref<1x256xf32, #tpu.memory_space<vmem>>, vector<1x256xf32>
    %33 = vector.broadcast %32 : vector<1x256xf32> to vector<8x256xf32>
    %34 = arith.addf %31, %33 : vector<8x256xf32>
    %c0_19 = arith.constant 0 : index
    %c0_20 = arith.constant 0 : index
    %35 = vector.load %arg8[%c0_19, %c0_20] : memref<8x256xf32, #tpu.memory_space<vmem>>, vector<8x256xf32>
    tpu.vector_store %arg8[%c0_19, %c0_20], %34 {strides = array<i32>} : memref<8x256xf32, #tpu.memory_space<vmem>>, vector<8x256xf32>,
    return
  }
  func.func @transform_0(%arg0: i32) -> (i32, i32) {
    %c0_i32 = arith.constant 0 : i32
    %c0_i32_0 = arith.constant 0 : i32
    return %arg0, %c0_i32 : i32, i32
  }
  func.func @transform_1(%arg0: i32) -> (i32, i32) {
    %c0_i32 = arith.constant 0 : i32
    %c0_i32_0 = arith.constant 0 : i32
    return %arg0, %c0_i32 : i32, i32
  }
  func.func @transform_2(%arg0: i32) -> (i32, i32) {
    %c0_i32 = arith.constant 0 : i32
    %c0_i32_0 = arith.constant 0 : i32
    %c0_i32_1 = arith.constant 0 : i32
    return %c0_i32, %c0_i32_0 : i32, i32
  }
  func.func @transform_3(%arg0: i32) -> (i32, i32) {
    %c0_i32 = arith.constant 0 : i32
    %c0_i32_0 = arith.constant 0 : i32
    %c0_i32_1 = arith.constant 0 : i32
    return %c0_i32, %c0_i32_0 : i32, i32
  }
  func.func @transform_4(%arg0: i32) -> (i32, i32) {
    %c0_i32 = arith.constant 0 : i32
    %c0_i32_0 = arith.constant 0 : i32
    %c0_i32_1 = arith.constant 0 : i32
    return %c0_i32, %c0_i32_0 : i32, i32
  }
  func.func @transform_5(%arg0: i32) -> (i32, i32) {
    %c0_i32 = arith.constant 0 : i32
    %c0_i32_0 = arith.constant 0 : i32
    %c0_i32_1 = arith.constant 0 : i32
    return %c0_i32, %c0_i32_0 : i32, i32
  }
  func.func @transform_6(%arg0: i32) -> (i32, i32) {
    %c0_i32 = arith.constant 0 : i32
    %c0_i32_0 = arith.constant 0 : i32
    %c0_i32_1 = arith.constant 0 : i32
    return %c0_i32, %c0_i32_0 : i32, i32
  }
  func.func @transform_7(%arg0: i32) -> (i32, i32) {
    %c0_i32 = arith.constant 0 : i32
    %c0_i32_0 = arith.constant 0 : i32
    return %arg0, %c0_i32 : i32, i32
  }
}

</mosaic_0001>

<llo_original>
// kernel: tpu_custom_call.1
$region0: #{tpu_custom_call.1}
  #allocation0 [shape = 'u32[]', space=smem, size = 0x4, offset = 0x4, fixed_abs, tag = 'smem constant byte address 0x4 - core index']
  #allocation1 [shape = 'u32[72,128]{1,0:T(1,128)}', space=vmem, size = 0x9000, scoped, tag = 'internal scratch']
  %s0 = inlined_call_operand.hbm [shape: s32[16,16], index: 0, kind: input, shape index: {}]
  %s1 = inlined_call_operand.hbm [shape: f32[16,16], index: 1, kind: input, shape index: {}]
  %s2 = inlined_call_operand.hbm [shape: bf16[512,768], index: 2, kind: input, shape index: {}]
  %s3 = inlined_call_operand.hbm [shape: bf16[768,768], index: 3, kind: input, shape index: {}]
  %s4 = inlined_call_operand.hbm [shape: f32[1,768], index: 4, kind: input, shape index: {}]
  %s5 = inlined_call_operand.hbm [shape: bf16[768,256], index: 5, kind: input, shape index: {}]
  %s6 = inlined_call_operand.hbm [shape: f32[1,256], index: 6, kind: input, shape index: {}]
  %s7 = inlined_call_operand.hbm [shape: f32[16,256], index: 7, kind: output, shape index: {}]
  %s8 = sld [smem:[#allocation0]]
  $region89: #{tpu_custom_call.1} parent=0
    _
  %s10 = ssub.s32 1, %s8
  %s11 = scalar_select 0, %s10, %s8
  $region1: #{tpu_custom_call.1} parent=0
    #allocation2 [shape = 'u8[8192]{0}', space=vmem, size = 0x2000, scoped, tag = 'input window, operand 0']
    #allocation3 [shape = 's32[2]{0}', space=sflag, size = 0x8, scoped, tag = 'scoped memory for tpu_custom_call.1']
    #allocation4 [shape = 's32[2]{0}', space=sflag, size = 0x8, scoped, tag = 'scoped memory for tpu_custom_call.1']
    #allocation5 [shape = 'u8[8192]{0}', space=vmem, size = 0x2000, scoped, tag = 'input window, operand 1']
    #allocation6 [shape = 's32[2]{0}', space=sflag, size = 0x8, scoped, tag = 'scoped memory for tpu_custom_call.1']
    #allocation7 [shape = 'u8[786432]{0}', space=vmem, size = 0xc0000, scoped, tag = 'input window, operand 2, single buffered']
    #allocation8 [shape = 'u8[1179648]{0}', space=vmem, size = 0x120000, scoped, tag = 'input window, operand 3, single buffered']
    #allocation9 [shape = 's32[1]{0}', space=sflag, size = 0x4, scoped, tag = 'scoped memory for tpu_custom_call.1']
    #allocation10 [shape = 'u8[3072]{0}', space=vmem, size = 0xc00, scoped, tag = 'input window, operand 4, single buffered']
    #allocation11 [shape = 'u8[393216]{0}', space=vmem, size = 0x60000, scoped, tag = 'input window, operand 5, single buffered']
    #allocation12 [shape = 's32[1]{0}', space=sflag, size = 0x4, scoped, tag = 'scoped memory for tpu_custom_call.1']
    #allocation13 [shape = 'u8[1024]{0}', space=vmem, size = 0x400, scoped, tag = 'input window, operand 6, single buffered']
    #allocation14 [shape = 'u8[16384]{0}', space=vmem, size = 0x4000, scoped, tag = 'output window, operand 0']
    %12 = vsyncpa [#allocation3], 0
    %s13 = scalar_lea.sflag [#allocation3], 1
    %14 = vsyncpa %s13, 0
    %15 = vsyncpa [#allocation6], 0
    %s16 = scalar_lea.sflag [#allocation6], 1
    %17 = vsyncpa %s16, 0
    %18 = vsyncpa [#allocation9], 0
    %19 = vsyncpa [#allocation12], 0
    %20 = vsyncpa [#allocation4], 0
    %s21 = scalar_lea.sflag [#allocation4], 1
    %22 = vsyncpa %s21, 0
    loop: start=0, step=1, limit=4
    $region2: #{tpu_custom_call.1} parent=1 // loop_pre_header
      _
    $region3: #{tpu_custom_call.1} parent=1 // loop_header
      %s24 = sphi 0, %s28
      %p25 = scmp.ge.s32.totalorder %s24, 4
      %s34 = sphi 0, %s36
      %s37 = sphi 0, %s34
      %s38 = sphi 0, %s37
      %s54 = sphi 0, %s38
      %s60 = sphi 0, %s62
      %s63 = sphi 0, %s60
      %s64 = sphi 0, %s63
      %s80 = sphi 0, %s64
      %s84 = sphi 0, %s84
      %s86 = sphi 0, %s84
      %s87 = sphi 0, %s86
      %s101 = sphi 0, %s87
      %s105 = sphi 0, %s105
      %s107 = sphi 0, %s105
      %s108 = sphi 0, %s107
      %s122 = sphi 0, %s108
      %s126 = sphi 0, %s126
      %s128 = sphi 0, %s126
      %s129 = sphi 0, %s128
      %s143 = sphi 0, %s129
      %s147 = sphi 0, %s147
      %s149 = sphi 0, %s147
      %s150 = sphi 0, %s149
      %s164 = sphi 0, %s150
      %s168 = sphi 0, %s168
      %s170 = sphi 0, %s168
      %s171 = sphi 0, %s170
      %s185 = sphi 0, %s171
      %s191 = sphi 0, %s193
      %s194 = sphi 0, %s191
      %s195 = sphi 0, %s194
      %s211 = sphi 0, %s195
    $region4: #{tpu_custom_call.1} parent=1 // loop_header_branch
      %27 = sbr.rel (%p25) target = $region8
    $region5: #{tpu_custom_call.1} parent=1 // loop_body
      %s29 = ssub.s32 %s24, 1
      %s30 = ssub.s32 %s24, 2
      %s31 = sadd.s32 %s24, 1
      %s32 = ssub.s32 %s24, %s31
      %p33 = scmp.eq.s32.totalorder %s32, 0
      %s35 = sadd.s32 %s34, 1
      %s36 = scalar_select %p33, %s34, %s35
      %p39 = pneg %p33
      %p40 = scmp.eq.s32.totalorder %s24, 1
      %p41 = por %p39, %p40
      %p42 = scmp.ne.s32.totalorder %s34, %s37
      %p43 = scmp.eq.s32.totalorder %s24, 0
      %p44 = por %p42, %p43
      %p45 = scmp.ne.s32.totalorder %s34, %s37
      %p46 = scmp.eq.s32.totalorder %s29, 1
      %p47 = por %p45, %p46
      %p48 = scmp.ne.s32.totalorder %s37, %s38
      %p49 = scmp.eq.s32.totalorder %s29, 0
      %p50 = por %p48, %p49
      %p51 = scmp.ne.s32.totalorder %s37, %s38
      %p52 = scmp.eq.s32.totalorder %s30, 1
      %p53 = por %p51, %p52
      %p55 = scmp.ne.s32.totalorder %s38, %s54
      %p56 = scmp.eq.s32.totalorder %s30, 0
      %p57 = por %p55, %p56
      %s58 = ssub.s32 %s24, %s31
      %p59 = scmp.eq.s32.totalorder %s58, 0
      %s61 = sadd.s32 %s60, 1
      %s62 = scalar_select %p59, %s60, %s61
      %p65 = pneg %p59
      %p66 = scmp.eq.s32.totalorder %s24, 1
      %p67 = por %p65, %p66
      %p68 = scmp.ne.s32.totalorder %s60, %s63
      %p69 = scmp.eq.s32.totalorder %s24, 0
      %p70 = por %p68, %p69
      %p71 = scmp.ne.s32.totalorder %s60, %s63
      %p72 = scmp.eq.s32.totalorder %s29, 1
      %p73 = por %p71, %p72
      %p74 = scmp.ne.s32.totalorder %s63, %s64
      %p75 = scmp.eq.s32.totalorder %s29, 0
      %p76 = por %p74, %p75
      %p77 = scmp.ne.s32.totalorder %s63, %s64
      %p78 = scmp.eq.s32.totalorder %s30, 1
      %p79 = por %p77, %p78
      %p81 = scmp.ne.s32.totalorder %s64, %s80
      %p82 = scmp.eq.s32.totalorder %s30, 0
      %p83 = por %p81, %p82
      %s85 = sadd.s32 %s84, 1
      %p88 = scmp.eq.s32.totalorder %s24, 1
      %p89 = scmp.ne.s32.totalorder %s84, %s86
      %p90 = scmp.eq.s32.totalorder %s24, 0
      %p91 = por %p89, %p90
      %p92 = scmp.ne.s32.totalorder %s84, %s86
      %p93 = scmp.eq.s32.totalorder %s29, 1
      %p94 = por %p92, %p93
      %p95 = scmp.ne.s32.totalorder %s86, %s87
      %p96 = scmp.eq.s32.totalorder %s29, 0
      %p97 = por %p95, %p96
      %p98 = scmp.ne.s32.totalorder %s86, %s87
      %p99 = scmp.eq.s32.totalorder %s30, 1
      %p100 = por %p98, %p99
      %p102 = scmp.ne.s32.totalorder %s87, %s101
      %p103 = scmp.eq.s32.totalorder %s30, 0
      %p104 = por %p102, %p103
      %s106 = sadd.s32 %s105, 1
      %p109 = scmp.eq.s32.totalorder %s24, 1
      %p110 = scmp.ne.s32.totalorder %s105, %s107
      %p111 = scmp.eq.s32.totalorder %s24, 0
      %p112 = por %p110, %p111
      %p113 = scmp.ne.s32.totalorder %s105, %s107
      %p114 = scmp.eq.s32.totalorder %s29, 1
      %p115 = por %p113, %p114
      %p116 = scmp.ne.s32.totalorder %s107, %s108
      %p117 = scmp.eq.s32.totalorder %s29, 0
      %p118 = por %p116, %p117
      %p119 = scmp.ne.s32.totalorder %s107, %s108
      %p120 = scmp.eq.s32.totalorder %s30, 1
      %p121 = por %p119, %p120
      %p123 = scmp.ne.s32.totalorder %s108, %s122
      %p124 = scmp.eq.s32.totalorder %s30, 0
      %p125 = por %p123, %p124
      %s127 = sadd.s32 %s126, 1
      %p130 = scmp.eq.s32.totalorder %s24, 1
      %p131 = scmp.ne.s32.totalorder %s126, %s128
      %p132 = scmp.eq.s32.totalorder %s24, 0
      %p133 = por %p131, %p132
      %p134 = scmp.ne.s32.totalorder %s126, %s128
      %p135 = scmp.eq.s32.totalorder %s29, 1
      %p136 = por %p134, %p135
      %p137 = scmp.ne.s32.totalorder %s128, %s129
      %p138 = scmp.eq.s32.totalorder %s29, 0
      %p139 = por %p137, %p138
      %p140 = scmp.ne.s32.totalorder %s128, %s129
      %p141 = scmp.eq.s32.totalorder %s30, 1
      %p142 = por %p140, %p141
      %p144 = scmp.ne.s32.totalorder %s129, %s143
      %p145 = scmp.eq.s32.totalorder %s30, 0
      %p146 = por %p144, %p145
      %s148 = sadd.s32 %s147, 1
      %p151 = scmp.eq.s32.totalorder %s24, 1
      %p152 = scmp.ne.s32.totalorder %s147, %s149
      %p153 = scmp.eq.s32.totalorder %s24, 0
      %p154 = por %p152, %p153
      %p155 = scmp.ne.s32.totalorder %s147, %s149
      %p156 = scmp.eq.s32.totalorder %s29, 1
      %p157 = por %p155, %p156
      %p158 = scmp.ne.s32.totalorder %s149, %s150
      %p159 = scmp.eq.s32.totalorder %s29, 0
      %p160 = por %p158, %p159
      %p161 = scmp.ne.s32.totalorder %s149, %s150
      %p162 = scmp.eq.s32.totalorder %s30, 1
      %p163 = por %p161, %p162
      %p165 = scmp.ne.s32.totalorder %s150, %s164
      %p166 = scmp.eq.s32.totalorder %s30, 0
      %p167 = por %p165, %p166
      %s169 = sadd.s32 %s168, 1
      %p172 = scmp.eq.s32.totalorder %s24, 1
      %p173 = scmp.ne.s32.totalorder %s168, %s170
      %p174 = scmp.eq.s32.totalorder %s24, 0
      %p175 = por %p173, %p174
      %p176 = scmp.ne.s32.totalorder %s168, %s170
      %p177 = scmp.eq.s32.totalorder %s29, 1
      %p178 = por %p176, %p177
      %p179 = scmp.ne.s32.totalorder %s170, %s171
      %p180 = scmp.eq.s32.totalorder %s29, 0
      %p181 = por %p179, %p180
      %p182 = scmp.ne.s32.totalorder %s170, %s171
      %p183 = scmp.eq.s32.totalorder %s30, 1
      %p184 = por %p182, %p183
      %p186 = scmp.ne.s32.totalorder %s171, %s185
      %p187 = scmp.eq.s32.totalorder %s30, 0
      %p188 = por %p186, %p187
      %s189 = ssub.s32 %s24, %s31
      %p190 = scmp.eq.s32.totalorder %s189, 0
      %s192 = sadd.s32 %s191, 1
      %s193 = scalar_select %p190, %s191, %s192
      %p196 = pneg %p190
      %p197 = scmp.eq.s32.totalorder %s24, 1
      %p198 = por %p196, %p197
      %p199 = scmp.ne.s32.totalorder %s191, %s194
      %p200 = scmp.eq.s32.totalorder %s24, 0
      %p201 = por %p199, %p200
      %p202 = scmp.ne.s32.totalorder %s191, %s194
      %p203 = scmp.eq.s32.totalorder %s29, 1
      %p204 = por %p202, %p203
      %p205 = scmp.ne.s32.totalorder %s194, %s195
      %p206 = scmp.eq.s32.totalorder %s29, 0
      %p207 = por %p205, %p206
      %p208 = scmp.ne.s32.totalorder %s194, %s195
      %p209 = scmp.eq.s32.totalorder %s30, 1
      %p210 = por %p208, %p209
      %p212 = scmp.ne.s32.totalorder %s195, %s211
      %p213 = scmp.eq.s32.totalorder %s30, 0
      %p214 = por %p212, %p213
      %p215 = scmp.le.s32.totalorder 1, %s24
      %p216 = scmp.lt.s32.totalorder %s24, 3
      %p217 = pnand %p215, %p216
      %p218 = pneg %p217
      // Predicated region
      $region9: #{tpu_custom_call.1} parent=5 // pred_check
        _
      $region10: #{tpu_custom_call.1} parent=5 // pred_check_branch
        %220 = sbr.rel (%p217) target = $region12
      $region11: #{tpu_custom_call.1} parent=5 // pred_region
        %s221 = ssub.s32 %s24, 1
        // Predicated region
        $region13: #{tpu_custom_call.1} parent=11 // pred_check
          %p222 = pneg %p97
        $region14: #{tpu_custom_call.1} parent=11 // pred_check_branch
          %224 = sbr.rel (%p222) target = $region16
        $region15: #{tpu_custom_call.1} parent=11 // pred_region
          %226 = vsyncadd [#allocation6], 0
          %s227 = sshll.u32 %s2, 4
          %s228 = int_to_ptr.hbm [resolvable:$true] %s227
          %s229 = sshll.u32 [#allocation7], 4
          %s230 = int_to_ptr.vmem [resolvable:$true] %s229
          %235 = dma.hbm_to_vmem [thread:$0]  %s228, 24576, %s230, [#allocation6], 384, 384, 24
        $region16: #{tpu_custom_call.1} parent=11 // pred_fallthru
          _
        // Predicated region
        $region17: #{tpu_custom_call.1} parent=11 // pred_check
          %p236 = pneg %p118
        $region18: #{tpu_custom_call.1} parent=11 // pred_check_branch
          %238 = sbr.rel (%p236) target = $region20
        $region19: #{tpu_custom_call.1} parent=11 // pred_region
          %240 = vsyncadd [#allocation9], 0
          %s241 = sshll.u32 %s3, 4
          %s242 = int_to_ptr.hbm [resolvable:$true] %s241
          %s243 = sshll.u32 [#allocation8], 4
          %s244 = int_to_ptr.vmem [resolvable:$true] %s243
          %249 = dma.hbm_to_vmem [thread:$0]  %s242, 36864, %s244, [#allocation9], 384, 384, 24
        $region20: #{tpu_custom_call.1} parent=11 // pred_fallthru
          _
        // Predicated region
        $region21: #{tpu_custom_call.1} parent=11 // pred_check
          %p250 = pneg %p139
        $region22: #{tpu_custom_call.1} parent=11 // pred_check_branch
          %252 = sbr.rel (%p250) target = $region24
        $region23: #{tpu_custom_call.1} parent=11 // pred_region
          %254 = vsyncadd [#allocation9], 0
          %s256 = sshll.u32 %s4, 4
          %s257 = int_to_ptr.hbm [resolvable:$true] %s256
          %s258 = sshll.u32 [#allocation10], 4
          %s259 = int_to_ptr.vmem [resolvable:$true] %s258
          %261 = dma.hbm_to_vmem [thread:$0]  %s257, 96, %s259, [#allocation9]
        $region24: #{tpu_custom_call.1} parent=11 // pred_fallthru
          _
        // Predicated region
        $region25: #{tpu_custom_call.1} parent=11 // pred_check
          %p262 = pneg %p160
        $region26: #{tpu_custom_call.1} parent=11 // pred_check_branch
          %264 = sbr.rel (%p262) target = $region28
        $region27: #{tpu_custom_call.1} parent=11 // pred_region
          %266 = vsyncadd [#allocation12], 0
          %s267 = sshll.u32 %s5, 4
          %s268 = int_to_ptr.hbm [resolvable:$true] %s267
          %s269 = sshll.u32 [#allocation11], 4
          %s270 = int_to_ptr.vmem [resolvable:$true] %s269
          %275 = dma.hbm_to_vmem [thread:$0]  %s268, 12288, %s270, [#allocation12], 128, 128, 8
        $region28: #{tpu_custom_call.1} parent=11 // pred_fallthru
          _
        // Predicated region
        $region29: #{tpu_custom_call.1} parent=11 // pred_check
          %p276 = pneg %p181
        $region30: #{tpu_custom_call.1} parent=11 // pred_check_branch
          %278 = sbr.rel (%p276) target = $region32
        $region31: #{tpu_custom_call.1} parent=11 // pred_region
          %280 = vsyncadd [#allocation12], 0
          %s282 = sshll.u32 %s6, 4
          %s283 = int_to_ptr.hbm [resolvable:$true] %s282
          %s284 = sshll.u32 [#allocation13], 4
          %s285 = int_to_ptr.vmem [resolvable:$true] %s284
          %287 = dma.hbm_to_vmem [thread:$0]  %s283, 32, %s285, [#allocation12]
        $region32: #{tpu_custom_call.1} parent=11 // pred_fallthru
          _
      $region12: #{tpu_custom_call.1} parent=5 // pred_fallthru
        _
      %p288 = scmp.lt.s32.totalorder %s24, 2
      // Predicated region
      $region33: #{tpu_custom_call.1} parent=5 // pred_check
        %p289 = pneg %p288
      $region34: #{tpu_custom_call.1} parent=5 // pred_check_branch
        %291 = sbr.rel (%p289) target = $region36
      $region35: #{tpu_custom_call.1} parent=5 // pred_region
        // Predicated region
        $region37: #{tpu_custom_call.1} parent=35 // pred_check
          %p292 = pneg %p44
        $region38: #{tpu_custom_call.1} parent=35 // pred_check_branch
          %294 = sbr.rel (%p292) target = $region40
        $region39: #{tpu_custom_call.1} parent=35 // pred_region
          %s295 = sand.u32 %s34, 1
          %s296 = scalar_lea.sflag [#allocation3], %s295
          %s297 = sand.u32 %s34, 1
          %s298 = smul.addr %s297, 8
          %s299 = scalar_lea.vmem [#allocation2], %s298
          %301 = vsyncadd %s296, 0
          %s302 = smul.addr %s24, 8
          %s303 = scalar_lea.hbm %s0, %s302
          %s305 = sshll.u32 %s303, 4
          %s306 = int_to_ptr.hbm [resolvable:$true] %s305
          %s307 = sshll.u32 %s299, 4
          %s308 = int_to_ptr.vmem [resolvable:$true] %s307
          %310 = dma.hbm_to_vmem [thread:$0]  %s306, 128, %s308, %s296
        $region40: #{tpu_custom_call.1} parent=35 // pred_fallthru
          _
        // Predicated region
        $region41: #{tpu_custom_call.1} parent=35 // pred_check
          %p311 = pneg %p70
        $region42: #{tpu_custom_call.1} parent=35 // pred_check_branch
          %313 = sbr.rel (%p311) target = $region44
        $region43: #{tpu_custom_call.1} parent=35 // pred_region
          %s314 = sand.u32 %s24, 1
          %s315 = scalar_lea.sflag [#allocation6], %s314
          %s316 = sand.u32 %s60, 1
          %s317 = smul.addr %s316, 8
          %s318 = scalar_lea.vmem [#allocation5], %s317
          %320 = vsyncadd %s315, 0
          %s321 = smul.addr %s24, 8
          %s322 = scalar_lea.hbm %s1, %s321
          %s324 = sshll.u32 %s322, 4
          %s325 = int_to_ptr.hbm [resolvable:$true] %s324
          %s326 = sshll.u32 %s318, 4
          %s327 = int_to_ptr.vmem [resolvable:$true] %s326
          %329 = dma.hbm_to_vmem [thread:$0]  %s325, 128, %s327, %s315
        $region44: #{tpu_custom_call.1} parent=35 // pred_fallthru
          _
      $region36: #{tpu_custom_call.1} parent=5 // pred_fallthru
        _
      %p330 = scmp.le.s32.totalorder 1, %s24
      %p331 = scmp.lt.s32.totalorder %s24, 3
      %p332 = pnand %p330, %p331
      %p333 = pneg %p332
      // Predicated region
      $region45: #{tpu_custom_call.1} parent=5 // pred_check
        _
      $region46: #{tpu_custom_call.1} parent=5 // pred_check_branch
        %335 = sbr.rel (%p332) target = $region48
      $region47: #{tpu_custom_call.1} parent=5 // pred_region
        %s336 = ssub.s32 %s24, 1
        %s337 = sand.u32 %s37, 1
        %s338 = scalar_lea.sflag [#allocation3], %s337
        %s339 = sand.u32 %s37, 1
        %s340 = smul.addr %s339, 8
        %s341 = scalar_lea.vmem [#allocation2], %s340
        // Predicated region
        $region49: #{tpu_custom_call.1} parent=47 // pred_check
          %p342 = pneg %p50
        $region50: #{tpu_custom_call.1} parent=47 // pred_check_branch
          %344 = sbr.rel (%p342) target = $region52
        $region51: #{tpu_custom_call.1} parent=47 // pred_region
          %346 = dma.done %s338, 128
        $region52: #{tpu_custom_call.1} parent=47 // pred_fallthru
          _
        %s347 = sand.u32 %s29, 1
        %s348 = scalar_lea.sflag [#allocation6], %s347
        %s349 = sand.u32 %s63, 1
        %s350 = smul.addr %s349, 8
        %s351 = scalar_lea.vmem [#allocation5], %s350
        // Predicated region
        $region53: #{tpu_custom_call.1} parent=47 // pred_check
          %p352 = pneg %p76
        $region54: #{tpu_custom_call.1} parent=47 // pred_check_branch
          %354 = sbr.rel (%p352) target = $region56
        $region55: #{tpu_custom_call.1} parent=47 // pred_region
          %356 = dma.done %s348, 128
        $region56: #{tpu_custom_call.1} parent=47 // pred_fallthru
          _
        // Predicated region
        $region57: #{tpu_custom_call.1} parent=47 // pred_check
          %p357 = pneg %p97
        $region58: #{tpu_custom_call.1} parent=47 // pred_check_branch
          %359 = sbr.rel (%p357) target = $region60
        $region59: #{tpu_custom_call.1} parent=47 // pred_region
          %361 = dma.done [#allocation6], 24576
        $region60: #{tpu_custom_call.1} parent=47 // pred_fallthru
          _
        // Predicated region
        $region61: #{tpu_custom_call.1} parent=47 // pred_check
          %p362 = pneg %p118
        $region62: #{tpu_custom_call.1} parent=47 // pred_check_branch
          %364 = sbr.rel (%p362) target = $region64
        $region63: #{tpu_custom_call.1} parent=47 // pred_region
          %366 = dma.done [#allocation9], 36864
        $region64: #{tpu_custom_call.1} parent=47 // pred_fallthru
          _
        // Predicated region
        $region65: #{tpu_custom_call.1} parent=47 // pred_check
          %p367 = pneg %p139
        $region66: #{tpu_custom_call.1} parent=47 // pred_check_branch
          %369 = sbr.rel (%p367) target = $region68
        $region67: #{tpu_custom_call.1} parent=47 // pred_region
          %371 = dma.done [#allocation9], 96
        $region68: #{tpu_custom_call.1} parent=47 // pred_fallthru
          _
        // Predicated region
        $region69: #{tpu_custom_call.1} parent=47 // pred_check
          %p372 = pneg %p160
        $region70: #{tpu_custom_call.1} parent=47 // pred_check_branch
          %374 = sbr.rel (%p372) target = $region72
        $region71: #{tpu_custom_call.1} parent=47 // pred_region
          %376 = dma.done [#allocation12], 12288
        $region72: #{tpu_custom_call.1} parent=47 // pred_fallthru
          _
        // Predicated region
        $region73: #{tpu_custom_call.1} parent=47 // pred_check
          %p377 = pneg %p181
        $region74: #{tpu_custom_call.1} parent=47 // pred_check_branch
          %379 = sbr.rel (%p377) target = $region76
        $region75: #{tpu_custom_call.1} parent=47 // pred_region
          %381 = dma.done [#allocation12], 32
        $region76: #{tpu_custom_call.1} parent=47 // pred_fallthru
          _
        %s382 = sand.u32 %s37, 1
        %s383 = scalar_lea.sflag [#allocation3], %s382
        %s384 = sand.u32 %s37, 1
        %s385 = smul.addr %s384, 8
        %s386 = scalar_lea.vmem [#allocation2], %s385
        %p387 = pneg %p50
        %p388 = pneg %p47
        %s389 = sand.u32 %s29, 1
        %s390 = scalar_lea.sflag [#allocation6], %s389
        %s391 = sand.u32 %s63, 1
        %s392 = smul.addr %s391, 8
        %s393 = scalar_lea.vmem [#allocation5], %s392
        %p394 = pneg %p76
        %p395 = pneg %p73
        %p396 = pneg %p97
        %p397 = pneg %p94
        %p398 = pneg %p118
        %p399 = pneg %p115
        %p400 = pneg %p139
        %p401 = pneg %p136
        %p402 = pneg %p160
        %p403 = pneg %p157
        %p404 = pneg %p181
        %p405 = pneg %p178
        %p406 = pneg %p207
        %p407 = pneg %p204
        %s408 = sand.u32 %s194, 1
        %s409 = scalar_lea.sflag [#allocation4], %s408
        %s410 = sand.u32 %s194, 1
        %s411 = smul.addr %s410, 16
        %s412 = scalar_lea.vmem [#allocation14], %s411
        %v413 = vld [vmem:[%s341] sm:$0xff]
        %v414 = vld [vmem:[%s351] sm:$0xff]
        %vm415 = vcmask 130048
        %v416 = vsel %vm415, %v414, 0.0
        %417 = vadd.xlane.f32.xlu0 %v416
        %v418 = vpop.xlane.xlu0 %417
        %v419 = vmax.f32 %v418, 1.0
        %v420 = vrcp.pop %v419
        %v421 = vmul.f32 %v414, %v420
        %v422 = vlaneseq
        %v423 = vand.u32 %v422, 127
        %v424 = vadd.s32 %v423, 128
        %v425 = vadd.s32 %v423, 256
        %v426 = vadd.s32 %v423, 384
        %v427 = vperm.slane %v413, 0
        %v428 = vlaneseq
        %v429 = vshrl.u32 %v428, 7
        %431 = vset.pattern.permute.xlu0 %v429
        %432 = vperm.xlu0 %431, %v427
        %v433 = vpop.permute.xlu0 %432
        %v434 = vlaneseq
        %v435 = vshrl.u32 %v434, 7
        %v436 = vadd.s32 %v435, 8
        %437 = vset.pattern.permute.xlu0 %v436
        %438 = vperm.xlu0 %437, %v427
        %v439 = vpop.permute.xlu0 %438
        %v440 = vperm.slane %v413, 1
        %v441 = vlaneseq
        %v442 = vshrl.u32 %v441, 7
        %444 = vset.pattern.permute.xlu0 %v442
        %445 = vperm.xlu0 %444, %v440
        %v446 = vpop.permute.xlu0 %445
        %v447 = vlaneseq
        %v448 = vshrl.u32 %v447, 7
        %v449 = vadd.s32 %v448, 8
        %450 = vset.pattern.permute.xlu0 %v449
        %451 = vperm.xlu0 %450, %v440
        %v452 = vpop.permute.xlu0 %451
        %v453 = vperm.slane %v413, 2
        %v454 = vlaneseq
        %v455 = vshrl.u32 %v454, 7
        %457 = vset.pattern.permute.xlu0 %v455
        %458 = vperm.xlu0 %457, %v453
        %v459 = vpop.permute.xlu0 %458
        %v460 = vlaneseq
        %v461 = vshrl.u32 %v460, 7
        %v462 = vadd.s32 %v461, 8
        %463 = vset.pattern.permute.xlu0 %v462
        %464 = vperm.xlu0 %463, %v453
        %v465 = vpop.permute.xlu0 %464
        %v466 = vperm.slane %v413, 3
        %v467 = vlaneseq
        %v468 = vshrl.u32 %v467, 7
        %470 = vset.pattern.permute.xlu0 %v468
        %471 = vperm.xlu0 %470, %v466
        %v472 = vpop.permute.xlu0 %471
        %v473 = vlaneseq
        %v474 = vshrl.u32 %v473, 7
        %v475 = vadd.s32 %v474, 8
        %476 = vset.pattern.permute.xlu0 %v475
        %477 = vperm.xlu0 %476, %v466
        %v478 = vpop.permute.xlu0 %477
        %v479 = vperm.slane %v413, 4
        %v480 = vlaneseq
        %v481 = vshrl.u32 %v480, 7
        %483 = vset.pattern.permute.xlu0 %v481
        %484 = vperm.xlu0 %483, %v479
        %v485 = vpop.permute.xlu0 %484
        %v486 = vlaneseq
        %v487 = vshrl.u32 %v486, 7
        %v488 = vadd.s32 %v487, 8
        %489 = vset.pattern.permute.xlu0 %v488
        %490 = vperm.xlu0 %489, %v479
        %v491 = vpop.permute.xlu0 %490
        %v492 = vperm.slane %v413, 5
        %v493 = vlaneseq
        %v494 = vshrl.u32 %v493, 7
        %496 = vset.pattern.permute.xlu0 %v494
        %497 = vperm.xlu0 %496, %v492
        %v498 = vpop.permute.xlu0 %497
        %v499 = vlaneseq
        %v500 = vshrl.u32 %v499, 7
        %v501 = vadd.s32 %v500, 8
        %502 = vset.pattern.permute.xlu0 %v501
        %503 = vperm.xlu0 %502, %v492
        %v504 = vpop.permute.xlu0 %503
        %v505 = vperm.slane %v413, 6
        %v506 = vlaneseq
        %v507 = vshrl.u32 %v506, 7
        %509 = vset.pattern.permute.xlu0 %v507
        %510 = vperm.xlu0 %509, %v505
        %v511 = vpop.permute.xlu0 %510
        %v512 = vlaneseq
        %v513 = vshrl.u32 %v512, 7
        %v514 = vadd.s32 %v513, 8
        %515 = vset.pattern.permute.xlu0 %v514
        %516 = vperm.xlu0 %515, %v505
        %v517 = vpop.permute.xlu0 %516
        %v518 = vperm.slane %v413, 7
        %v519 = vlaneseq
        %v520 = vshrl.u32 %v519, 7
        %522 = vset.pattern.permute.xlu0 %v520
        %523 = vperm.xlu0 %522, %v518
        %v524 = vpop.permute.xlu0 %523
        %v525 = vlaneseq
        %v526 = vshrl.u32 %v525, 7
        %v527 = vadd.s32 %v526, 8
        %528 = vset.pattern.permute.xlu0 %v527
        %529 = vperm.xlu0 %528, %v518
        %v530 = vpop.permute.xlu0 %529
        %vm531 = vcmp.eq.s32.totalorder %v433, %v423
        %vm532 = vcmp.eq.s32.totalorder %v433, %v424
        %vm533 = vcmp.eq.s32.totalorder %v433, %v425
        %vm534 = vcmp.eq.s32.totalorder %v433, %v426
        %vm535 = vcmp.eq.s32.totalorder %v439, %v423
        %vm536 = vcmp.eq.s32.totalorder %v439, %v424
        %vm537 = vcmp.eq.s32.totalorder %v439, %v425
        %vm538 = vcmp.eq.s32.totalorder %v439, %v426
        %vm539 = vcmp.eq.s32.totalorder %v446, %v423
        %vm540 = vcmp.eq.s32.totalorder %v446, %v424
        %vm541 = vcmp.eq.s32.totalorder %v446, %v425
        %vm542 = vcmp.eq.s32.totalorder %v446, %v426
        %vm543 = vcmp.eq.s32.totalorder %v452, %v423
        %vm544 = vcmp.eq.s32.totalorder %v452, %v424
        %vm545 = vcmp.eq.s32.totalorder %v452, %v425
        %vm546 = vcmp.eq.s32.totalorder %v452, %v426
        %vm547 = vcmp.eq.s32.totalorder %v459, %v423
        %vm548 = vcmp.eq.s32.totalorder %v459, %v424
        %vm549 = vcmp.eq.s32.totalorder %v459, %v425
        %vm550 = vcmp.eq.s32.totalorder %v459, %v426
        %vm551 = vcmp.eq.s32.totalorder %v465, %v423
        %vm552 = vcmp.eq.s32.totalorder %v465, %v424
        %vm553 = vcmp.eq.s32.totalorder %v465, %v425
        %vm554 = vcmp.eq.s32.totalorder %v465, %v426
        %vm555 = vcmp.eq.s32.totalorder %v472, %v423
        %vm556 = vcmp.eq.s32.totalorder %v472, %v424
        %vm557 = vcmp.eq.s32.totalorder %v472, %v425
        %vm558 = vcmp.eq.s32.totalorder %v472, %v426
        %vm559 = vcmp.eq.s32.totalorder %v478, %v423
        %vm560 = vcmp.eq.s32.totalorder %v478, %v424
        %vm561 = vcmp.eq.s32.totalorder %v478, %v425
        %vm562 = vcmp.eq.s32.totalorder %v478, %v426
        %vm563 = vcmp.eq.s32.totalorder %v485, %v423
        %vm564 = vcmp.eq.s32.totalorder %v485, %v424
        %vm565 = vcmp.eq.s32.totalorder %v485, %v425
        %vm566 = vcmp.eq.s32.totalorder %v485, %v426
        %vm567 = vcmp.eq.s32.totalorder %v491, %v423
        %vm568 = vcmp.eq.s32.totalorder %v491, %v424
        %vm569 = vcmp.eq.s32.totalorder %v491, %v425
        %vm570 = vcmp.eq.s32.totalorder %v491, %v426
        %vm571 = vcmp.eq.s32.totalorder %v498, %v423
        %vm572 = vcmp.eq.s32.totalorder %v498, %v424
        %vm573 = vcmp.eq.s32.totalorder %v498, %v425
        %vm574 = vcmp.eq.s32.totalorder %v498, %v426
        %vm575 = vcmp.eq.s32.totalorder %v504, %v423
        %vm576 = vcmp.eq.s32.totalorder %v504, %v424
        %vm577 = vcmp.eq.s32.totalorder %v504, %v425
        %vm578 = vcmp.eq.s32.totalorder %v504, %v426
        %vm579 = vcmp.eq.s32.totalorder %v511, %v423
        %vm580 = vcmp.eq.s32.totalorder %v511, %v424
        %vm581 = vcmp.eq.s32.totalorder %v511, %v425
        %vm582 = vcmp.eq.s32.totalorder %v511, %v426
        %vm583 = vcmp.eq.s32.totalorder %v517, %v423
        %vm584 = vcmp.eq.s32.totalorder %v517, %v424
        %vm585 = vcmp.eq.s32.totalorder %v517, %v425
        %vm586 = vcmp.eq.s32.totalorder %v517, %v426
        %vm587 = vcmp.eq.s32.totalorder %v524, %v423
        %vm588 = vcmp.eq.s32.totalorder %v524, %v424
        %vm589 = vcmp.eq.s32.totalorder %v524, %v425
        %vm590 = vcmp.eq.s32.totalorder %v524, %v426
        %vm591 = vcmp.eq.s32.totalorder %v530, %v423
        %vm592 = vcmp.eq.s32.totalorder %v530, %v424
        %vm593 = vcmp.eq.s32.totalorder %v530, %v425
        %vm594 = vcmp.eq.s32.totalorder %v530, %v426
        %v595 = vperm.slane %v421, 0
        %v596 = vlaneseq
        %v597 = vshrl.u32 %v596, 7
        %599 = vset.pattern.permute.xlu0 %v597
        %600 = vperm.xlu0 %599, %v595
        %v601 = vpop.permute.xlu0 %600
        %v602 = vlaneseq
        %v603 = vshrl.u32 %v602, 7
        %v604 = vadd.s32 %v603, 8
        %605 = vset.pattern.permute.xlu0 %v604
        %606 = vperm.xlu0 %605, %v595
        %v607 = vpop.permute.xlu0 %606
        %v608 = vperm.slane %v421, 1
        %v609 = vlaneseq
        %v610 = vshrl.u32 %v609, 7
        %612 = vset.pattern.permute.xlu0 %v610
        %613 = vperm.xlu0 %612, %v608
        %v614 = vpop.permute.xlu0 %613
        %v615 = vlaneseq
        %v616 = vshrl.u32 %v615, 7
        %v617 = vadd.s32 %v616, 8
        %618 = vset.pattern.permute.xlu0 %v617
        %619 = vperm.xlu0 %618, %v608
        %v620 = vpop.permute.xlu0 %619
        %v621 = vperm.slane %v421, 2
        %v622 = vlaneseq
        %v623 = vshrl.u32 %v622, 7
        %625 = vset.pattern.permute.xlu0 %v623
        %626 = vperm.xlu0 %625, %v621
        %v627 = vpop.permute.xlu0 %626
        %v628 = vlaneseq
        %v629 = vshrl.u32 %v628, 7
        %v630 = vadd.s32 %v629, 8
        %631 = vset.pattern.permute.xlu0 %v630
        %632 = vperm.xlu0 %631, %v621
        %v633 = vpop.permute.xlu0 %632
        %v634 = vperm.slane %v421, 3
        %v635 = vlaneseq
        %v636 = vshrl.u32 %v635, 7
        %638 = vset.pattern.permute.xlu0 %v636
        %639 = vperm.xlu0 %638, %v634
        %v640 = vpop.permute.xlu0 %639
        %v641 = vlaneseq
        %v642 = vshrl.u32 %v641, 7
        %v643 = vadd.s32 %v642, 8
        %644 = vset.pattern.permute.xlu0 %v643
        %645 = vperm.xlu0 %644, %v634
        %v646 = vpop.permute.xlu0 %645
        %v647 = vperm.slane %v421, 4
        %v648 = vlaneseq
        %v649 = vshrl.u32 %v648, 7
        %651 = vset.pattern.permute.xlu0 %v649
        %652 = vperm.xlu0 %651, %v647
        %v653 = vpop.permute.xlu0 %652
        %v654 = vlaneseq
        %v655 = vshrl.u32 %v654, 7
        %v656 = vadd.s32 %v655, 8
        %657 = vset.pattern.permute.xlu0 %v656
        %658 = vperm.xlu0 %657, %v647
        %v659 = vpop.permute.xlu0 %658
        %v660 = vperm.slane %v421, 5
        %v661 = vlaneseq
        %v662 = vshrl.u32 %v661, 7
        %664 = vset.pattern.permute.xlu0 %v662
        %665 = vperm.xlu0 %664, %v660
        %v666 = vpop.permute.xlu0 %665
        %v667 = vlaneseq
        %v668 = vshrl.u32 %v667, 7
        %v669 = vadd.s32 %v668, 8
        %670 = vset.pattern.permute.xlu0 %v669
        %671 = vperm.xlu0 %670, %v660
        %v672 = vpop.permute.xlu0 %671
        %v673 = vperm.slane %v421, 6
        %v674 = vlaneseq
        %v675 = vshrl.u32 %v674, 7
        %677 = vset.pattern.permute.xlu0 %v675
        %678 = vperm.xlu0 %677, %v673
        %v679 = vpop.permute.xlu0 %678
        %v680 = vlaneseq
        %v681 = vshrl.u32 %v680, 7
        %v682 = vadd.s32 %v681, 8
        %683 = vset.pattern.permute.xlu0 %v682
        %684 = vperm.xlu0 %683, %v673
        %v685 = vpop.permute.xlu0 %684
        %v686 = vperm.slane %v421, 7
        %v687 = vlaneseq
        %v688 = vshrl.u32 %v687, 7
        %690 = vset.pattern.permute.xlu0 %v688
        %691 = vperm.xlu0 %690, %v686
        %v692 = vpop.permute.xlu0 %691
        %v693 = vlaneseq
        %v694 = vshrl.u32 %v693, 7
        %v695 = vadd.s32 %v694, 8
        %696 = vset.pattern.permute.xlu0 %v695
        %697 = vperm.xlu0 %696, %v686
        %v698 = vpop.permute.xlu0 %697
        %v699 = vsel %vm531, %v601, 0.0
        %v700 = vsel %vm532, %v601, 0.0
        %v701 = vsel %vm533, %v601, 0.0
        %v702 = vsel %vm534, %v601, 0.0
        %v703 = vsel %vm535, %v607, 0.0
        %v704 = vsel %vm536, %v607, 0.0
        %v705 = vsel %vm537, %v607, 0.0
        %v706 = vsel %vm538, %v607, 0.0
        %v707 = vsel %vm539, %v614, 0.0
        %v708 = vsel %vm540, %v614, 0.0
        %v709 = vsel %vm541, %v614, 0.0
        %v710 = vsel %vm542, %v614, 0.0
        %v711 = vsel %vm543, %v620, 0.0
        %v712 = vsel %vm544, %v620, 0.0
        %v713 = vsel %vm545, %v620, 0.0
        %v714 = vsel %vm546, %v620, 0.0
        %v715 = vsel %vm547, %v627, 0.0
        %v716 = vsel %vm548, %v627, 0.0
        %v717 = vsel %vm549, %v627, 0.0
        %v718 = vsel %vm550, %v627, 0.0
        %v719 = vsel %vm551, %v633, 0.0
        %v720 = vsel %vm552, %v633, 0.0
        %v721 = vsel %vm553, %v633, 0.0
        %v722 = vsel %vm554, %v633, 0.0
        %v723 = vsel %vm555, %v640, 0.0
        %v724 = vsel %vm556, %v640, 0.0
        %v725 = vsel %vm557, %v640, 0.0
        %v726 = vsel %vm558, %v640, 0.0
        %v727 = vsel %vm559, %v646, 0.0
        %v728 = vsel %vm560, %v646, 0.0
        %v729 = vsel %vm561, %v646, 0.0
        %v730 = vsel %vm562, %v646, 0.0
        %v731 = vsel %vm563, %v653, 0.0
        %v732 = vsel %vm564, %v653, 0.0
        %v733 = vsel %vm565, %v653, 0.0
        %v734 = vsel %vm566, %v653, 0.0
        %v735 = vsel %vm567, %v659, 0.0
        %v736 = vsel %vm568, %v659, 0.0
        %v737 = vsel %vm569, %v659, 0.0
        %v738 = vsel %vm570, %v659, 0.0
        %v739 = vsel %vm571, %v666, 0.0
        %v740 = vsel %vm572, %v666, 0.0
        %v741 = vsel %vm573, %v666, 0.0
        %v742 = vsel %vm574, %v666, 0.0
        %v743 = vsel %vm575, %v672, 0.0
        %v744 = vsel %vm576, %v672, 0.0
        %v745 = vsel %vm577, %v672, 0.0
        %v746 = vsel %vm578, %v672, 0.0
        %v747 = vsel %vm579, %v679, 0.0
        %v748 = vsel %vm580, %v679, 0.0
        %v749 = vsel %vm581, %v679, 0.0
        %v750 = vsel %vm582, %v679, 0.0
        %v751 = vsel %vm583, %v685, 0.0
        %v752 = vsel %vm584, %v685, 0.0
        %v753 = vsel %vm585, %v685, 0.0
        %v754 = vsel %vm586, %v685, 0.0
        %v755 = vsel %vm587, %v692, 0.0
        %v756 = vsel %vm588, %v692, 0.0
        %v757 = vsel %vm589, %v692, 0.0
        %v758 = vsel %vm590, %v692, 0.0
        %v759 = vsel %vm591, %v698, 0.0
        %v760 = vsel %vm592, %v698, 0.0
        %v761 = vsel %vm593, %v698, 0.0
        %v762 = vsel %vm594, %v698, 0.0
        %v763 = vadd.f32 %v699, %v703
        %v764 = vrot.slane %v763, 4
        %v765 = vadd.f32 %v763, %v764
        %v766 = vrot.slane %v765, 2
        %v767 = vadd.f32 %v765, %v766
        %v768 = vrot.slane %v767, 1
        %v769 = vadd.f32 %v767, %v768
        %v770 = vadd.f32 %v700, %v704
        %v771 = vrot.slane %v770, 4
        %v772 = vadd.f32 %v770, %v771
        %v773 = vrot.slane %v772, 2
        %v774 = vadd.f32 %v772, %v773
        %v775 = vrot.slane %v774, 1
        %v776 = vadd.f32 %v774, %v775
        %v777 = vadd.f32 %v701, %v705
        %v778 = vrot.slane %v777, 4
        %v779 = vadd.f32 %v777, %v778
        %v780 = vrot.slane %v779, 2
        %v781 = vadd.f32 %v779, %v780
        %v782 = vrot.slane %v781, 1
        %v783 = vadd.f32 %v781, %v782
        %v784 = vadd.f32 %v702, %v706
        %v785 = vrot.slane %v784, 4
        %v786 = vadd.f32 %v784, %v785
        %v787 = vrot.slane %v786, 2
        %v788 = vadd.f32 %v786, %v787
        %v789 = vrot.slane %v788, 1
        %v790 = vadd.f32 %v788, %v789
        %v791 = vadd.f32 %v707, %v711
        %v792 = vrot.slane %v791, 4
        %v793 = vadd.f32 %v791, %v792
        %v794 = vrot.slane %v793, 2
        %v795 = vadd.f32 %v793, %v794
        %v796 = vrot.slane %v795, 1
        %v797 = vadd.f32 %v795, %v796
        %v798 = vadd.f32 %v708, %v712
        %v799 = vrot.slane %v798, 4
        %v800 = vadd.f32 %v798, %v799
        %v801 = vrot.slane %v800, 2
        %v802 = vadd.f32 %v800, %v801
        %v803 = vrot.slane %v802, 1
        %v804 = vadd.f32 %v802, %v803
        %v805 = vadd.f32 %v709, %v713
        %v806 = vrot.slane %v805, 4
        %v807 = vadd.f32 %v805, %v806
        %v808 = vrot.slane %v807, 2
        %v809 = vadd.f32 %v807, %v808
        %v810 = vrot.slane %v809, 1
        %v811 = vadd.f32 %v809, %v810
        %v812 = vadd.f32 %v710, %v714
        %v813 = vrot.slane %v812, 4
        %v814 = vadd.f32 %v812, %v813
        %v815 = vrot.slane %v814, 2
        %v816 = vadd.f32 %v814, %v815
        %v817 = vrot.slane %v816, 1
        %v818 = vadd.f32 %v816, %v817
        %v819 = vadd.f32 %v715, %v719
        %v820 = vrot.slane %v819, 4
        %v821 = vadd.f32 %v819, %v820
        %v822 = vrot.slane %v821, 2
        %v823 = vadd.f32 %v821, %v822
        %v824 = vrot.slane %v823, 1
        %v825 = vadd.f32 %v823, %v824
        %v826 = vadd.f32 %v716, %v720
        %v827 = vrot.slane %v826, 4
        %v828 = vadd.f32 %v826, %v827
        %v829 = vrot.slane %v828, 2
        %v830 = vadd.f32 %v828, %v829
        %v831 = vrot.slane %v830, 1
        %v832 = vadd.f32 %v830, %v831
        %v833 = vadd.f32 %v717, %v721
        %v834 = vrot.slane %v833, 4
        %v835 = vadd.f32 %v833, %v834
        %v836 = vrot.slane %v835, 2
        %v837 = vadd.f32 %v835, %v836
        %v838 = vrot.slane %v837, 1
        %v839 = vadd.f32 %v837, %v838
        %v840 = vadd.f32 %v718, %v722
        %v841 = vrot.slane %v840, 4
        %v842 = vadd.f32 %v840, %v841
        %v843 = vrot.slane %v842, 2
        %v844 = vadd.f32 %v842, %v843
        %v845 = vrot.slane %v844, 1
        %v846 = vadd.f32 %v844, %v845
        %v847 = vadd.f32 %v723, %v727
        %v848 = vrot.slane %v847, 4
        %v849 = vadd.f32 %v847, %v848
        %v850 = vrot.slane %v849, 2
        %v851 = vadd.f32 %v849, %v850
        %v852 = vrot.slane %v851, 1
        %v853 = vadd.f32 %v851, %v852
        %v854 = vadd.f32 %v724, %v728
        %v855 = vrot.slane %v854, 4
        %v856 = vadd.f32 %v854, %v855
        %v857 = vrot.slane %v856, 2
        %v858 = vadd.f32 %v856, %v857
        %v859 = vrot.slane %v858, 1
        %v860 = vadd.f32 %v858, %v859
        %v861 = vadd.f32 %v725, %v729
        %v862 = vrot.slane %v861, 4
        %v863 = vadd.f32 %v861, %v862
        %v864 = vrot.slane %v863, 2
        %v865 = vadd.f32 %v863, %v864
        %v866 = vrot.slane %v865, 1
        %v867 = vadd.f32 %v865, %v866
        %v868 = vadd.f32 %v726, %v730
        %v869 = vrot.slane %v868, 4
        %v870 = vadd.f32 %v868, %v869
        %v871 = vrot.slane %v870, 2
        %v872 = vadd.f32 %v870, %v871
        %v873 = vrot.slane %v872, 1
        %v874 = vadd.f32 %v872, %v873
        %v875 = vadd.f32 %v731, %v735
        %v876 = vrot.slane %v875, 4
        %v877 = vadd.f32 %v875, %v876
        %v878 = vrot.slane %v877, 2
        %v879 = vadd.f32 %v877, %v878
        %v880 = vrot.slane %v879, 1
        %v881 = vadd.f32 %v879, %v880
        %v882 = vadd.f32 %v732, %v736
        %v883 = vrot.slane %v882, 4
        %v884 = vadd.f32 %v882, %v883
        %v885 = vrot.slane %v884, 2
        %v886 = vadd.f32 %v884, %v885
        %v887 = vrot.slane %v886, 1
        %v888 = vadd.f32 %v886, %v887
        %v889 = vadd.f32 %v733, %v737
        %v890 = vrot.slane %v889, 4
        %v891 = vadd.f32 %v889, %v890
        %v892 = vrot.slane %v891, 2
        %v893 = vadd.f32 %v891, %v892
        %v894 = vrot.slane %v893, 1
        %v895 = vadd.f32 %v893, %v894
        %v896 = vadd.f32 %v734, %v738
        %v897 = vrot.slane %v896, 4
        %v898 = vadd.f32 %v896, %v897
        %v899 = vrot.slane %v898, 2
        %v900 = vadd.f32 %v898, %v899
        %v901 = vrot.slane %v900, 1
        %v902 = vadd.f32 %v900, %v901
        %v903 = vadd.f32 %v739, %v743
        %v904 = vrot.slane %v903, 4
        %v905 = vadd.f32 %v903, %v904
        %v906 = vrot.slane %v905, 2
        %v907 = vadd.f32 %v905, %v906
        %v908 = vrot.slane %v907, 1
        %v909 = vadd.f32 %v907, %v908
        %v910 = vadd.f32 %v740, %v744
        %v911 = vrot.slane %v910, 4
        %v912 = vadd.f32 %v910, %v911
        %v913 = vrot.slane %v912, 2
        %v914 = vadd.f32 %v912, %v913
        %v915 = vrot.slane %v914, 1
        %v916 = vadd.f32 %v914, %v915
        %v917 = vadd.f32 %v741, %v745
        %v918 = vrot.slane %v917, 4
        %v919 = vadd.f32 %v917, %v918
        %v920 = vrot.slane %v919, 2
        %v921 = vadd.f32 %v919, %v920
        %v922 = vrot.slane %v921, 1
        %v923 = vadd.f32 %v921, %v922
        %v924 = vadd.f32 %v742, %v746
        %v925 = vrot.slane %v924, 4
        %v926 = vadd.f32 %v924, %v925
        %v927 = vrot.slane %v926, 2
        %v928 = vadd.f32 %v926, %v927
        %v929 = vrot.slane %v928, 1
        %v930 = vadd.f32 %v928, %v929
        %v931 = vadd.f32 %v747, %v751
        %v932 = vrot.slane %v931, 4
        %v933 = vadd.f32 %v931, %v932
        %v934 = vrot.slane %v933, 2
        %v935 = vadd.f32 %v933, %v934
        %v936 = vrot.slane %v935, 1
        %v937 = vadd.f32 %v935, %v936
        %v938 = vadd.f32 %v748, %v752
        %v939 = vrot.slane %v938, 4
        %v940 = vadd.f32 %v938, %v939
        %v941 = vrot.slane %v940, 2
        %v942 = vadd.f32 %v940, %v941
        %v943 = vrot.slane %v942, 1
        %v944 = vadd.f32 %v942, %v943
        %v945 = vadd.f32 %v749, %v753
        %v946 = vrot.slane %v945, 4
        %v947 = vadd.f32 %v945, %v946
        %v948 = vrot.slane %v947, 2
        %v949 = vadd.f32 %v947, %v948
        %v950 = vrot.slane %v949, 1
        %v951 = vadd.f32 %v949, %v950
        %v952 = vadd.f32 %v750, %v754
        %v953 = vrot.slane %v952, 4
        %v954 = vadd.f32 %v952, %v953
        %v955 = vrot.slane %v954, 2
        %v956 = vadd.f32 %v954, %v955
        %v957 = vrot.slane %v956, 1
        %v958 = vadd.f32 %v956, %v957
        %v959 = vadd.f32 %v755, %v759
        %v960 = vrot.slane %v959, 4
        %v961 = vadd.f32 %v959, %v960
        %v962 = vrot.slane %v961, 2
        %v963 = vadd.f32 %v961, %v962
        %v964 = vrot.slane %v963, 1
        %v965 = vadd.f32 %v963, %v964
        %v966 = vadd.f32 %v756, %v760
        %v967 = vrot.slane %v966, 4
        %v968 = vadd.f32 %v966, %v967
        %v969 = vrot.slane %v968, 2
        %v970 = vadd.f32 %v968, %v969
        %v971 = vrot.slane %v970, 1
        %v972 = vadd.f32 %v970, %v971
        %v973 = vadd.f32 %v757, %v761
        %v974 = vrot.slane %v973, 4
        %v975 = vadd.f32 %v973, %v974
        %v976 = vrot.slane %v975, 2
        %v977 = vadd.f32 %v975, %v976
        %v978 = vrot.slane %v977, 1
        %v979 = vadd.f32 %v977, %v978
        %v980 = vadd.f32 %v758, %v762
        %v981 = vrot.slane %v980, 4
        %v982 = vadd.f32 %v980, %v981
        %v983 = vrot.slane %v982, 2
        %v984 = vadd.f32 %v982, %v983
        %v985 = vrot.slane %v984, 1
        %v986 = vadd.f32 %v984, %v985
        %v987 = vpack.c.bf16 %v769, %v769
        %v988 = vpack.c.bf16 %v776, %v776
        %v989 = vpack.c.bf16 %v783, %v783
        %v990 = vpack.c.bf16 %v790, %v790
        %v991 = vpack.c.bf16 %v797, %v797
        %v992 = vpack.c.bf16 %v804, %v804
        %v993 = vpack.c.bf16 %v811, %v811
        %v994 = vpack.c.bf16 %v818, %v818
        %v995 = vpack.c.bf16 %v825, %v825
        %v996 = vpack.c.bf16 %v832, %v832
        %v997 = vpack.c.bf16 %v839, %v839
        %v998 = vpack.c.bf16 %v846, %v846
        %v999 = vpack.c.bf16 %v853, %v853
        %v1000 = vpack.c.bf16 %v860, %v860
        %v1001 = vpack.c.bf16 %v867, %v867
        %v1002 = vpack.c.bf16 %v874, %v874
        %v1003 = vpack.c.bf16 %v881, %v881
        %v1004 = vpack.c.bf16 %v888, %v888
        %v1005 = vpack.c.bf16 %v895, %v895
        %v1006 = vpack.c.bf16 %v902, %v902
        %v1007 = vpack.c.bf16 %v909, %v909
        %v1008 = vpack.c.bf16 %v916, %v916
        %v1009 = vpack.c.bf16 %v923, %v923
        %v1010 = vpack.c.bf16 %v930, %v930
        %v1011 = vpack.c.bf16 %v937, %v937
        %v1012 = vpack.c.bf16 %v944, %v944
        %v1013 = vpack.c.bf16 %v951, %v951
        %v1014 = vpack.c.bf16 %v958, %v958
        %v1015 = vpack.c.bf16 %v965, %v965
        %v1016 = vpack.c.bf16 %v972, %v972
        %v1017 = vpack.c.bf16 %v979, %v979
        %v1018 = vpack.c.bf16 %v986, %v986
        %v1019 = vld [vmem:[#allocation7] sm:$0xff]
        %v1020 = vld [vmem:[#allocation7 + $0x8] sm:$0xff]
        %v1021 = vld [vmem:[#allocation7 + $0x10] sm:$0xff]
        %v1022 = vld [vmem:[#allocation7 + $0x18] sm:$0xff]
        %v1023 = vld [vmem:[#allocation7 + $0x20] sm:$0xff]
        %v1024 = vld [vmem:[#allocation7 + $0x28] sm:$0xff]
        %v1025 = vld [vmem:[#allocation7 + $0x30] sm:$0xff]
        %v1026 = vld [vmem:[#allocation7 + $0x38] sm:$0xff]
        %v1027 = vld [vmem:[#allocation7 + $0x40] sm:$0xff]
        %v1028 = vld [vmem:[#allocation7 + $0x48] sm:$0xff]
        %v1029 = vld [vmem:[#allocation7 + $0x50] sm:$0xff]
        %v1030 = vld [vmem:[#allocation7 + $0x58] sm:$0xff]
        %v1031 = vld [vmem:[#allocation7 + $0x60] sm:$0xff]
        %v1032 = vld [vmem:[#allocation7 + $0x68] sm:$0xff]
        %v1033 = vld [vmem:[#allocation7 + $0x70] sm:$0xff]
        %v1034 = vld [vmem:[#allocation7 + $0x78] sm:$0xff]
        %v1035 = vld [vmem:[#allocation7 + $0x80] sm:$0xff]
        %v1036 = vld [vmem:[#allocation7 + $0x88] sm:$0xff]
        %v1037 = vld [vmem:[#allocation7 + $0x90] sm:$0xff]
        %v1038 = vld [vmem:[#allocation7 + $0x98] sm:$0xff]
        %v1039 = vld [vmem:[#allocation7 + $0xa0] sm:$0xff]
        %v1040 = vld [vmem:[#allocation7 + $0xa8] sm:$0xff]
        %v1041 = vld [vmem:[#allocation7 + $0xb0] sm:$0xff]
        %v1042 = vld [vmem:[#allocation7 + $0xb8] sm:$0xff]
        %v1043 = vld [vmem:[#allocation7 + $0xc0] sm:$0xff]
        %v1044 = vld [vmem:[#allocation7 + $0xc8] sm:$0xff]
        %v1045 = vld [vmem:[#allocation7 + $0xd0] sm:$0xff]
        %v1046 = vld [vmem:[#allocation7 + $0xd8] sm:$0xff]
        %v1047 = vld [vmem:[#allocation7 + $0xe0] sm:$0xff]
        %v1048 = vld [vmem:[#allocation7 + $0xe8] sm:$0xff]
        %v1049 = vld [vmem:[#allocation7 + $0xf0] sm:$0xff]
        %v1050 = vld [vmem:[#allocation7 + $0xf8] sm:$0xff]
        %v1051 = vld [vmem:[#allocation7 + $0x100] sm:$0xff]
        %v1052 = vld [vmem:[#allocation7 + $0x108] sm:$0xff]
        %v1053 = vld [vmem:[#allocation7 + $0x110] sm:$0xff]
        %v1054 = vld [vmem:[#allocation7 + $0x118] sm:$0xff]
        %v1055 = vld [vmem:[#allocation7 + $0x120] sm:$0xff]
        %v1056 = vld [vmem:[#allocation7 + $0x128] sm:$0xff]
        %v1057 = vld [vmem:[#allocation7 + $0x130] sm:$0xff]
        %v1058 = vld [vmem:[#allocation7 + $0x138] sm:$0xff]
        %v1059 = vld [vmem:[#allocation7 + $0x140] sm:$0xff]
        %v1060 = vld [vmem:[#allocation7 + $0x148] sm:$0xff]
        %v1061 = vld [vmem:[#allocation7 + $0x150] sm:$0xff]
        %v1062 = vld [vmem:[#allocation7 + $0x158] sm:$0xff]
        %v1063 = vld [vmem:[#allocation7 + $0x160] sm:$0xff]
        %v1064 = vld [vmem:[#allocation7 + $0x168] sm:$0xff]
        %v1065 = vld [vmem:[#allocation7 + $0x170] sm:$0xff]
        %v1066 = vld [vmem:[#allocation7 + $0x178] sm:$0xff]
        %v1067 = vld [vmem:[#allocation7 + $0x180] sm:$0xff]
        %v1068 = vld [vmem:[#allocation7 + $0x188] sm:$0xff]
        %v1069 = vld [vmem:[#allocation7 + $0x190] sm:$0xff]
        %v1070 = vld [vmem:[#allocation7 + $0x198] sm:$0xff]
        %v1071 = vld [vmem:[#allocation7 + $0x1a0] sm:$0xff]
        %v1072 = vld [vmem:[#allocation7 + $0x1a8] sm:$0xff]
        %v1073 = vld [vmem:[#allocation7 + $0x1b0] sm:$0xff]
        %v1074 = vld [vmem:[#allocation7 + $0x1b8] sm:$0xff]
        %v1075 = vld [vmem:[#allocation7 + $0x1c0] sm:$0xff]
        %v1076 = vld [vmem:[#allocation7 + $0x1c8] sm:$0xff]
        %v1077 = vld [vmem:[#allocation7 + $0x1d0] sm:$0xff]
        %v1078 = vld [vmem:[#allocation7 + $0x1d8] sm:$0xff]
        %v1079 = vld [vmem:[#allocation7 + $0x1e0] sm:$0xff]
        %v1080 = vld [vmem:[#allocation7 + $0x1e8] sm:$0xff]
        %v1081 = vld [vmem:[#allocation7 + $0x1f0] sm:$0xff]
        %v1082 = vld [vmem:[#allocation7 + $0x1f8] sm:$0xff]
        %v1083 = vld [vmem:[#allocation7 + $0x200] sm:$0xff]
        %v1084 = vld [vmem:[#allocation7 + $0x208] sm:$0xff]
        %v1085 = vld [vmem:[#allocation7 + $0x210] sm:$0xff]
        %v1086 = vld [vmem:[#allocation7 + $0x218] sm:$0xff]
        %v1087 = vld [vmem:[#allocation7 + $0x220] sm:$0xff]
        %v1088 = vld [vmem:[#allocation7 + $0x228] sm:$0xff]
        %v1089 = vld [vmem:[#allocation7 + $0x230] sm:$0xff]
        %v1090 = vld [vmem:[#allocation7 + $0x238] sm:$0xff]
        %v1091 = vld [vmem:[#allocation7 + $0x240] sm:$0xff]
        %v1092 = vld [vmem:[#allocation7 + $0x248] sm:$0xff]
        %v1093 = vld [vmem:[#allocation7 + $0x250] sm:$0xff]
        %v1094 = vld [vmem:[#allocation7 + $0x258] sm:$0xff]
        %v1095 = vld [vmem:[#allocation7 + $0x260] sm:$0xff]
        %v1096 = vld [vmem:[#allocation7 + $0x268] sm:$0xff]
        %v1097 = vld [vmem:[#allocation7 + $0x270] sm:$0xff]
        %v1098 = vld [vmem:[#allocation7 + $0x278] sm:$0xff]
        %v1099 = vld [vmem:[#allocation7 + $0x280] sm:$0xff]
        %v1100 = vld [vmem:[#allocation7 + $0x288] sm:$0xff]
        %v1101 = vld [vmem:[#allocation7 + $0x290] sm:$0xff]
        %v1102 = vld [vmem:[#allocation7 + $0x298] sm:$0xff]
        %v1103 = vld [vmem:[#allocation7 + $0x2a0] sm:$0xff]
        %v1104 = vld [vmem:[#allocation7 + $0x2a8] sm:$0xff]
        %v1105 = vld [vmem:[#allocation7 + $0x2b0] sm:$0xff]
        %v1106 = vld [vmem:[#allocation7 + $0x2b8] sm:$0xff]
        %v1107 = vld [vmem:[#allocation7 + $0x2c0] sm:$0xff]
        %v1108 = vld [vmem:[#allocation7 + $0x2c8] sm:$0xff]
        %v1109 = vld [vmem:[#allocation7 + $0x2d0] sm:$0xff]
        %v1110 = vld [vmem:[#allocation7 + $0x2d8] sm:$0xff]
        %v1111 = vld [vmem:[#allocation7 + $0x2e0] sm:$0xff]
        %v1112 = vld [vmem:[#allocation7 + $0x2e8] sm:$0xff]
        %v1113 = vld [vmem:[#allocation7 + $0x2f0] sm:$0xff]
        %v1114 = vld [vmem:[#allocation7 + $0x2f8] sm:$0xff]
        %v1115 = vld [vmem:[#allocation7 + $0x300] sm:$0xff]
        %v1116 = vld [vmem:[#allocation7 + $0x308] sm:$0xff]
        %v1117 = vld [vmem:[#allocation7 + $0x310] sm:$0xff]
        %v1118 = vld [vmem:[#allocation7 + $0x318] sm:$0xff]
        %v1119 = vld [vmem:[#allocation7 + $0x320] sm:$0xff]
        %v1120 = vld [vmem:[#allocation7 + $0x328] sm:$0xff]
        %v1121 = vld [vmem:[#allocation7 + $0x330] sm:$0xff]
        %v1122 = vld [vmem:[#allocation7 + $0x338] sm:$0xff]
        %v1123 = vld [vmem:[#allocation7 + $0x340] sm:$0xff]
        %v1124 = vld [vmem:[#allocation7 + $0x348] sm:$0xff]
        %v1125 = vld [vmem:[#allocation7 + $0x350] sm:$0xff]
        %v1126 = vld [vmem:[#allocation7 + $0x358] sm:$0xff]
        %v1127 = vld [vmem:[#allocation7 + $0x360] sm:$0xff]
        %v1128 = vld [vmem:[#allocation7 + $0x368] sm:$0xff]
        %v1129 = vld [vmem:[#allocation7 + $0x370] sm:$0xff]
        %v1130 = vld [vmem:[#allocation7 + $0x378] sm:$0xff]
        %v1131 = vld [vmem:[#allocation7 + $0x380] sm:$0xff]
        %v1132 = vld [vmem:[#allocation7 + $0x388] sm:$0xff]
        %v1133 = vld [vmem:[#allocation7 + $0x390] sm:$0xff]
        %v1134 = vld [vmem:[#allocation7 + $0x398] sm:$0xff]
        %v1135 = vld [vmem:[#allocation7 + $0x3a0] sm:$0xff]
        %v1136 = vld [vmem:[#allocation7 + $0x3a8] sm:$0xff]
        %v1137 = vld [vmem:[#allocation7 + $0x3b0] sm:$0xff]
        %v1138 = vld [vmem:[#allocation7 + $0x3b8] sm:$0xff]
        %v1139 = vld [vmem:[#allocation7 + $0x3c0] sm:$0xff]
        %v1140 = vld [vmem:[#allocation7 + $0x3c8] sm:$0xff]
        %v1141 = vld [vmem:[#allocation7 + $0x3d0] sm:$0xff]
        %v1142 = vld [vmem:[#allocation7 + $0x3d8] sm:$0xff]
        %v1143 = vld [vmem:[#allocation7 + $0x3e0] sm:$0xff]
        %v1144 = vld [vmem:[#allocation7 + $0x3e8] sm:$0xff]
        %v1145 = vld [vmem:[#allocation7 + $0x3f0] sm:$0xff]
        %v1146 = vld [vmem:[#allocation7 + $0x3f8] sm:$0xff]
        %v1147 = vld [vmem:[#allocation7 + $0x400] sm:$0xff]
        %v1148 = vld [vmem:[#allocation7 + $0x408] sm:$0xff]
        %v1149 = vld [vmem:[#allocation7 + $0x410] sm:$0xff]
        %v1150 = vld [vmem:[#allocation7 + $0x418] sm:$0xff]
        %v1151 = vld [vmem:[#allocation7 + $0x420] sm:$0xff]
        %v1152 = vld [vmem:[#allocation7 + $0x428] sm:$0xff]
        %v1153 = vld [vmem:[#allocation7 + $0x430] sm:$0xff]
        %v1154 = vld [vmem:[#allocation7 + $0x438] sm:$0xff]
        %v1155 = vld [vmem:[#allocation7 + $0x440] sm:$0xff]
        %v1156 = vld [vmem:[#allocation7 + $0x448] sm:$0xff]
        %v1157 = vld [vmem:[#allocation7 + $0x450] sm:$0xff]
        %v1158 = vld [vmem:[#allocation7 + $0x458] sm:$0xff]
        %v1159 = vld [vmem:[#allocation7 + $0x460] sm:$0xff]
        %v1160 = vld [vmem:[#allocation7 + $0x468] sm:$0xff]
        %v1161 = vld [vmem:[#allocation7 + $0x470] sm:$0xff]
        %v1162 = vld [vmem:[#allocation7 + $0x478] sm:$0xff]
        %v1163 = vld [vmem:[#allocation7 + $0x480] sm:$0xff]
        %v1164 = vld [vmem:[#allocation7 + $0x488] sm:$0xff]
        %v1165 = vld [vmem:[#allocation7 + $0x490] sm:$0xff]
        %v1166 = vld [vmem:[#allocation7 + $0x498] sm:$0xff]
        %v1167 = vld [vmem:[#allocation7 + $0x4a0] sm:$0xff]
        %v1168 = vld [vmem:[#allocation7 + $0x4a8] sm:$0xff]
        %v1169 = vld [vmem:[#allocation7 + $0x4b0] sm:$0xff]
        %v1170 = vld [vmem:[#allocation7 + $0x4b8] sm:$0xff]
        %v1171 = vld [vmem:[#allocation7 + $0x4c0] sm:$0xff]
        %v1172 = vld [vmem:[#allocation7 + $0x4c8] sm:$0xff]
        %v1173 = vld [vmem:[#allocation7 + $0x4d0] sm:$0xff]
        %v1174 = vld [vmem:[#allocation7 + $0x4d8] sm:$0xff]
        %v1175 = vld [vmem:[#allocation7 + $0x4e0] sm:$0xff]
        %v1176 = vld [vmem:[#allocation7 + $0x4e8] sm:$0xff]
        %v1177 = vld [vmem:[#allocation7 + $0x4f0] sm:$0xff]
        %v1178 = vld [vmem:[#allocation7 + $0x4f8] sm:$0xff]
        %v1179 = vld [vmem:[#allocation7 + $0x500] sm:$0xff]
        %v1180 = vld [vmem:[#allocation7 + $0x508] sm:$0xff]
        %v1181 = vld [vmem:[#allocation7 + $0x510] sm:$0xff]
        %v1182 = vld [vmem:[#allocation7 + $0x518] sm:$0xff]
        %v1183 = vld [vmem:[#allocation7 + $0x520] sm:$0xff]
        %v1184 = vld [vmem:[#allocation7 + $0x528] sm:$0xff]
        %v1185 = vld [vmem:[#allocation7 + $0x530] sm:$0xff]
        %v1186 = vld [vmem:[#allocation7 + $0x538] sm:$0xff]
        %v1187 = vld [vmem:[#allocation7 + $0x540] sm:$0xff]
        %v1188 = vld [vmem:[#allocation7 + $0x548] sm:$0xff]
        %v1189 = vld [vmem:[#allocation7 + $0x550] sm:$0xff]
        %v1190 = vld [vmem:[#allocation7 + $0x558] sm:$0xff]
        %v1191 = vld [vmem:[#allocation7 + $0x560] sm:$0xff]
        %v1192 = vld [vmem:[#allocation7 + $0x568] sm:$0xff]
        %v1193 = vld [vmem:[#allocation7 + $0x570] sm:$0xff]
        %v1194 = vld [vmem:[#allocation7 + $0x578] sm:$0xff]
        %v1195 = vld [vmem:[#allocation7 + $0x580] sm:$0xff]
        %v1196 = vld [vmem:[#allocation7 + $0x588] sm:$0xff]
        %v1197 = vld [vmem:[#allocation7 + $0x590] sm:$0xff]
        %v1198 = vld [vmem:[#allocation7 + $0x598] sm:$0xff]
        %v1199 = vld [vmem:[#allocation7 + $0x5a0] sm:$0xff]
        %v1200 = vld [vmem:[#allocation7 + $0x5a8] sm:$0xff]
        %v1201 = vld [vmem:[#allocation7 + $0x5b0] sm:$0xff]
        %v1202 = vld [vmem:[#allocation7 + $0x5b8] sm:$0xff]
        %v1203 = vld [vmem:[#allocation7 + $0x5c0] sm:$0xff]
        %v1204 = vld [vmem:[#allocation7 + $0x5c8] sm:$0xff]
        %v1205 = vld [vmem:[#allocation7 + $0x5d0] sm:$0xff]
        %v1206 = vld [vmem:[#allocation7 + $0x5d8] sm:$0xff]
        %v1207 = vld [vmem:[#allocation7 + $0x5e0] sm:$0xff]
        %v1208 = vld [vmem:[#allocation7 + $0x5e8] sm:$0xff]
        %v1209 = vld [vmem:[#allocation7 + $0x5f0] sm:$0xff]
        %v1210 = vld [vmem:[#allocation7 + $0x5f8] sm:$0xff]
        %v1243 = vunpack.c.l.b16 %v987
        %v1244 = vunpack.c.l.b16 %v988
        %v1245 = vunpack.c.l.b16 %v989
        %v1246 = vunpack.c.l.b16 %v990
        %v1247 = vunpack.c.l.b16 %v991
        %v1248 = vunpack.c.l.b16 %v992
        %v1249 = vunpack.c.l.b16 %v993
        %v1250 = vunpack.c.l.b16 %v994
        %v1251 = vunpack.c.l.b16 %v995
        %v1252 = vunpack.c.l.b16 %v996
        %v1253 = vunpack.c.l.b16 %v997
        %v1254 = vunpack.c.l.b16 %v998
        %v1255 = vunpack.c.l.b16 %v999
        %v1256 = vunpack.c.l.b16 %v1000
        %v1257 = vunpack.c.l.b16 %v1001
        %v1258 = vunpack.c.l.b16 %v1002
        %v1259 = vunpack.c.l.b16 %v1003
        %v1260 = vunpack.c.l.b16 %v1004
        %v1261 = vunpack.c.l.b16 %v1005
        %v1262 = vunpack.c.l.b16 %v1006
        %v1263 = vunpack.c.l.b16 %v1007
        %v1264 = vunpack.c.l.b16 %v1008
        %v1265 = vunpack.c.l.b16 %v1009
        %v1266 = vunpack.c.l.b16 %v1010
        %v1267 = vunpack.c.l.b16 %v1011
        %v1268 = vunpack.c.l.b16 %v1012
        %v1269 = vunpack.c.l.b16 %v1013
        %v1270 = vunpack.c.l.b16 %v1014
        %v1271 = vunpack.c.l.b16 %v1015
        %v1272 = vunpack.c.l.b16 %v1016
        %v1273 = vunpack.c.l.b16 %v1017
        %v1274 = vunpack.c.l.b16 %v1018
        %vm1275 = vcmask 1041409
        %v1276 = vsel %vm1275, %v1247, %v1243
        %vm1277 = vcmask 1042434
        %v1278 = vsel %vm1277, %v1251, %v1276
        %vm1279 = vcmask 1043459
        %v1280 = vsel %vm1279, %v1255, %v1278
        %vm1281 = vcmask 1044484
        %v1282 = vsel %vm1281, %v1259, %v1280
        %vm1283 = vcmask 1045509
        %v1284 = vsel %vm1283, %v1263, %v1282
        %vm1285 = vcmask 1046534
        %v1286 = vsel %vm1285, %v1267, %v1284
        %vm1287 = vcmask 1047559
        %v1288 = vsel %vm1287, %v1271, %v1286
        %v1289 = vsel %vm1275, %v1248, %v1244
        %v1290 = vsel %vm1277, %v1252, %v1289
        %v1291 = vsel %vm1279, %v1256, %v1290
        %v1292 = vsel %vm1281, %v1260, %v1291
        %v1293 = vsel %vm1283, %v1264, %v1292
        %v1294 = vsel %vm1285, %v1268, %v1293
        %v1295 = vsel %vm1287, %v1272, %v1294
        %v1296 = vsel %vm1275, %v1249, %v1245
        %v1297 = vsel %vm1277, %v1253, %v1296
        %v1298 = vsel %vm1279, %v1257, %v1297
        %v1299 = vsel %vm1281, %v1261, %v1298
        %v1300 = vsel %vm1283, %v1265, %v1299
        %v1301 = vsel %vm1285, %v1269, %v1300
        %v1302 = vsel %vm1287, %v1273, %v1301
        %v1303 = vsel %vm1275, %v1250, %v1246
        %v1304 = vsel %vm1277, %v1254, %v1303
        %v1305 = vsel %vm1279, %v1258, %v1304
        %v1306 = vsel %vm1281, %v1262, %v1305
        %v1307 = vsel %vm1283, %v1266, %v1306
        %v1308 = vsel %vm1285, %v1270, %v1307
        %v1309 = vsel %vm1287, %v1274, %v1308
        %v1310 = vpack.c.b16 %v1288, %v1288
        %v1311 = vpack.c.b16 %v1295, %v1295
        %v1312 = vpack.c.b16 %v1302, %v1302
        %v1313 = vpack.c.b16 %v1309, %v1309
        %v1510 = vunpack.c.l.b16 %v1019
        %v1511 = vunpack.c.h.b16 %v1019
        %v1512 = vunpack.c.l.b16 %v1020
        %v1513 = vunpack.c.h.b16 %v1020
        %v1514 = vunpack.c.l.b16 %v1021
        %v1515 = vunpack.c.h.b16 %v1021
        %v1516 = vunpack.c.l.b16 %v1022
        %v1517 = vunpack.c.h.b16 %v1022
        %v1518 = vunpack.c.l.b16 %v1023
        %v1519 = vunpack.c.h.b16 %v1023
        %v1520 = vunpack.c.l.b16 %v1024
        %v1521 = vunpack.c.h.b16 %v1024
        %v1522 = vunpack.c.l.b16 %v1025
        %v1523 = vunpack.c.h.b16 %v1025
        %v1524 = vunpack.c.l.b16 %v1026
        %v1525 = vunpack.c.h.b16 %v1026
        %v1526 = vunpack.c.l.b16 %v1027
        %v1527 = vunpack.c.h.b16 %v1027
        %v1528 = vunpack.c.l.b16 %v1028
        %v1529 = vunpack.c.h.b16 %v1028
        %v1530 = vunpack.c.l.b16 %v1029
        %v1531 = vunpack.c.h.b16 %v1029
        %v1532 = vunpack.c.l.b16 %v1030
        %v1533 = vunpack.c.h.b16 %v1030
        %v1534 = vunpack.c.l.b16 %v1031
        %v1535 = vunpack.c.h.b16 %v1031
        %v1536 = vunpack.c.l.b16 %v1032
        %v1537 = vunpack.c.h.b16 %v1032
        %v1538 = vunpack.c.l.b16 %v1033
        %v1539 = vunpack.c.h.b16 %v1033
        %v1540 = vunpack.c.l.b16 %v1034
        %v1541 = vunpack.c.h.b16 %v1034
        %v1542 = vunpack.c.l.b16 %v1035
        %v1543 = vunpack.c.h.b16 %v1035
        %v1544 = vunpack.c.l.b16 %v1036
        %v1545 = vunpack.c.h.b16 %v1036
        %v1546 = vunpack.c.l.b16 %v1037
        %v1547 = vunpack.c.h.b16 %v1037
        %v1548 = vunpack.c.l.b16 %v1038
        %v1549 = vunpack.c.h.b16 %v1038
        %v1550 = vunpack.c.l.b16 %v1039
        %v1551 = vunpack.c.h.b16 %v1039
        %v1552 = vunpack.c.l.b16 %v1040
        %v1553 = vunpack.c.h.b16 %v1040
        %v1554 = vunpack.c.l.b16 %v1041
        %v1555 = vunpack.c.h.b16 %v1041
        %v1556 = vunpack.c.l.b16 %v1042
        %v1557 = vunpack.c.h.b16 %v1042
        %v1558 = vunpack.c.l.b16 %v1043
        %v1559 = vunpack.c.h.b16 %v1043
        %v1560 = vunpack.c.l.b16 %v1044
        %v1561 = vunpack.c.h.b16 %v1044
        %v1562 = vunpack.c.l.b16 %v1045
        %v1563 = vunpack.c.h.b16 %v1045
        %v1564 = vunpack.c.l.b16 %v1046
        %v1565 = vunpack.c.h.b16 %v1046
        %v1566 = vunpack.c.l.b16 %v1047
        %v1567 = vunpack.c.h.b16 %v1047
        %v1568 = vunpack.c.l.b16 %v1048
        %v1569 = vunpack.c.h.b16 %v1048
        %v1570 = vunpack.c.l.b16 %v1049
        %v1571 = vunpack.c.h.b16 %v1049
        %v1572 = vunpack.c.l.b16 %v1050
        %v1573 = vunpack.c.h.b16 %v1050
        %v1574 = vunpack.c.l.b16 %v1051
        %v1575 = vunpack.c.h.b16 %v1051
        %v1576 = vunpack.c.l.b16 %v1052
        %v1577 = vunpack.c.h.b16 %v1052
        %v1578 = vunpack.c.l.b16 %v1053
        %v1579 = vunpack.c.h.b16 %v1053
        %v1580 = vunpack.c.l.b16 %v1054
        %v1581 = vunpack.c.h.b16 %v1054
        %v1582 = vunpack.c.l.b16 %v1055
        %v1583 = vunpack.c.h.b16 %v1055
        %v1584 = vunpack.c.l.b16 %v1056
        %v1585 = vunpack.c.h.b16 %v1056
        %v1586 = vunpack.c.l.b16 %v1057
        %v1587 = vunpack.c.h.b16 %v1057
        %v1588 = vunpack.c.l.b16 %v1058
        %v1589 = vunpack.c.h.b16 %v1058
        %v1590 = vunpack.c.l.b16 %v1059
        %v1591 = vunpack.c.h.b16 %v1059
        %v1592 = vunpack.c.l.b16 %v1060
        %v1593 = vunpack.c.h.b16 %v1060
        %v1594 = vunpack.c.l.b16 %v1061
        %v1595 = vunpack.c.h.b16 %v1061
        %v1596 = vunpack.c.l.b16 %v1062
        %v1597 = vunpack.c.h.b16 %v1062
        %v1598 = vunpack.c.l.b16 %v1063
        %v1599 = vunpack.c.h.b16 %v1063
        %v1600 = vunpack.c.l.b16 %v1064
        %v1601 = vunpack.c.h.b16 %v1064
        %v1602 = vunpack.c.l.b16 %v1065
        %v1603 = vunpack.c.h.b16 %v1065
        %v1604 = vunpack.c.l.b16 %v1066
        %v1605 = vunpack.c.h.b16 %v1066
        %v1606 = vunpack.c.l.b16 %v1067
        %v1607 = vunpack.c.h.b16 %v1067
        %v1608 = vunpack.c.l.b16 %v1068
        %v1609 = vunpack.c.h.b16 %v1068
        %v1610 = vunpack.c.l.b16 %v1069
        %v1611 = vunpack.c.h.b16 %v1069
        %v1612 = vunpack.c.l.b16 %v1070
        %v1613 = vunpack.c.h.b16 %v1070
        %v1614 = vunpack.c.l.b16 %v1071
        %v1615 = vunpack.c.h.b16 %v1071
        %v1616 = vunpack.c.l.b16 %v1072
        %v1617 = vunpack.c.h.b16 %v1072
        %v1618 = vunpack.c.l.b16 %v1073
        %v1619 = vunpack.c.h.b16 %v1073
        %v1620 = vunpack.c.l.b16 %v1074
        %v1621 = vunpack.c.h.b16 %v1074
        %v1622 = vunpack.c.l.b16 %v1075
        %v1623 = vunpack.c.h.b16 %v1075
        %v1624 = vunpack.c.l.b16 %v1076
        %v1625 = vunpack.c.h.b16 %v1076
        %v1626 = vunpack.c.l.b16 %v1077
        %v1627 = vunpack.c.h.b16 %v1077
        %v1628 = vunpack.c.l.b16 %v1078
        %v1629 = vunpack.c.h.b16 %v1078
        %v1630 = vunpack.c.l.b16 %v1079
        %v1631 = vunpack.c.h.b16 %v1079
        %v1632 = vunpack.c.l.b16 %v1080
        %v1633 = vunpack.c.h.b16 %v1080
        %v1634 = vunpack.c.l.b16 %v1081
        %v1635 = vunpack.c.h.b16 %v1081
        %v1636 = vunpack.c.l.b16 %v1082
        %v1637 = vunpack.c.h.b16 %v1082
        %v1638 = vunpack.c.l.b16 %v1083
        %v1639 = vunpack.c.h.b16 %v1083
        %v1640 = vunpack.c.l.b16 %v1084
        %v1641 = vunpack.c.h.b16 %v1084
        %v1642 = vunpack.c.l.b16 %v1085
        %v1643 = vunpack.c.h.b16 %v1085
        %v1644 = vunpack.c.l.b16 %v1086
        %v1645 = vunpack.c.h.b16 %v1086
        %v1646 = vunpack.c.l.b16 %v1087
        %v1647 = vunpack.c.h.b16 %v1087
        %v1648 = vunpack.c.l.b16 %v1088
        %v1649 = vunpack.c.h.b16 %v1088
        %v1650 = vunpack.c.l.b16 %v1089
        %v1651 = vunpack.c.h.b16 %v1089
        %v1652 = vunpack.c.l.b16 %v1090
        %v1653 = vunpack.c.h.b16 %v1090
        %v1654 = vunpack.c.l.b16 %v1091
        %v1655 = vunpack.c.h.b16 %v1091
        %v1656 = vunpack.c.l.b16 %v1092
        %v1657 = vunpack.c.h.b16 %v1092
        %v1658 = vunpack.c.l.b16 %v1093
        %v1659 = vunpack.c.h.b16 %v1093
        %v1660 = vunpack.c.l.b16 %v1094
        %v1661 = vunpack.c.h.b16 %v1094
        %v1662 = vunpack.c.l.b16 %v1095
        %v1663 = vunpack.c.h.b16 %v1095
        %v1664 = vunpack.c.l.b16 %v1096
        %v1665 = vunpack.c.h.b16 %v1096
        %v1666 = vunpack.c.l.b16 %v1097
        %v1667 = vunpack.c.h.b16 %v1097
        %v1668 = vunpack.c.l.b16 %v1098
        %v1669 = vunpack.c.h.b16 %v1098
        %v1670 = vunpack.c.l.b16 %v1099
        %v1671 = vunpack.c.h.b16 %v1099
        %v1672 = vunpack.c.l.b16 %v1100
        %v1673 = vunpack.c.h.b16 %v1100
        %v1674 = vunpack.c.l.b16 %v1101
        %v1675 = vunpack.c.h.b16 %v1101
        %v1676 = vunpack.c.l.b16 %v1102
        %v1677 = vunpack.c.h.b16 %v1102
        %v1678 = vunpack.c.l.b16 %v1103
        %v1679 = vunpack.c.h.b16 %v1103
        %v1680 = vunpack.c.l.b16 %v1104
        %v1681 = vunpack.c.h.b16 %v1104
        %v1682 = vunpack.c.l.b16 %v1105
        %v1683 = vunpack.c.h.b16 %v1105
        %v1684 = vunpack.c.l.b16 %v1106
        %v1685 = vunpack.c.h.b16 %v1106
        %v1686 = vunpack.c.l.b16 %v1107
        %v1687 = vunpack.c.h.b16 %v1107
        %v1688 = vunpack.c.l.b16 %v1108
        %v1689 = vunpack.c.h.b16 %v1108
        %v1690 = vunpack.c.l.b16 %v1109
        %v1691 = vunpack.c.h.b16 %v1109
        %v1692 = vunpack.c.l.b16 %v1110
        %v1693 = vunpack.c.h.b16 %v1110
        %v1694 = vunpack.c.l.b16 %v1111
        %v1695 = vunpack.c.h.b16 %v1111
        %v1696 = vunpack.c.l.b16 %v1112
        %v1697 = vunpack.c.h.b16 %v1112
        %v1698 = vunpack.c.l.b16 %v1113
        %v1699 = vunpack.c.h.b16 %v1113
        %v1700 = vunpack.c.l.b16 %v1114
        %v1701 = vunpack.c.h.b16 %v1114
        %v1702 = vunpack.c.l.b16 %v1115
        %v1703 = vunpack.c.h.b16 %v1115
        %v1704 = vunpack.c.l.b16 %v1116
        %v1705 = vunpack.c.h.b16 %v1116
        %v1706 = vunpack.c.l.b16 %v1117
        %v1707 = vunpack.c.h.b16 %v1117
        %v1708 = vunpack.c.l.b16 %v1118
        %v1709 = vunpack.c.h.b16 %v1118
        %v1710 = vunpack.c.l.b16 %v1119
        %v1711 = vunpack.c.h.b16 %v1119
        %v1712 = vunpack.c.l.b16 %v1120
        %v1713 = vunpack.c.h.b16 %v1120
        %v1714 = vunpack.c.l.b16 %v1121
        %v1715 = vunpack.c.h.b16 %v1121
        %v1716 = vunpack.c.l.b16 %v1122
        %v1717 = vunpack.c.h.b16 %v1122
        %v1718 = vunpack.c.l.b16 %v1123
        %v1719 = vunpack.c.h.b16 %v1123
        %v1720 = vunpack.c.l.b16 %v1124
        %v1721 = vunpack.c.h.b16 %v1124
        %v1722 = vunpack.c.l.b16 %v1125
        %v1723 = vunpack.c.h.b16 %v1125
        %v1724 = vunpack.c.l.b16 %v1126
        %v1725 = vunpack.c.h.b16 %v1126
        %v1726 = vunpack.c.l.b16 %v1127
        %v1727 = vunpack.c.h.b16 %v1127
        %v1728 = vunpack.c.l.b16 %v1128
        %v1729 = vunpack.c.h.b16 %v1128
        %v1730 = vunpack.c.l.b16 %v1129
        %v1731 = vunpack.c.h.b16 %v1129
        %v1732 = vunpack.c.l.b16 %v1130
        %v1733 = vunpack.c.h.b16 %v1130
        %v1734 = vunpack.c.l.b16 %v1131
        %v1735 = vunpack.c.h.b16 %v1131
        %v1736 = vunpack.c.l.b16 %v1132
        %v1737 = vunpack.c.h.b16 %v1132
        %v1738 = vunpack.c.l.b16 %v1133
        %v1739 = vunpack.c.h.b16 %v1133
        %v1740 = vunpack.c.l.b16 %v1134
        %v1741 = vunpack.c.h.b16 %v1134
        %v1742 = vunpack.c.l.b16 %v1135
        %v1743 = vunpack.c.h.b16 %v1135
        %v1744 = vunpack.c.l.b16 %v1136
        %v1745 = vunpack.c.h.b16 %v1136
        %v1746 = vunpack.c.l.b16 %v1137
        %v1747 = vunpack.c.h.b16 %v1137
        %v1748 = vunpack.c.l.b16 %v1138
        %v1749 = vunpack.c.h.b16 %v1138
        %v1750 = vunpack.c.l.b16 %v1139
        %v1751 = vunpack.c.h.b16 %v1139
        %v1752 = vunpack.c.l.b16 %v1140
        %v1753 = vunpack.c.h.b16 %v1140
        %v1754 = vunpack.c.l.b16 %v1141
        %v1755 = vunpack.c.h.b16 %v1141
        %v1756 = vunpack.c.l.b16 %v1142
        %v1757 = vunpack.c.h.b16 %v1142
        %v1758 = vunpack.c.l.b16 %v1143
        %v1759 = vunpack.c.h.b16 %v1143
        %v1760 = vunpack.c.l.b16 %v1144
        %v1761 = vunpack.c.h.b16 %v1144
        %v1762 = vunpack.c.l.b16 %v1145
        %v1763 = vunpack.c.h.b16 %v1145
        %v1764 = vunpack.c.l.b16 %v1146
        %v1765 = vunpack.c.h.b16 %v1146
        %v1766 = vunpack.c.l.b16 %v1147
        %v1767 = vunpack.c.h.b16 %v1147
        %v1768 = vunpack.c.l.b16 %v1148
        %v1769 = vunpack.c.h.b16 %v1148
        %v1770 = vunpack.c.l.b16 %v1149
        %v1771 = vunpack.c.h.b16 %v1149
        %v1772 = vunpack.c.l.b16 %v1150
        %v1773 = vunpack.c.h.b16 %v1150
        %v1774 = vunpack.c.l.b16 %v1151
        %v1775 = vunpack.c.h.b16 %v1151
        %v1776 = vunpack.c.l.b16 %v1152
        %v1777 = vunpack.c.h.b16 %v1152
        %v1778 = vunpack.c.l.b16 %v1153
        %v1779 = vunpack.c.h.b16 %v1153
        %v1780 = vunpack.c.l.b16 %v1154
        %v1781 = vunpack.c.h.b16 %v1154
        %v1782 = vunpack.c.l.b16 %v1155
        %v1783 = vunpack.c.h.b16 %v1155
        %v1784 = vunpack.c.l.b16 %v1156
        %v1785 = vunpack.c.h.b16 %v1156
        %v1786 = vunpack.c.l.b16 %v1157
        %v1787 = vunpack.c.h.b16 %v1157
        %v1788 = vunpack.c.l.b16 %v1158
        %v1789 = vunpack.c.h.b16 %v1158
        %v1790 = vunpack.c.l.b16 %v1159
        %v1791 = vunpack.c.h.b16 %v1159
        %v1792 = vunpack.c.l.b16 %v1160
        %v1793 = vunpack.c.h.b16 %v1160
        %v1794 = vunpack.c.l.b16 %v1161
        %v1795 = vunpack.c.h.b16 %v1161
        %v1796 = vunpack.c.l.b16 %v1162
        %v1797 = vunpack.c.h.b16 %v1162
        %v1798 = vunpack.c.l.b16 %v1163
        %v1799 = vunpack.c.h.b16 %v1163
        %v1800 = vunpack.c.l.b16 %v1164
        %v1801 = vunpack.c.h.b16 %v1164
        %v1802 = vunpack.c.l.b16 %v1165
        %v1803 = vunpack.c.h.b16 %v1165
        %v1804 = vunpack.c.l.b16 %v1166
        %v1805 = vunpack.c.h.b16 %v1166
        %v1806 = vunpack.c.l.b16 %v1167
        %v1807 = vunpack.c.h.b16 %v1167
        %v1808 = vunpack.c.l.b16 %v1168
        %v1809 = vunpack.c.h.b16 %v1168
        %v1810 = vunpack.c.l.b16 %v1169
        %v1811 = vunpack.c.h.b16 %v1169
        %v1812 = vunpack.c.l.b16 %v1170
        %v1813 = vunpack.c.h.b16 %v1170
        %v1814 = vunpack.c.l.b16 %v1171
        %v1815 = vunpack.c.h.b16 %v1171
        %v1816 = vunpack.c.l.b16 %v1172
        %v1817 = vunpack.c.h.b16 %v1172
        %v1818 = vunpack.c.l.b16 %v1173
        %v1819 = vunpack.c.h.b16 %v1173
        %v1820 = vunpack.c.l.b16 %v1174
        %v1821 = vunpack.c.h.b16 %v1174
        %v1822 = vunpack.c.l.b16 %v1175
        %v1823 = vunpack.c.h.b16 %v1175
        %v1824 = vunpack.c.l.b16 %v1176
        %v1825 = vunpack.c.h.b16 %v1176
        %v1826 = vunpack.c.l.b16 %v1177
        %v1827 = vunpack.c.h.b16 %v1177
        %v1828 = vunpack.c.l.b16 %v1178
        %v1829 = vunpack.c.h.b16 %v1178
        %v1830 = vunpack.c.l.b16 %v1179
        %v1831 = vunpack.c.h.b16 %v1179
        %v1832 = vunpack.c.l.b16 %v1180
        %v1833 = vunpack.c.h.b16 %v1180
        %v1834 = vunpack.c.l.b16 %v1181
        %v1835 = vunpack.c.h.b16 %v1181
        %v1836 = vunpack.c.l.b16 %v1182
        %v1837 = vunpack.c.h.b16 %v1182
        %v1838 = vunpack.c.l.b16 %v1183
        %v1839 = vunpack.c.h.b16 %v1183
        %v1840 = vunpack.c.l.b16 %v1184
        %v1841 = vunpack.c.h.b16 %v1184
        %v1842 = vunpack.c.l.b16 %v1185
        %v1843 = vunpack.c.h.b16 %v1185
        %v1844 = vunpack.c.l.b16 %v1186
        %v1845 = vunpack.c.h.b16 %v1186
        %v1846 = vunpack.c.l.b16 %v1187
        %v1847 = vunpack.c.h.b16 %v1187
        %v1848 = vunpack.c.l.b16 %v1188
        %v1849 = vunpack.c.h.b16 %v1188
        %v1850 = vunpack.c.l.b16 %v1189
        %v1851 = vunpack.c.h.b16 %v1189
        %v1852 = vunpack.c.l.b16 %v1190
        %v1853 = vunpack.c.h.b16 %v1190
        %v1854 = vunpack.c.l.b16 %v1191
        %v1855 = vunpack.c.h.b16 %v1191
        %v1856 = vunpack.c.l.b16 %v1192
        %v1857 = vunpack.c.h.b16 %v1192
        %v1858 = vunpack.c.l.b16 %v1193
        %v1859 = vunpack.c.h.b16 %v1193
        %v1860 = vunpack.c.l.b16 %v1194
        %v1861 = vunpack.c.h.b16 %v1194
        %v1862 = vunpack.c.l.b16 %v1195
        %v1863 = vunpack.c.h.b16 %v1195
        %v1864 = vunpack.c.l.b16 %v1196
        %v1865 = vunpack.c.h.b16 %v1196
        %v1866 = vunpack.c.l.b16 %v1197
        %v1867 = vunpack.c.h.b16 %v1197
        %v1868 = vunpack.c.l.b16 %v1198
        %v1869 = vunpack.c.h.b16 %v1198
        %v1870 = vunpack.c.l.b16 %v1199
        %v1871 = vunpack.c.h.b16 %v1199
        %v1872 = vunpack.c.l.b16 %v1200
        %v1873 = vunpack.c.h.b16 %v1200
        %v1874 = vunpack.c.l.b16 %v1201
        %v1875 = vunpack.c.h.b16 %v1201
        %v1876 = vunpack.c.l.b16 %v1202
        %v1877 = vunpack.c.h.b16 %v1202
        %v1878 = vunpack.c.l.b16 %v1203
        %v1879 = vunpack.c.h.b16 %v1203
        %v1880 = vunpack.c.l.b16 %v1204
        %v1881 = vunpack.c.h.b16 %v1204
        %v1882 = vunpack.c.l.b16 %v1205
        %v1883 = vunpack.c.h.b16 %v1205
        %v1884 = vunpack.c.l.b16 %v1206
        %v1885 = vunpack.c.h.b16 %v1206
        %v1886 = vunpack.c.l.b16 %v1207
        %v1887 = vunpack.c.h.b16 %v1207
        %v1888 = vunpack.c.l.b16 %v1208
        %v1889 = vunpack.c.h.b16 %v1208
        %v1890 = vunpack.c.l.b16 %v1209
        %v1891 = vunpack.c.h.b16 %v1209
        %v1892 = vunpack.c.l.b16 %v1210
        %v1893 = vunpack.c.h.b16 %v1210
        %v1894 = vpack.c.b16 %v1516, %v1510
        %v1895 = vpack.c.b16 %v1517, %v1511
        %v1896 = vpack.c.b16 %v1518, %v1512
        %v1897 = vpack.c.b16 %v1519, %v1513
        %v1898 = vpack.c.b16 %v1520, %v1514
        %v1899 = vpack.c.b16 %v1521, %v1515
        %v1900 = vpack.c.b16 %v1528, %v1522
        %v1901 = vpack.c.b16 %v1529, %v1523
        %v1902 = vpack.c.b16 %v1530, %v1524
        %v1903 = vpack.c.b16 %v1531, %v1525
        %v1904 = vpack.c.b16 %v1532, %v1526
        %v1905 = vpack.c.b16 %v1533, %v1527
        %v1906 = vpack.c.b16 %v1540, %v1534
        %v1907 = vpack.c.b16 %v1541, %v1535
        %v1908 = vpack.c.b16 %v1542, %v1536
        %v1909 = vpack.c.b16 %v1543, %v1537
        %v1910 = vpack.c.b16 %v1544, %v1538
        %v1911 = vpack.c.b16 %v1545, %v1539
        %v1912 = vpack.c.b16 %v1552, %v1546
        %v1913 = vpack.c.b16 %v1553, %v1547
        %v1914 = vpack.c.b16 %v1554, %v1548
        %v1915 = vpack.c.b16 %v1555, %v1549
        %v1916 = vpack.c.b16 %v1556, %v1550
        %v1917 = vpack.c.b16 %v1557, %v1551
        %v1918 = vpack.c.b16 %v1564, %v1558
        %v1919 = vpack.c.b16 %v1565, %v1559
        %v1920 = vpack.c.b16 %v1566, %v1560
        %v1921 = vpack.c.b16 %v1567, %v1561
        %v1922 = vpack.c.b16 %v1568, %v1562
        %v1923 = vpack.c.b16 %v1569, %v1563
        %v1924 = vpack.c.b16 %v1576, %v1570
        %v1925 = vpack.c.b16 %v1577, %v1571
        %v1926 = vpack.c.b16 %v1578, %v1572
        %v1927 = vpack.c.b16 %v1579, %v1573
        %v1928 = vpack.c.b16 %v1580, %v1574
        %v1929 = vpack.c.b16 %v1581, %v1575
        %v1930 = vpack.c.b16 %v1588, %v1582
        %v1931 = vpack.c.b16 %v1589, %v1583
        %v1932 = vpack.c.b16 %v1590, %v1584
        %v1933 = vpack.c.b16 %v1591, %v1585
        %v1934 = vpack.c.b16 %v1592, %v1586
        %v1935 = vpack.c.b16 %v1593, %v1587
        %v1936 = vpack.c.b16 %v1600, %v1594
        %v1937 = vpack.c.b16 %v1601, %v1595
        %v1938 = vpack.c.b16 %v1602, %v1596
        %v1939 = vpack.c.b16 %v1603, %v1597
        %v1940 = vpack.c.b16 %v1604, %v1598
        %v1941 = vpack.c.b16 %v1605, %v1599
        %v1942 = vpack.c.b16 %v1612, %v1606
        %v1943 = vpack.c.b16 %v1613, %v1607
        %v1944 = vpack.c.b16 %v1614, %v1608
        %v1945 = vpack.c.b16 %v1615, %v1609
        %v1946 = vpack.c.b16 %v1616, %v1610
        %v1947 = vpack.c.b16 %v1617, %v1611
        %v1948 = vpack.c.b16 %v1624, %v1618
        %v1949 = vpack.c.b16 %v1625, %v1619
        %v1950 = vpack.c.b16 %v1626, %v1620
        %v1951 = vpack.c.b16 %v1627, %v1621
        %v1952 = vpack.c.b16 %v1628, %v1622
        %v1953 = vpack.c.b16 %v1629, %v1623
        %v1954 = vpack.c.b16 %v1636, %v1630
        %v1955 = vpack.c.b16 %v1637, %v1631
        %v1956 = vpack.c.b16 %v1638, %v1632
        %v1957 = vpack.c.b16 %v1639, %v1633
        %v1958 = vpack.c.b16 %v1640, %v1634
        %v1959 = vpack.c.b16 %v1641, %v1635
        %v1960 = vpack.c.b16 %v1648, %v1642
        %v1961 = vpack.c.b16 %v1649, %v1643
        %v1962 = vpack.c.b16 %v1650, %v1644
        %v1963 = vpack.c.b16 %v1651, %v1645
        %v1964 = vpack.c.b16 %v1652, %v1646
        %v1965 = vpack.c.b16 %v1653, %v1647
        %v1966 = vpack.c.b16 %v1660, %v1654
        %v1967 = vpack.c.b16 %v1661, %v1655
        %v1968 = vpack.c.b16 %v1662, %v1656
        %v1969 = vpack.c.b16 %v1663, %v1657
        %v1970 = vpack.c.b16 %v1664, %v1658
        %v1971 = vpack.c.b16 %v1665, %v1659
        %v1972 = vpack.c.b16 %v1672, %v1666
        %v1973 = vpack.c.b16 %v1673, %v1667
        %v1974 = vpack.c.b16 %v1674, %v1668
        %v1975 = vpack.c.b16 %v1675, %v1669
        %v1976 = vpack.c.b16 %v1676, %v1670
        %v1977 = vpack.c.b16 %v1677, %v1671
        %v1978 = vpack.c.b16 %v1684, %v1678
        %v1979 = vpack.c.b16 %v1685, %v1679
        %v1980 = vpack.c.b16 %v1686, %v1680
        %v1981 = vpack.c.b16 %v1687, %v1681
        %v1982 = vpack.c.b16 %v1688, %v1682
        %v1983 = vpack.c.b16 %v1689, %v1683
        %v1984 = vpack.c.b16 %v1696, %v1690
        %v1985 = vpack.c.b16 %v1697, %v1691
        %v1986 = vpack.c.b16 %v1698, %v1692
        %v1987 = vpack.c.b16 %v1699, %v1693
        %v1988 = vpack.c.b16 %v1700, %v1694
        %v1989 = vpack.c.b16 %v1701, %v1695
        %v1990 = vpack.c.b16 %v1708, %v1702
        %v1991 = vpack.c.b16 %v1709, %v1703
        %v1992 = vpack.c.b16 %v1710, %v1704
        %v1993 = vpack.c.b16 %v1711, %v1705
        %v1994 = vpack.c.b16 %v1712, %v1706
        %v1995 = vpack.c.b16 %v1713, %v1707
        %v1996 = vpack.c.b16 %v1720, %v1714
        %v1997 = vpack.c.b16 %v1721, %v1715
        %v1998 = vpack.c.b16 %v1722, %v1716
        %v1999 = vpack.c.b16 %v1723, %v1717
        %v2000 = vpack.c.b16 %v1724, %v1718
        %v2001 = vpack.c.b16 %v1725, %v1719
        %v2002 = vpack.c.b16 %v1732, %v1726
        %v2003 = vpack.c.b16 %v1733, %v1727
        %v2004 = vpack.c.b16 %v1734, %v1728
        %v2005 = vpack.c.b16 %v1735, %v1729
        %v2006 = vpack.c.b16 %v1736, %v1730
        %v2007 = vpack.c.b16 %v1737, %v1731
        %v2008 = vpack.c.b16 %v1744, %v1738
        %v2009 = vpack.c.b16 %v1745, %v1739
        %v2010 = vpack.c.b16 %v1746, %v1740
        %v2011 = vpack.c.b16 %v1747, %v1741
        %v2012 = vpack.c.b16 %v1748, %v1742
        %v2013 = vpack.c.b16 %v1749, %v1743
        %v2014 = vpack.c.b16 %v1756, %v1750
        %v2015 = vpack.c.b16 %v1757, %v1751
        %v2016 = vpack.c.b16 %v1758, %v1752
        %v2017 = vpack.c.b16 %v1759, %v1753
        %v2018 = vpack.c.b16 %v1760, %v1754
        %v2019 = vpack.c.b16 %v1761, %v1755
        %v2020 = vpack.c.b16 %v1768, %v1762
        %v2021 = vpack.c.b16 %v1769, %v1763
        %v2022 = vpack.c.b16 %v1770, %v1764
        %v2023 = vpack.c.b16 %v1771, %v1765
        %v2024 = vpack.c.b16 %v1772, %v1766
        %v2025 = vpack.c.b16 %v1773, %v1767
        %v2026 = vpack.c.b16 %v1780, %v1774
        %v2027 = vpack.c.b16 %v1781, %v1775
        %v2028 = vpack.c.b16 %v1782, %v1776
        %v2029 = vpack.c.b16 %v1783, %v1777
        %v2030 = vpack.c.b16 %v1784, %v1778
        %v2031 = vpack.c.b16 %v1785, %v1779
        %v2032 = vpack.c.b16 %v1792, %v1786
        %v2033 = vpack.c.b16 %v1793, %v1787
        %v2034 = vpack.c.b16 %v1794, %v1788
        %v2035 = vpack.c.b16 %v1795, %v1789
        %v2036 = vpack.c.b16 %v1796, %v1790
        %v2037 = vpack.c.b16 %v1797, %v1791
        %v2038 = vpack.c.b16 %v1804, %v1798
        %v2039 = vpack.c.b16 %v1805, %v1799
        %v2040 = vpack.c.b16 %v1806, %v1800
        %v2041 = vpack.c.b16 %v1807, %v1801
        %v2042 = vpack.c.b16 %v1808, %v1802
        %v2043 = vpack.c.b16 %v1809, %v1803
        %v2044 = vpack.c.b16 %v1816, %v1810
        %v2045 = vpack.c.b16 %v1817, %v1811
        %v2046 = vpack.c.b16 %v1818, %v1812
        %v2047 = vpack.c.b16 %v1819, %v1813
        %v2048 = vpack.c.b16 %v1820, %v1814
        %v2049 = vpack.c.b16 %v1821, %v1815
        %v2050 = vpack.c.b16 %v1828, %v1822
        %v2051 = vpack.c.b16 %v1829, %v1823
        %v2052 = vpack.c.b16 %v1830, %v1824
        %v2053 = vpack.c.b16 %v1831, %v1825
        %v2054 = vpack.c.b16 %v1832, %v1826
        %v2055 = vpack.c.b16 %v1833, %v1827
        %v2056 = vpack.c.b16 %v1840, %v1834
        %v2057 = vpack.c.b16 %v1841, %v1835
        %v2058 = vpack.c.b16 %v1842, %v1836
        %v2059 = vpack.c.b16 %v1843, %v1837
        %v2060 = vpack.c.b16 %v1844, %v1838
        %v2061 = vpack.c.b16 %v1845, %v1839
        %v2062 = vpack.c.b16 %v1852, %v1846
        %v2063 = vpack.c.b16 %v1853, %v1847
        %v2064 = vpack.c.b16 %v1854, %v1848
        %v2065 = vpack.c.b16 %v1855, %v1849
        %v2066 = vpack.c.b16 %v1856, %v1850
        %v2067 = vpack.c.b16 %v1857, %v1851
        %v2068 = vpack.c.b16 %v1864, %v1858
        %v2069 = vpack.c.b16 %v1865, %v1859
        %v2070 = vpack.c.b16 %v1866, %v1860
        %v2071 = vpack.c.b16 %v1867, %v1861
        %v2072 = vpack.c.b16 %v1868, %v1862
        %v2073 = vpack.c.b16 %v1869, %v1863
        %v2074 = vpack.c.b16 %v1876, %v1870
        %v2075 = vpack.c.b16 %v1877, %v1871
        %v2076 = vpack.c.b16 %v1878, %v1872
        %v2077 = vpack.c.b16 %v1879, %v1873
        %v2078 = vpack.c.b16 %v1880, %v1874
        %v2079 = vpack.c.b16 %v1881, %v1875
        %v2080 = vpack.c.b16 %v1888, %v1882
        %v2081 = vpack.c.b16 %v1889, %v1883
        %v2082 = vpack.c.b16 %v1890, %v1884
        %v2083 = vpack.c.b16 %v1891, %v1885
        %v2084 = vpack.c.b16 %v1892, %v1886
        %v2085 = vpack.c.b16 %v1893, %v1887
        %2278 = vmatpush.bf16.msra.mxu0 %v1936
        %2279 = vmatpush.bf16.msra.mxu0 %v1930
        %2280 = vmatpush.bf16.msra.mxu0 %v1924
        %2281 = vmatpush.bf16.msra.mxu0 %v1918
        %2282 = vmatpush.bf16.msra.mxu0 %v1912
        %2283 = vmatpush.bf16.msra.mxu0 %v1906
        %2284 = vmatpush.bf16.msra.mxu0 %v1900
        %2285 = vmatpush.bf16.msra.mxu0 %v1894
        %2286 = vmatmul.bf16.gmra.mxu0 %v1310
        %v2287 = vpop.f32.mrf.mxu0
        %v2288 = vadd.f32 0.0, %v2287
        %v2289 = vpop.f32.mrf.mxu0
        %2290 = vdwg.mxu0
        %2291 = vmatpush.bf16.msra.mxu0 %v1984
        %2292 = vmatpush.bf16.msra.mxu0 %v1978
        %2293 = vmatpush.bf16.msra.mxu0 %v1972
        %2294 = vmatpush.bf16.msra.mxu0 %v1966
        %2295 = vmatpush.bf16.msra.mxu0 %v1960
        %2296 = vmatpush.bf16.msra.mxu0 %v1954
        %2297 = vmatpush.bf16.msra.mxu0 %v1948
        %2298 = vmatpush.bf16.msra.mxu0 %v1942
        %2299 = vmatmul.bf16.gmra.mxu0 %v1311
        %v2300 = vpop.f32.mrf.mxu0
        %v2301 = vadd.f32 %v2288, %v2300
        %v2302 = vpop.f32.mrf.mxu0
        %2303 = vdwg.mxu0
        %2304 = vmatpush.bf16.msra.mxu0 %v2032
        %2305 = vmatpush.bf16.msra.mxu0 %v2026
        %2306 = vmatpush.bf16.msra.mxu0 %v2020
        %2307 = vmatpush.bf16.msra.mxu0 %v2014
        %2308 = vmatpush.bf16.msra.mxu0 %v2008
        %2309 = vmatpush.bf16.msra.mxu0 %v2002
        %2310 = vmatpush.bf16.msra.mxu0 %v1996
        %2311 = vmatpush.bf16.msra.mxu0 %v1990
        %2312 = vmatmul.bf16.gmra.mxu0 %v1312
        %v2313 = vpop.f32.mrf.mxu0
        %v2314 = vadd.f32 %v2301, %v2313
        %v2315 = vpop.f32.mrf.mxu0
        %2316 = vdwg.mxu0
        %2317 = vmatpush.bf16.msra.mxu0 %v2080
        %2318 = vmatpush.bf16.msra.mxu0 %v2074
        %2319 = vmatpush.bf16.msra.mxu0 %v2068
        %2320 = vmatpush.bf16.msra.mxu0 %v2062
        %2321 = vmatpush.bf16.msra.mxu0 %v2056
        %2322 = vmatpush.bf16.msra.mxu0 %v2050
        %2323 = vmatpush.bf16.msra.mxu0 %v2044
        %2324 = vmatpush.bf16.msra.mxu0 %v2038
        %2325 = vmatmul.bf16.gmra.mxu0 %v1313
        %v2326 = vpop.f32.mrf.mxu0
        %v2327 = vadd.f32 %v2314, %v2326
        %v2328 = vpop.f32.mrf.mxu0
        %2329 = vdwg.mxu0
        %2330 = vmatpush.bf16.msra.mxu0 %v1937
        %2331 = vmatpush.bf16.msra.mxu0 %v1931
        %2332 = vmatpush.bf16.msra.mxu0 %v1925
        %2333 = vmatpush.bf16.msra.mxu0 %v1919
        %2334 = vmatpush.bf16.msra.mxu0 %v1913
        %2335 = vmatpush.bf16.msra.mxu0 %v1907
        %2336 = vmatpush.bf16.msra.mxu0 %v1901
        %2337 = vmatpush.bf16.msra.mxu0 %v1895
        %2338 = vmatmul.bf16.gmra.mxu0 %v1310
        %v2339 = vpop.f32.mrf.mxu0
        %v2340 = vadd.f32 0.0, %v2339
        %v2341 = vpop.f32.mrf.mxu0
        %2342 = vdwg.mxu0
        %2343 = vmatpush.bf16.msra.mxu0 %v1985
        %2344 = vmatpush.bf16.msra.mxu0 %v1979
        %2345 = vmatpush.bf16.msra.mxu0 %v1973
        %2346 = vmatpush.bf16.msra.mxu0 %v1967
        %2347 = vmatpush.bf16.msra.mxu0 %v1961
        %2348 = vmatpush.bf16.msra.mxu0 %v1955
        %2349 = vmatpush.bf16.msra.mxu0 %v1949
        %2350 = vmatpush.bf16.msra.mxu0 %v1943
        %2351 = vmatmul.bf16.gmra.mxu0 %v1311
        %v2352 = vpop.f32.mrf.mxu0
        %v2353 = vadd.f32 %v2340, %v2352
        %v2354 = vpop.f32.mrf.mxu0
        %2355 = vdwg.mxu0
        %2356 = vmatpush.bf16.msra.mxu0 %v2033
        %2357 = vmatpush.bf16.msra.mxu0 %v2027
        %2358 = vmatpush.bf16.msra.mxu0 %v2021
        %2359 = vmatpush.bf16.msra.mxu0 %v2015
        %2360 = vmatpush.bf16.msra.mxu0 %v2009
        %2361 = vmatpush.bf16.msra.mxu0 %v2003
        %2362 = vmatpush.bf16.msra.mxu0 %v1997
        %2363 = vmatpush.bf16.msra.mxu0 %v1991
        %2364 = vmatmul.bf16.gmra.mxu0 %v1312
        %v2365 = vpop.f32.mrf.mxu0
        %v2366 = vadd.f32 %v2353, %v2365
        %v2367 = vpop.f32.mrf.mxu0
        %2368 = vdwg.mxu0
        %2369 = vmatpush.bf16.msra.mxu0 %v2081
        %2370 = vmatpush.bf16.msra.mxu0 %v2075
        %2371 = vmatpush.bf16.msra.mxu0 %v2069
        %2372 = vmatpush.bf16.msra.mxu0 %v2063
        %2373 = vmatpush.bf16.msra.mxu0 %v2057
        %2374 = vmatpush.bf16.msra.mxu0 %v2051
        %2375 = vmatpush.bf16.msra.mxu0 %v2045
        %2376 = vmatpush.bf16.msra.mxu0 %v2039
        %2377 = vmatmul.bf16.gmra.mxu0 %v1313
        %v2378 = vpop.f32.mrf.mxu0
        %v2379 = vadd.f32 %v2366, %v2378
        %v2380 = vpop.f32.mrf.mxu0
        %2381 = vdwg.mxu0
        %2382 = vmatpush.bf16.msra.mxu0 %v1938
        %2383 = vmatpush.bf16.msra.mxu0 %v1932
        %2384 = vmatpush.bf16.msra.mxu0 %v1926
        %2385 = vmatpush.bf16.msra.mxu0 %v1920
        %2386 = vmatpush.bf16.msra.mxu0 %v1914
        %2387 = vmatpush.bf16.msra.mxu0 %v1908
        %2388 = vmatpush.bf16.msra.mxu0 %v1902
        %2389 = vmatpush.bf16.msra.mxu0 %v1896
        %2390 = vmatmul.bf16.gmra.mxu0 %v1310
        %v2391 = vpop.f32.mrf.mxu0
        %v2392 = vadd.f32 0.0, %v2391
        %v2393 = vpop.f32.mrf.mxu0
        %2394 = vdwg.mxu0
        %2395 = vmatpush.bf16.msra.mxu0 %v1986
        %2396 = vmatpush.bf16.msra.mxu0 %v1980
        %2397 = vmatpush.bf16.msra.mxu0 %v1974
        %2398 = vmatpush.bf16.msra.mxu0 %v1968
        %2399 = vmatpush.bf16.msra.mxu0 %v1962
        %2400 = vmatpush.bf16.msra.mxu0 %v1956
        %2401 = vmatpush.bf16.msra.mxu0 %v1950
        %2402 = vmatpush.bf16.msra.mxu0 %v1944
        %2403 = vmatmul.bf16.gmra.mxu0 %v1311
        %v2404 = vpop.f32.mrf.mxu0
        %v2405 = vadd.f32 %v2392, %v2404
        %v2406 = vpop.f32.mrf.mxu0
        %2407 = vdwg.mxu0
        %2408 = vmatpush.bf16.msra.mxu0 %v2034
        %2409 = vmatpush.bf16.msra.mxu0 %v2028
        %2410 = vmatpush.bf16.msra.mxu0 %v2022
        %2411 = vmatpush.bf16.msra.mxu0 %v2016
        %2412 = vmatpush.bf16.msra.mxu0 %v2010
        %2413 = vmatpush.bf16.msra.mxu0 %v2004
        %2414 = vmatpush.bf16.msra.mxu0 %v1998
        %2415 = vmatpush.bf16.msra.mxu0 %v1992
        %2416 = vmatmul.bf16.gmra.mxu0 %v1312
        %v2417 = vpop.f32.mrf.mxu0
        %v2418 = vadd.f32 %v2405, %v2417
        %v2419 = vpop.f32.mrf.mxu0
        %2420 = vdwg.mxu0
        %2421 = vmatpush.bf16.msra.mxu0 %v2082
        %2422 = vmatpush.bf16.msra.mxu0 %v2076
        %2423 = vmatpush.bf16.msra.mxu0 %v2070
        %2424 = vmatpush.bf16.msra.mxu0 %v2064
        %2425 = vmatpush.bf16.msra.mxu0 %v2058
        %2426 = vmatpush.bf16.msra.mxu0 %v2052
        %2427 = vmatpush.bf16.msra.mxu0 %v2046
        %2428 = vmatpush.bf16.msra.mxu0 %v2040
        %2429 = vmatmul.bf16.gmra.mxu0 %v1313
        %v2430 = vpop.f32.mrf.mxu0
        %v2431 = vadd.f32 %v2418, %v2430
        %v2432 = vpop.f32.mrf.mxu0
        %2433 = vdwg.mxu0
        %2434 = vmatpush.bf16.msra.mxu0 %v1939
        %2435 = vmatpush.bf16.msra.mxu0 %v1933
        %2436 = vmatpush.bf16.msra.mxu0 %v1927
        %2437 = vmatpush.bf16.msra.mxu0 %v1921
        %2438 = vmatpush.bf16.msra.mxu0 %v1915
        %2439 = vmatpush.bf16.msra.mxu0 %v1909
        %2440 = vmatpush.bf16.msra.mxu0 %v1903
        %2441 = vmatpush.bf16.msra.mxu0 %v1897
        %2442 = vmatmul.bf16.gmra.mxu0 %v1310
        %v2443 = vpop.f32.mrf.mxu0
        %v2444 = vadd.f32 0.0, %v2443
        %v2445 = vpop.f32.mrf.mxu0
        %2446 = vdwg.mxu0
        %2447 = vmatpush.bf16.msra.mxu0 %v1987
        %2448 = vmatpush.bf16.msra.mxu0 %v1981
        %2449 = vmatpush.bf16.msra.mxu0 %v1975
        %2450 = vmatpush.bf16.msra.mxu0 %v1969
        %2451 = vmatpush.bf16.msra.mxu0 %v1963
        %2452 = vmatpush.bf16.msra.mxu0 %v1957
        %2453 = vmatpush.bf16.msra.mxu0 %v1951
        %2454 = vmatpush.bf16.msra.mxu0 %v1945
        %2455 = vmatmul.bf16.gmra.mxu0 %v1311
        %v2456 = vpop.f32.mrf.mxu0
        %v2457 = vadd.f32 %v2444, %v2456
        %v2458 = vpop.f32.mrf.mxu0
        %2459 = vdwg.mxu0
        %2460 = vmatpush.bf16.msra.mxu0 %v2035
        %2461 = vmatpush.bf16.msra.mxu0 %v2029
        %2462 = vmatpush.bf16.msra.mxu0 %v2023
        %2463 = vmatpush.bf16.msra.mxu0 %v2017
        %2464 = vmatpush.bf16.msra.mxu0 %v2011
        %2465 = vmatpush.bf16.msra.mxu0 %v2005
        %2466 = vmatpush.bf16.msra.mxu0 %v1999
        %2467 = vmatpush.bf16.msra.mxu0 %v1993
        %2468 = vmatmul.bf16.gmra.mxu0 %v1312
        %v2469 = vpop.f32.mrf.mxu0
        %v2470 = vadd.f32 %v2457, %v2469
        %v2471 = vpop.f32.mrf.mxu0
        %2472 = vdwg.mxu0
        %2473 = vmatpush.bf16.msra.mxu0 %v2083
        %2474 = vmatpush.bf16.msra.mxu0 %v2077
        %2475 = vmatpush.bf16.msra.mxu0 %v2071
        %2476 = vmatpush.bf16.msra.mxu0 %v2065
        %2477 = vmatpush.bf16.msra.mxu0 %v2059
        %2478 = vmatpush.bf16.msra.mxu0 %v2053
        %2479 = vmatpush.bf16.msra.mxu0 %v2047
        %2480 = vmatpush.bf16.msra.mxu0 %v2041
        %2481 = vmatmul.bf16.gmra.mxu0 %v1313
        %v2482 = vpop.f32.mrf.mxu0
        %v2483 = vadd.f32 %v2470, %v2482
        %v2484 = vpop.f32.mrf.mxu0
        %2485 = vdwg.mxu0
        %2486 = vmatpush.bf16.msra.mxu0 %v1940
        %2487 = vmatpush.bf16.msra.mxu0 %v1934
        %2488 = vmatpush.bf16.msra.mxu0 %v1928
        %2489 = vmatpush.bf16.msra.mxu0 %v1922
        %2490 = vmatpush.bf16.msra.mxu0 %v1916
        %2491 = vmatpush.bf16.msra.mxu0 %v1910
        %2492 = vmatpush.bf16.msra.mxu0 %v1904
        %2493 = vmatpush.bf16.msra.mxu0 %v1898
        %2494 = vmatmul.bf16.gmra.mxu0 %v1310
        %v2495 = vpop.f32.mrf.mxu0
        %v2496 = vadd.f32 0.0, %v2495
        %v2497 = vpop.f32.mrf.mxu0
        %2498 = vdwg.mxu0
        %2499 = vmatpush.bf16.msra.mxu0 %v1988
        %2500 = vmatpush.bf16.msra.mxu0 %v1982
        %2501 = vmatpush.bf16.msra.mxu0 %v1976
        %2502 = vmatpush.bf16.msra.mxu0 %v1970
        %2503 = vmatpush.bf16.msra.mxu0 %v1964
        %2504 = vmatpush.bf16.msra.mxu0 %v1958
        %2505 = vmatpush.bf16.msra.mxu0 %v1952
        %2506 = vmatpush.bf16.msra.mxu0 %v1946
        %2507 = vmatmul.bf16.gmra.mxu0 %v1311
        %v2508 = vpop.f32.mrf.mxu0
        %v2509 = vadd.f32 %v2496, %v2508
        %v2510 = vpop.f32.mrf.mxu0
        %2511 = vdwg.mxu0
        %2512 = vmatpush.bf16.msra.mxu0 %v2036
        %2513 = vmatpush.bf16.msra.mxu0 %v2030
        %2514 = vmatpush.bf16.msra.mxu0 %v2024
        %2515 = vmatpush.bf16.msra.mxu0 %v2018
        %2516 = vmatpush.bf16.msra.mxu0 %v2012
        %2517 = vmatpush.bf16.msra.mxu0 %v2006
        %2518 = vmatpush.bf16.msra.mxu0 %v2000
        %2519 = vmatpush.bf16.msra.mxu0 %v1994
        %2520 = vmatmul.bf16.gmra.mxu0 %v1312
        %v2521 = vpop.f32.mrf.mxu0
        %v2522 = vadd.f32 %v2509, %v2521
        %v2523 = vpop.f32.mrf.mxu0
        %2524 = vdwg.mxu0
        %2525 = vmatpush.bf16.msra.mxu0 %v2084
        %2526 = vmatpush.bf16.msra.mxu0 %v2078
        %2527 = vmatpush.bf16.msra.mxu0 %v2072
        %2528 = vmatpush.bf16.msra.mxu0 %v2066
        %2529 = vmatpush.bf16.msra.mxu0 %v2060
        %2530 = vmatpush.bf16.msra.mxu0 %v2054
        %2531 = vmatpush.bf16.msra.mxu0 %v2048
        %2532 = vmatpush.bf16.msra.mxu0 %v2042
        %2533 = vmatmul.bf16.gmra.mxu0 %v1313
        %v2534 = vpop.f32.mrf.mxu0
        %v2535 = vadd.f32 %v2522, %v2534
        %v2536 = vpop.f32.mrf.mxu0
        %2537 = vdwg.mxu0
        %2538 = vmatpush.bf16.msra.mxu0 %v1941
        %2539 = vmatpush.bf16.msra.mxu0 %v1935
        %2540 = vmatpush.bf16.msra.mxu0 %v1929
        %2541 = vmatpush.bf16.msra.mxu0 %v1923
        %2542 = vmatpush.bf16.msra.mxu0 %v1917
        %2543 = vmatpush.bf16.msra.mxu0 %v1911
        %2544 = vmatpush.bf16.msra.mxu0 %v1905
        %2545 = vmatpush.bf16.msra.mxu0 %v1899
        %2546 = vmatmul.bf16.gmra.mxu0 %v1310
        %v2547 = vpop.f32.mrf.mxu0
        %v2548 = vadd.f32 0.0, %v2547
        %v2549 = vpop.f32.mrf.mxu0
        %2550 = vdwg.mxu0
        %2551 = vmatpush.bf16.msra.mxu0 %v1989
        %2552 = vmatpush.bf16.msra.mxu0 %v1983
        %2553 = vmatpush.bf16.msra.mxu0 %v1977
        %2554 = vmatpush.bf16.msra.mxu0 %v1971
        %2555 = vmatpush.bf16.msra.mxu0 %v1965
        %2556 = vmatpush.bf16.msra.mxu0 %v1959
        %2557 = vmatpush.bf16.msra.mxu0 %v1953
        %2558 = vmatpush.bf16.msra.mxu0 %v1947
        %2559 = vmatmul.bf16.gmra.mxu0 %v1311
        %v2560 = vpop.f32.mrf.mxu0
        %v2561 = vadd.f32 %v2548, %v2560
        %v2562 = vpop.f32.mrf.mxu0
        %2563 = vdwg.mxu0
        %2564 = vmatpush.bf16.msra.mxu0 %v2037
        %2565 = vmatpush.bf16.msra.mxu0 %v2031
        %2566 = vmatpush.bf16.msra.mxu0 %v2025
        %2567 = vmatpush.bf16.msra.mxu0 %v2019
        %2568 = vmatpush.bf16.msra.mxu0 %v2013
        %2569 = vmatpush.bf16.msra.mxu0 %v2007
        %2570 = vmatpush.bf16.msra.mxu0 %v2001
        %2571 = vmatpush.bf16.msra.mxu0 %v1995
        %2572 = vmatmul.bf16.gmra.mxu0 %v1312
        %v2573 = vpop.f32.mrf.mxu0
        %v2574 = vadd.f32 %v2561, %v2573
        %v2575 = vpop.f32.mrf.mxu0
        %2576 = vdwg.mxu0
        %2577 = vmatpush.bf16.msra.mxu0 %v2085
        %2578 = vmatpush.bf16.msra.mxu0 %v2079
        %2579 = vmatpush.bf16.msra.mxu0 %v2073
        %2580 = vmatpush.bf16.msra.mxu0 %v2067
        %2581 = vmatpush.bf16.msra.mxu0 %v2061
        %2582 = vmatpush.bf16.msra.mxu0 %v2055
        %2583 = vmatpush.bf16.msra.mxu0 %v2049
        %2584 = vmatpush.bf16.msra.mxu0 %v2043
        %2585 = vmatmul.bf16.gmra.mxu0 %v1313
        %v2586 = vpop.f32.mrf.mxu0
        %v2587 = vadd.f32 %v2574, %v2586
        %v2588 = vpop.f32.mrf.mxu0
        %2589 = vdwg.mxu0
        %v2590 = vpack.c.bf16 %v2327, %v2327
        %v2591 = vpack.c.bf16 %v2379, %v2379
        %v2592 = vpack.c.bf16 %v2431, %v2431
        %v2593 = vpack.c.bf16 %v2483, %v2483
        %v2594 = vpack.c.bf16 %v2535, %v2535
        %v2595 = vpack.c.bf16 %v2587, %v2587
        %v2596 = vld [vmem:[#allocation8] sm:$0xff]
        %v2597 = vld [vmem:[#allocation8 + $0x8] sm:$0xff]
        %v2598 = vld [vmem:[#allocation8 + $0x10] sm:$0xff]
        %v2599 = vld [vmem:[#allocation8 + $0x18] sm:$0xff]
        %v2600 = vld [vmem:[#allocation8 + $0x20] sm:$0xff]
        %v2601 = vld [vmem:[#allocation8 + $0x28] sm:$0xff]
        %v2602 = vld [vmem:[#allocation8 + $0x30] sm:$0xff]
        %v2603 = vld [vmem:[#allocation8 + $0x38] sm:$0xff]
        %v2604 = vld [vmem:[#allocation8 + $0x40] sm:$0xff]
        %v2605 = vld [vmem:[#allocation8 + $0x48] sm:$0xff]
        %v2606 = vld [vmem:[#allocation8 + $0x50] sm:$0xff]
        %v2607 = vld [vmem:[#allocation8 + $0x58] sm:$0xff]
        %v2608 = vld [vmem:[#allocation8 + $0x60] sm:$0xff]
        %v2609 = vld [vmem:[#allocation8 + $0x68] sm:$0xff]
        %v2610 = vld [vmem:[#allocation8 + $0x70] sm:$0xff]
        %v2611 = vld [vmem:[#allocation8 + $0x78] sm:$0xff]
        %v2612 = vld [vmem:[#allocation8 + $0x80] sm:$0xff]
        %v2613 = vld [vmem:[#allocation8 + $0x88] sm:$0xff]
        %v2614 = vld [vmem:[#allocation8 + $0x90] sm:$0xff]
        %v2615 = vld [vmem:[#allocation8 + $0x98] sm:$0xff]
        %v2616 = vld [vmem:[#allocation8 + $0xa0] sm:$0xff]
        %v2617 = vld [vmem:[#allocation8 + $0xa8] sm:$0xff]
        %v2618 = vld [vmem:[#allocation8 + $0xb0] sm:$0xff]
        %v2619 = vld [vmem:[#allocation8 + $0xb8] sm:$0xff]
        %v2620 = vld [vmem:[#allocation8 + $0xc0] sm:$0xff]
        %v2621 = vld [vmem:[#allocation8 + $0xc8] sm:$0xff]
        %v2622 = vld [vmem:[#allocation8 + $0xd0] sm:$0xff]
        %v2623 = vld [vmem:[#allocation8 + $0xd8] sm:$0xff]
        %v2624 = vld [vmem:[#allocation8 + $0xe0] sm:$0xff]
        %v2625 = vld [vmem:[#allocation8 + $0xe8] sm:$0xff]
        %v2626 = vld [vmem:[#allocation8 + $0xf0] sm:$0xff]
        %v2627 = vld [vmem:[#allocation8 + $0xf8] sm:$0xff]
        %v2628 = vld [vmem:[#allocation8 + $0x100] sm:$0xff]
        %v2629 = vld [vmem:[#allocation8 + $0x108] sm:$0xff]
        %v2630 = vld [vmem:[#allocation8 + $0x110] sm:$0xff]
        %v2631 = vld [vmem:[#allocation8 + $0x118] sm:$0xff]
        %v2632 = vld [vmem:[#allocation8 + $0x120] sm:$0xff]
        %v2633 = vld [vmem:[#allocation8 + $0x128] sm:$0xff]
        %v2634 = vld [vmem:[#allocation8 + $0x130] sm:$0xff]
        %v2635 = vld [vmem:[#allocation8 + $0x138] sm:$0xff]
        %v2636 = vld [vmem:[#allocation8 + $0x140] sm:$0xff]
        %v2637 = vld [vmem:[#allocation8 + $0x148] sm:$0xff]
        %v2638 = vld [vmem:[#allocation8 + $0x150] sm:$0xff]
        %v2639 = vld [vmem:[#allocation8 + $0x158] sm:$0xff]
        %v2640 = vld [vmem:[#allocation8 + $0x160] sm:$0xff]
        %v2641 = vld [vmem:[#allocation8 + $0x168] sm:$0xff]
        %v2642 = vld [vmem:[#allocation8 + $0x170] sm:$0xff]
        %v2643 = vld [vmem:[#allocation8 + $0x178] sm:$0xff]
        %v2644 = vld [vmem:[#allocation8 + $0x180] sm:$0xff]
        %v2645 = vld [vmem:[#allocation8 + $0x188] sm:$0xff]
        %v2646 = vld [vmem:[#allocation8 + $0x190] sm:$0xff]
        %v2647 = vld [vmem:[#allocation8 + $0x198] sm:$0xff]
        %v2648 = vld [vmem:[#allocation8 + $0x1a0] sm:$0xff]
        %v2649 = vld [vmem:[#allocation8 + $0x1a8] sm:$0xff]
        %v2650 = vld [vmem:[#allocation8 + $0x1b0] sm:$0xff]
        %v2651 = vld [vmem:[#allocation8 + $0x1b8] sm:$0xff]
        %v2652 = vld [vmem:[#allocation8 + $0x1c0] sm:$0xff]
        %v2653 = vld [vmem:[#allocation8 + $0x1c8] sm:$0xff]
        %v2654 = vld [vmem:[#allocation8 + $0x1d0] sm:$0xff]
        %v2655 = vld [vmem:[#allocation8 + $0x1d8] sm:$0xff]
        %v2656 = vld [vmem:[#allocation8 + $0x1e0] sm:$0xff]
        %v2657 = vld [vmem:[#allocation8 + $0x1e8] sm:$0xff]
        %v2658 = vld [vmem:[#allocation8 + $0x1f0] sm:$0xff]
        %v2659 = vld [vmem:[#allocation8 + $0x1f8] sm:$0xff]
        %v2660 = vld [vmem:[#allocation8 + $0x200] sm:$0xff]
        %v2661 = vld [vmem:[#allocation8 + $0x208] sm:$0xff]
        %v2662 = vld [vmem:[#allocation8 + $0x210] sm:$0xff]
        %v2663 = vld [vmem:[#allocation8 + $0x218] sm:$0xff]
        %v2664 = vld [vmem:[#allocation8 + $0x220] sm:$0xff]
        %v2665 = vld [vmem:[#allocation8 + $0x228] sm:$0xff]
        %v2666 = vld [vmem:[#allocation8 + $0x230] sm:$0xff]
        %v2667 = vld [vmem:[#allocation8 + $0x238] sm:$0xff]
        %v2668 = vld [vmem:[#allocation8 + $0x240] sm:$0xff]
        %v2669 = vld [vmem:[#allocation8 + $0x248] sm:$0xff]
        %v2670 = vld [vmem:[#allocation8 + $0x250] sm:$0xff]
        %v2671 = vld [vmem:[#allocation8 + $0x258] sm:$0xff]
        %v2672 = vld [vmem:[#allocation8 + $0x260] sm:$0xff]
        %v2673 = vld [vmem:[#allocation8 + $0x268] sm:$0xff]
        %v2674 = vld [vmem:[#allocation8 + $0x270] sm:$0xff]
        %v2675 = vld [vmem:[#allocation8 + $0x278] sm:$0xff]
        %v2676 = vld [vmem:[#allocation8 + $0x280] sm:$0xff]
        %v2677 = vld [vmem:[#allocation8 + $0x288] sm:$0xff]
        %v2678 = vld [vmem:[#allocation8 + $0x290] sm:$0xff]
        %v2679 = vld [vmem:[#allocation8 + $0x298] sm:$0xff]
        %v2680 = vld [vmem:[#allocation8 + $0x2a0] sm:$0xff]
        %v2681 = vld [vmem:[#allocation8 + $0x2a8] sm:$0xff]
        %v2682 = vld [vmem:[#allocation8 + $0x2b0] sm:$0xff]
        %v2683 = vld [vmem:[#allocation8 + $0x2b8] sm:$0xff]
        %v2684 = vld [vmem:[#allocation8 + $0x2c0] sm:$0xff]
        %v2685 = vld [vmem:[#allocation8 + $0x2c8] sm:$0xff]
        %v2686 = vld [vmem:[#allocation8 + $0x2d0] sm:$0xff]
        %v2687 = vld [vmem:[#allocation8 + $0x2d8] sm:$0xff]
        %v2688 = vld [vmem:[#allocation8 + $0x2e0] sm:$0xff]
        %v2689 = vld [vmem:[#allocation8 + $0x2e8] sm:$0xff]
        %v2690 = vld [vmem:[#allocation8 + $0x2f0] sm:$0xff]
        %v2691 = vld [vmem:[#allocation8 + $0x2f8] sm:$0xff]
        %v2692 = vld [vmem:[#allocation8 + $0x300] sm:$0xff]
        %v2693 = vld [vmem:[#allocation8 + $0x308] sm:$0xff]
        %v2694 = vld [vmem:[#allocation8 + $0x310] sm:$0xff]
        %v2695 = vld [vmem:[#allocation8 + $0x318] sm:$0xff]
        %v2696 = vld [vmem:[#allocation8 + $0x320] sm:$0xff]
        %v2697 = vld [vmem:[#allocation8 + $0x328] sm:$0xff]
        %v2698 = vld [vmem:[#allocation8 + $0x330] sm:$0xff]
        %v2699 = vld [vmem:[#allocation8 + $0x338] sm:$0xff]
        %v2700 = vld [vmem:[#allocation8 + $0x340] sm:$0xff]
        %v2701 = vld [vmem:[#allocation8 + $0x348] sm:$0xff]
        %v2702 = vld [vmem:[#allocation8 + $0x350] sm:$0xff]
        %v2703 = vld [vmem:[#allocation8 + $0x358] sm:$0xff]
        %v2704 = vld [vmem:[#allocation8 + $0x360] sm:$0xff]
        %v2705 = vld [vmem:[#allocation8 + $0x368] sm:$0xff]
        %v2706 = vld [vmem:[#allocation8 + $0x370] sm:$0xff]
        %v2707 = vld [vmem:[#allocation8 + $0x378] sm:$0xff]
        %v2708 = vld [vmem:[#allocation8 + $0x380] sm:$0xff]
        %v2709 = vld [vmem:[#allocation8 + $0x388] sm:$0xff]
        %v2710 = vld [vmem:[#allocation8 + $0x390] sm:$0xff]
        %v2711 = vld [vmem:[#allocation8 + $0x398] sm:$0xff]
        %v2712 = vld [vmem:[#allocation8 + $0x3a0] sm:$0xff]
        %v2713 = vld [vmem:[#allocation8 + $0x3a8] sm:$0xff]
        %v2714 = vld [vmem:[#allocation8 + $0x3b0] sm:$0xff]
        %v2715 = vld [vmem:[#allocation8 + $0x3b8] sm:$0xff]
        %v2716 = vld [vmem:[#allocation8 + $0x3c0] sm:$0xff]
        %v2717 = vld [vmem:[#allocation8 + $0x3c8] sm:$0xff]
        %v2718 = vld [vmem:[#allocation8 + $0x3d0] sm:$0xff]
        %v2719 = vld [vmem:[#allocation8 + $0x3d8] sm:$0xff]
        %v2720 = vld [vmem:[#allocation8 + $0x3e0] sm:$0xff]
        %v2721 = vld [vmem:[#allocation8 + $0x3e8] sm:$0xff]
        %v2722 = vld [vmem:[#allocation8 + $0x3f0] sm:$0xff]
        %v2723 = vld [vmem:[#allocation8 + $0x3f8] sm:$0xff]
        %v2724 = vld [vmem:[#allocation8 + $0x400] sm:$0xff]
        %v2725 = vld [vmem:[#allocation8 + $0x408] sm:$0xff]
        %v2726 = vld [vmem:[#allocation8 + $0x410] sm:$0xff]
        %v2727 = vld [vmem:[#allocation8 + $0x418] sm:$0xff]
        %v2728 = vld [vmem:[#allocation8 + $0x420] sm:$0xff]
        %v2729 = vld [vmem:[#allocation8 + $0x428] sm:$0xff]
        %v2730 = vld [vmem:[#allocation8 + $0x430] sm:$0xff]
        %v2731 = vld [vmem:[#allocation8 + $0x438] sm:$0xff]
        %v2732 = vld [vmem:[#allocation8 + $0x440] sm:$0xff]
        %v2733 = vld [vmem:[#allocation8 + $0x448] sm:$0xff]
        %v2734 = vld [vmem:[#allocation8 + $0x450] sm:$0xff]
        %v2735 = vld [vmem:[#allocation8 + $0x458] sm:$0xff]
        %v2736 = vld [vmem:[#allocation8 + $0x460] sm:$0xff]
        %v2737 = vld [vmem:[#allocation8 + $0x468] sm:$0xff]
        %v2738 = vld [vmem:[#allocation8 + $0x470] sm:$0xff]
        %v2739 = vld [vmem:[#allocation8 + $0x478] sm:$0xff]
        %v2740 = vld [vmem:[#allocation8 + $0x480] sm:$0xff]
        %v2741 = vld [vmem:[#allocation8 + $0x488] sm:$0xff]
        %v2742 = vld [vmem:[#allocation8 + $0x490] sm:$0xff]
        %v2743 = vld [vmem:[#allocation8 + $0x498] sm:$0xff]
        %v2744 = vld [vmem:[#allocation8 + $0x4a0] sm:$0xff]
        %v2745 = vld [vmem:[#allocation8 + $0x4a8] sm:$0xff]
        %v2746 = vld [vmem:[#allocation8 + $0x4b0] sm:$0xff]
        %v2747 = vld [vmem:[#allocation8 + $0x4b8] sm:$0xff]
        %v2748 = vld [vmem:[#allocation8 + $0x4c0] sm:$0xff]
        %v2749 = vld [vmem:[#allocation8 + $0x4c8] sm:$0xff]
        %v2750 = vld [vmem:[#allocation8 + $0x4d0] sm:$0xff]
        %v2751 = vld [vmem:[#allocation8 + $0x4d8] sm:$0xff]
        %v2752 = vld [vmem:[#allocation8 + $0x4e0] sm:$0xff]
        %v2753 = vld [vmem:[#allocation8 + $0x4e8] sm:$0xff]
        %v2754 = vld [vmem:[#allocation8 + $0x4f0] sm:$0xff]
        %v2755 = vld [vmem:[#allocation8 + $0x4f8] sm:$0xff]
        %v2756 = vld [vmem:[#allocation8 + $0x500] sm:$0xff]
        %v2757 = vld [vmem:[#allocation8 + $0x508] sm:$0xff]
        %v2758 = vld [vmem:[#allocation8 + $0x510] sm:$0xff]
        %v2759 = vld [vmem:[#allocation8 + $0x518] sm:$0xff]
        %v2760 = vld [vmem:[#allocation8 + $0x520] sm:$0xff]
        %v2761 = vld [vmem:[#allocation8 + $0x528] sm:$0xff]
        %v2762 = vld [vmem:[#allocation8 + $0x530] sm:$0xff]
        %v2763 = vld [vmem:[#allocation8 + $0x538] sm:$0xff]
        %v2764 = vld [vmem:[#allocation8 + $0x540] sm:$0xff]
        %v2765 = vld [vmem:[#allocation8 + $0x548] sm:$0xff]
        %v2766 = vld [vmem:[#allocation8 + $0x550] sm:$0xff]
        %v2767 = vld [vmem:[#allocation8 + $0x558] sm:$0xff]
        %v2768 = vld [vmem:[#allocation8 + $0x560] sm:$0xff]
        %v2769 = vld [vmem:[#allocation8 + $0x568] sm:$0xff]
        %v2770 = vld [vmem:[#allocation8 + $0x570] sm:$0xff]
        %v2771 = vld [vmem:[#allocation8 + $0x578] sm:$0xff]
        %v2772 = vld [vmem:[#allocation8 + $0x580] sm:$0xff]
        %v2773 = vld [vmem:[#allocation8 + $0x588] sm:$0xff]
        %v2774 = vld [vmem:[#allocation8 + $0x590] sm:$0xff]
        %v2775 = vld [vmem:[#allocation8 + $0x598] sm:$0xff]
        %v2776 = vld [vmem:[#allocation8 + $0x5a0] sm:$0xff]
        %v2777 = vld [vmem:[#allocation8 + $0x5a8] sm:$0xff]
        %v2778 = vld [vmem:[#allocation8 + $0x5b0] sm:$0xff]
        %v2779 = vld [vmem:[#allocation8 + $0x5b8] sm:$0xff]
        %v2780 = vld [vmem:[#allocation8 + $0x5c0] sm:$0xff]
        %v2781 = vld [vmem:[#allocation8 + $0x5c8] sm:$0xff]
        %v2782 = vld [vmem:[#allocation8 + $0x5d0] sm:$0xff]
        %v2783 = vld [vmem:[#allocation8 + $0x5d8] sm:$0xff]
        %v2784 = vld [vmem:[#allocation8 + $0x5e0] sm:$0xff]
        %v2785 = vld [vmem:[#allocation8 + $0x5e8] sm:$0xff]
        %v2786 = vld [vmem:[#allocation8 + $0x5f0] sm:$0xff]
        %v2787 = vld [vmem:[#allocation8 + $0x5f8] sm:$0xff]
        %v2788 = vld [vmem:[#allocation8 + $0x600] sm:$0xff]
        %v2789 = vld [vmem:[#allocation8 + $0x608] sm:$0xff]
        %v2790 = vld [vmem:[#allocation8 + $0x610] sm:$0xff]
        %v2791 = vld [vmem:[#allocation8 + $0x618] sm:$0xff]
        %v2792 = vld [vmem:[#allocation8 + $0x620] sm:$0xff]
        %v2793 = vld [vmem:[#allocation8 + $0x628] sm:$0xff]
        %v2794 = vld [vmem:[#allocation8 + $0x630] sm:$0xff]
        %v2795 = vld [vmem:[#allocation8 + $0x638] sm:$0xff]
        %v2796 = vld [vmem:[#allocation8 + $0x640] sm:$0xff]
        %v2797 = vld [vmem:[#allocation8 + $0x648] sm:$0xff]
        %v2798 = vld [vmem:[#allocation8 + $0x650] sm:$0xff]
        %v2799 = vld [vmem:[#allocation8 + $0x658] sm:$0xff]
        %v2800 = vld [vmem:[#allocation8 + $0x660] sm:$0xff]
        %v2801 = vld [vmem:[#allocation8 + $0x668] sm:$0xff]
        %v2802 = vld [vmem:[#allocation8 + $0x670] sm:$0xff]
        %v2803 = vld [vmem:[#allocation8 + $0x678] sm:$0xff]
        %v2804 = vld [vmem:[#allocation8 + $0x680] sm:$0xff]
        %v2805 = vld [vmem:[#allocation8 + $0x688] sm:$0xff]
        %v2806 = vld [vmem:[#allocation8 + $0x690] sm:$0xff]
        %v2807 = vld [vmem:[#allocation8 + $0x698] sm:$0xff]
        %v2808 = vld [vmem:[#allocation8 + $0x6a0] sm:$0xff]
        %v2809 = vld [vmem:[#allocation8 + $0x6a8] sm:$0xff]
        %v2810 = vld [vmem:[#allocation8 + $0x6b0] sm:$0xff]
        %v2811 = vld [vmem:[#allocation8 + $0x6b8] sm:$0xff]
        %v2812 = vld [vmem:[#allocation8 + $0x6c0] sm:$0xff]
        %v2813 = vld [vmem:[#allocation8 + $0x6c8] sm:$0xff]
        %v2814 = vld [vmem:[#allocation8 + $0x6d0] sm:$0xff]
        %v2815 = vld [vmem:[#allocation8 + $0x6d8] sm:$0xff]
        %v2816 = vld [vmem:[#allocation8 + $0x6e0] sm:$0xff]
        %v2817 = vld [vmem:[#allocation8 + $0x6e8] sm:$0xff]
        %v2818 = vld [vmem:[#allocation8 + $0x6f0] sm:$0xff]
        %v2819 = vld [vmem:[#allocation8 + $0x6f8] sm:$0xff]
        %v2820 = vld [vmem:[#allocation8 + $0x700] sm:$0xff]
        %v2821 = vld [vmem:[#allocation8 + $0x708] sm:$0xff]
        %v2822 = vld [vmem:[#allocation8 + $0x710] sm:$0xff]
        %v2823 = vld [vmem:[#allocation8 + $0x718] sm:$0xff]
        %v2824 = vld [vmem:[#allocation8 + $0x720] sm:$0xff]
        %v2825 = vld [vmem:[#allocation8 + $0x728] sm:$0xff]
        %v2826 = vld [vmem:[#allocation8 + $0x730] sm:$0xff]
        %v2827 = vld [vmem:[#allocation8 + $0x738] sm:$0xff]
        %v2828 = vld [vmem:[#allocation8 + $0x740] sm:$0xff]
        %v2829 = vld [vmem:[#allocation8 + $0x748] sm:$0xff]
        %v2830 = vld [vmem:[#allocation8 + $0x750] sm:$0xff]
        %v2831 = vld [vmem:[#allocation8 + $0x758] sm:$0xff]
        %v2832 = vld [vmem:[#allocation8 + $0x760] sm:$0xff]
        %v2833 = vld [vmem:[#allocation8 + $0x768] sm:$0xff]
        %v2834 = vld [vmem:[#allocation8 + $0x770] sm:$0xff]
        %v2835 = vld [vmem:[#allocation8 + $0x778] sm:$0xff]
        %v2836 = vld [vmem:[#allocation8 + $0x780] sm:$0xff]
        %v2837 = vld [vmem:[#allocation8 + $0x788] sm:$0xff]
        %v2838 = vld [vmem:[#allocation8 + $0x790] sm:$0xff]
        %v2839 = vld [vmem:[#allocation8 + $0x798] sm:$0xff]
        %v2840 = vld [vmem:[#allocation8 + $0x7a0] sm:$0xff]
        %v2841 = vld [vmem:[#allocation8 + $0x7a8] sm:$0xff]
        %v2842 = vld [vmem:[#allocation8 + $0x7b0] sm:$0xff]
        %v2843 = vld [vmem:[#allocation8 + $0x7b8] sm:$0xff]
        %v2844 = vld [vmem:[#allocation8 + $0x7c0] sm:$0xff]
        %v2845 = vld [vmem:[#allocation8 + $0x7c8] sm:$0xff]
        %v2846 = vld [vmem:[#allocation8 + $0x7d0] sm:$0xff]
        %v2847 = vld [vmem:[#allocation8 + $0x7d8] sm:$0xff]
        %v2848 = vld [vmem:[#allocation8 + $0x7e0] sm:$0xff]
        %v2849 = vld [vmem:[#allocation8 + $0x7e8] sm:$0xff]
        %v2850 = vld [vmem:[#allocation8 + $0x7f0] sm:$0xff]
        %v2851 = vld [vmem:[#allocation8 + $0x7f8] sm:$0xff]
        %v2852 = vld [vmem:[#allocation8 + $0x800] sm:$0xff]
        %v2853 = vld [vmem:[#allocation8 + $0x808] sm:$0xff]
        %v2854 = vld [vmem:[#allocation8 + $0x810] sm:$0xff]
        %v2855 = vld [vmem:[#allocation8 + $0x818] sm:$0xff]
        %v2856 = vld [vmem:[#allocation8 + $0x820] sm:$0xff]
        %v2857 = vld [vmem:[#allocation8 + $0x828] sm:$0xff]
        %v2858 = vld [vmem:[#allocation8 + $0x830] sm:$0xff]
        %v2859 = vld [vmem:[#allocation8 + $0x838] sm:$0xff]
        %v2860 = vld [vmem:[#allocation8 + $0x840] sm:$0xff]
        %v2861 = vld [vmem:[#allocation8 + $0x848] sm:$0xff]
        %v2862 = vld [vmem:[#allocation8 + $0x850] sm:$0xff]
        %v2863 = vld [vmem:[#allocation8 + $0x858] sm:$0xff]
        %v2864 = vld [vmem:[#allocation8 + $0x860] sm:$0xff]
        %v2865 = vld [vmem:[#allocation8 + $0x868] sm:$0xff]
        %v2866 = vld [vmem:[#allocation8 + $0x870] sm:$0xff]
        %v2867 = vld [vmem:[#allocation8 + $0x878] sm:$0xff]
        %v2868 = vld [vmem:[#allocation8 + $0x880] sm:$0xff]
        %v2869 = vld [vmem:[#allocation8 + $0x888] sm:$0xff]
        %v2870 = vld [vmem:[#allocation8 + $0x890] sm:$0xff]
        %v2871 = vld [vmem:[#allocation8 + $0x898] sm:$0xff]
        %v2872 = vld [vmem:[#allocation8 + $0x8a0] sm:$0xff]
        %v2873 = vld [vmem:[#allocation8 + $0x8a8] sm:$0xff]
        %v2874 = vld [vmem:[#allocation8 + $0x8b0] sm:$0xff]
        %v2875 = vld [vmem:[#allocation8 + $0x8b8] sm:$0xff]
        %v2876 = vld [vmem:[#allocation8 + $0x8c0] sm:$0xff]
        %v2877 = vld [vmem:[#allocation8 + $0x8c8] sm:$0xff]
        %v2878 = vld [vmem:[#allocation8 + $0x8d0] sm:$0xff]
        %v2879 = vld [vmem:[#allocation8 + $0x8d8] sm:$0xff]
        %v2880 = vld [vmem:[#allocation8 + $0x8e0] sm:$0xff]
        %v2881 = vld [vmem:[#allocation8 + $0x8e8] sm:$0xff]
        %v2882 = vld [vmem:[#allocation8 + $0x8f0] sm:$0xff]
        %v2883 = vld [vmem:[#allocation8 + $0x8f8] sm:$0xff]
        %v2884 = vld [vmem:[#allocation10] sm:$0x3f]
        %v2886 = vperm.slane %v2884, 0
        %v2887 = vperm.slane %v2884, 1
        %v2888 = vperm.slane %v2884, 2
        %v2889 = vperm.slane %v2884, 3
        %v2890 = vperm.slane %v2884, 4
        %v2891 = vperm.slane %v2884, 5
        %v3186 = vunpack.c.l.b16 %v2596
        %v3187 = vunpack.c.h.b16 %v2596
        %v3188 = vunpack.c.l.b16 %v2597
        %v3189 = vunpack.c.h.b16 %v2597
        %v3190 = vunpack.c.l.b16 %v2598
        %v3191 = vunpack.c.h.b16 %v2598
        %v3192 = vunpack.c.l.b16 %v2599
        %v3193 = vunpack.c.h.b16 %v2599
        %v3194 = vunpack.c.l.b16 %v2600
        %v3195 = vunpack.c.h.b16 %v2600
        %v3196 = vunpack.c.l.b16 %v2601
        %v3197 = vunpack.c.h.b16 %v2601
        %v3198 = vunpack.c.l.b16 %v2602
        %v3199 = vunpack.c.h.b16 %v2602
        %v3200 = vunpack.c.l.b16 %v2603
        %v3201 = vunpack.c.h.b16 %v2603
        %v3202 = vunpack.c.l.b16 %v2604
        %v3203 = vunpack.c.h.b16 %v2604
        %v3204 = vunpack.c.l.b16 %v2605
        %v3205 = vunpack.c.h.b16 %v2605
        %v3206 = vunpack.c.l.b16 %v2606
        %v3207 = vunpack.c.h.b16 %v2606
        %v3208 = vunpack.c.l.b16 %v2607
        %v3209 = vunpack.c.h.b16 %v2607
        %v3210 = vunpack.c.l.b16 %v2608
        %v3211 = vunpack.c.h.b16 %v2608
        %v3212 = vunpack.c.l.b16 %v2609
        %v3213 = vunpack.c.h.b16 %v2609
        %v3214 = vunpack.c.l.b16 %v2610
        %v3215 = vunpack.c.h.b16 %v2610
        %v3216 = vunpack.c.l.b16 %v2611
        %v3217 = vunpack.c.h.b16 %v2611
        %v3218 = vunpack.c.l.b16 %v2612
        %v3219 = vunpack.c.h.b16 %v2612
        %v3220 = vunpack.c.l.b16 %v2613
        %v3221 = vunpack.c.h.b16 %v2613
        %v3222 = vunpack.c.l.b16 %v2614
        %v3223 = vunpack.c.h.b16 %v2614
        %v3224 = vunpack.c.l.b16 %v2615
        %v3225 = vunpack.c.h.b16 %v2615
        %v3226 = vunpack.c.l.b16 %v2616
        %v3227 = vunpack.c.h.b16 %v2616
        %v3228 = vunpack.c.l.b16 %v2617
        %v3229 = vunpack.c.h.b16 %v2617
        %v3230 = vunpack.c.l.b16 %v2618
        %v3231 = vunpack.c.h.b16 %v2618
        %v3232 = vunpack.c.l.b16 %v2619
        %v3233 = vunpack.c.h.b16 %v2619
        %v3234 = vunpack.c.l.b16 %v2620
        %v3235 = vunpack.c.h.b16 %v2620
        %v3236 = vunpack.c.l.b16 %v2621
        %v3237 = vunpack.c.h.b16 %v2621
        %v3238 = vunpack.c.l.b16 %v2622
        %v3239 = vunpack.c.h.b16 %v2622
        %v3240 = vunpack.c.l.b16 %v2623
        %v3241 = vunpack.c.h.b16 %v2623
        %v3242 = vunpack.c.l.b16 %v2624
        %v3243 = vunpack.c.h.b16 %v2624
        %v3244 = vunpack.c.l.b16 %v2625
        %v3245 = vunpack.c.h.b16 %v2625
        %v3246 = vunpack.c.l.b16 %v2626
        %v3247 = vunpack.c.h.b16 %v2626
        %v3248 = vunpack.c.l.b16 %v2627
        %v3249 = vunpack.c.h.b16 %v2627
        %v3250 = vunpack.c.l.b16 %v2628
        %v3251 = vunpack.c.h.b16 %v2628
        %v3252 = vunpack.c.l.b16 %v2629
        %v3253 = vunpack.c.h.b16 %v2629
        %v3254 = vunpack.c.l.b16 %v2630
        %v3255 = vunpack.c.h.b16 %v2630
        %v3256 = vunpack.c.l.b16 %v2631
        %v3257 = vunpack.c.h.b16 %v2631
        %v3258 = vunpack.c.l.b16 %v2632
        %v3259 = vunpack.c.h.b16 %v2632
        %v3260 = vunpack.c.l.b16 %v2633
        %v3261 = vunpack.c.h.b16 %v2633
        %v3262 = vunpack.c.l.b16 %v2634
        %v3263 = vunpack.c.h.b16 %v2634
        %v3264 = vunpack.c.l.b16 %v2635
        %v3265 = vunpack.c.h.b16 %v2635
        %v3266 = vunpack.c.l.b16 %v2636
        %v3267 = vunpack.c.h.b16 %v2636
        %v3268 = vunpack.c.l.b16 %v2637
        %v3269 = vunpack.c.h.b16 %v2637
        %v3270 = vunpack.c.l.b16 %v2638
        %v3271 = vunpack.c.h.b16 %v2638
        %v3272 = vunpack.c.l.b16 %v2639
        %v3273 = vunpack.c.h.b16 %v2639
        %v3274 = vunpack.c.l.b16 %v2640
        %v3275 = vunpack.c.h.b16 %v2640
        %v3276 = vunpack.c.l.b16 %v2641
        %v3277 = vunpack.c.h.b16 %v2641
        %v3278 = vunpack.c.l.b16 %v2642
        %v3279 = vunpack.c.h.b16 %v2642
        %v3280 = vunpack.c.l.b16 %v2643
        %v3281 = vunpack.c.h.b16 %v2643
        %v3282 = vunpack.c.l.b16 %v2644
        %v3283 = vunpack.c.h.b16 %v2644
        %v3284 = vunpack.c.l.b16 %v2645
        %v3285 = vunpack.c.h.b16 %v2645
        %v3286 = vunpack.c.l.b16 %v2646
        %v3287 = vunpack.c.h.b16 %v2646
        %v3288 = vunpack.c.l.b16 %v2647
        %v3289 = vunpack.c.h.b16 %v2647
        %v3290 = vunpack.c.l.b16 %v2648
        %v3291 = vunpack.c.h.b16 %v2648
        %v3292 = vunpack.c.l.b16 %v2649
        %v3293 = vunpack.c.h.b16 %v2649
        %v3294 = vunpack.c.l.b16 %v2650
        %v3295 = vunpack.c.h.b16 %v2650
        %v3296 = vunpack.c.l.b16 %v2651
        %v3297 = vunpack.c.h.b16 %v2651
        %v3298 = vunpack.c.l.b16 %v2652
        %v3299 = vunpack.c.h.b16 %v2652
        %v3300 = vunpack.c.l.b16 %v2653
        %v3301 = vunpack.c.h.b16 %v2653
        %v3302 = vunpack.c.l.b16 %v2654
        %v3303 = vunpack.c.h.b16 %v2654
        %v3304 = vunpack.c.l.b16 %v2655
        %v3305 = vunpack.c.h.b16 %v2655
        %v3306 = vunpack.c.l.b16 %v2656
        %v3307 = vunpack.c.h.b16 %v2656
        %v3308 = vunpack.c.l.b16 %v2657
        %v3309 = vunpack.c.h.b16 %v2657
        %v3310 = vunpack.c.l.b16 %v2658
        %v3311 = vunpack.c.h.b16 %v2658
        %v3312 = vunpack.c.l.b16 %v2659
        %v3313 = vunpack.c.h.b16 %v2659
        %v3314 = vunpack.c.l.b16 %v2660
        %v3315 = vunpack.c.h.b16 %v2660
        %v3316 = vunpack.c.l.b16 %v2661
        %v3317 = vunpack.c.h.b16 %v2661
        %v3318 = vunpack.c.l.b16 %v2662
        %v3319 = vunpack.c.h.b16 %v2662
        %v3320 = vunpack.c.l.b16 %v2663
        %v3321 = vunpack.c.h.b16 %v2663
        %v3322 = vunpack.c.l.b16 %v2664
        %v3323 = vunpack.c.h.b16 %v2664
        %v3324 = vunpack.c.l.b16 %v2665
        %v3325 = vunpack.c.h.b16 %v2665
        %v3326 = vunpack.c.l.b16 %v2666
        %v3327 = vunpack.c.h.b16 %v2666
        %v3328 = vunpack.c.l.b16 %v2667
        %v3329 = vunpack.c.h.b16 %v2667
        %v3330 = vunpack.c.l.b16 %v2668
        %v3331 = vunpack.c.h.b16 %v2668
        %v3332 = vunpack.c.l.b16 %v2669
        %v3333 = vunpack.c.h.b16 %v2669
        %v3334 = vunpack.c.l.b16 %v2670
        %v3335 = vunpack.c.h.b16 %v2670
        %v3336 = vunpack.c.l.b16 %v2671
        %v3337 = vunpack.c.h.b16 %v2671
        %v3338 = vunpack.c.l.b16 %v2672
        %v3339 = vunpack.c.h.b16 %v2672
        %v3340 = vunpack.c.l.b16 %v2673
        %v3341 = vunpack.c.h.b16 %v2673
        %v3342 = vunpack.c.l.b16 %v2674
        %v3343 = vunpack.c.h.b16 %v2674
        %v3344 = vunpack.c.l.b16 %v2675
        %v3345 = vunpack.c.h.b16 %v2675
        %v3346 = vunpack.c.l.b16 %v2676
        %v3347 = vunpack.c.h.b16 %v2676
        %v3348 = vunpack.c.l.b16 %v2677
        %v3349 = vunpack.c.h.b16 %v2677
        %v3350 = vunpack.c.l.b16 %v2678
        %v3351 = vunpack.c.h.b16 %v2678
        %v3352 = vunpack.c.l.b16 %v2679
        %v3353 = vunpack.c.h.b16 %v2679
        %v3354 = vunpack.c.l.b16 %v2680
        %v3355 = vunpack.c.h.b16 %v2680
        %v3356 = vunpack.c.l.b16 %v2681
        %v3357 = vunpack.c.h.b16 %v2681
        %v3358 = vunpack.c.l.b16 %v2682
        %v3359 = vunpack.c.h.b16 %v2682
        %v3360 = vunpack.c.l.b16 %v2683
        %v3361 = vunpack.c.h.b16 %v2683
        %v3362 = vunpack.c.l.b16 %v2684
        %v3363 = vunpack.c.h.b16 %v2684
        %v3364 = vunpack.c.l.b16 %v2685
        %v3365 = vunpack.c.h.b16 %v2685
        %v3366 = vunpack.c.l.b16 %v2686
        %v3367 = vunpack.c.h.b16 %v2686
        %v3368 = vunpack.c.l.b16 %v2687
        %v3369 = vunpack.c.h.b16 %v2687
        %v3370 = vunpack.c.l.b16 %v2688
        %v3371 = vunpack.c.h.b16 %v2688
        %v3372 = vunpack.c.l.b16 %v2689
        %v3373 = vunpack.c.h.b16 %v2689
        %v3374 = vunpack.c.l.b16 %v2690
        %v3375 = vunpack.c.h.b16 %v2690
        %v3376 = vunpack.c.l.b16 %v2691
        %v3377 = vunpack.c.h.b16 %v2691
        %v3378 = vunpack.c.l.b16 %v2692
        %v3379 = vunpack.c.h.b16 %v2692
        %v3380 = vunpack.c.l.b16 %v2693
        %v3381 = vunpack.c.h.b16 %v2693
        %v3382 = vunpack.c.l.b16 %v2694
        %v3383 = vunpack.c.h.b16 %v2694
        %v3384 = vunpack.c.l.b16 %v2695
        %v3385 = vunpack.c.h.b16 %v2695
        %v3386 = vunpack.c.l.b16 %v2696
        %v3387 = vunpack.c.h.b16 %v2696
        %v3388 = vunpack.c.l.b16 %v2697
        %v3389 = vunpack.c.h.b16 %v2697
        %v3390 = vunpack.c.l.b16 %v2698
        %v3391 = vunpack.c.h.b16 %v2698
        %v3392 = vunpack.c.l.b16 %v2699
        %v3393 = vunpack.c.h.b16 %v2699
        %v3394 = vunpack.c.l.b16 %v2700
        %v3395 = vunpack.c.h.b16 %v2700
        %v3396 = vunpack.c.l.b16 %v2701
        %v3397 = vunpack.c.h.b16 %v2701
        %v3398 = vunpack.c.l.b16 %v2702
        %v3399 = vunpack.c.h.b16 %v2702
        %v3400 = vunpack.c.l.b16 %v2703
        %v3401 = vunpack.c.h.b16 %v2703
        %v3402 = vunpack.c.l.b16 %v2704
        %v3403 = vunpack.c.h.b16 %v2704
        %v3404 = vunpack.c.l.b16 %v2705
        %v3405 = vunpack.c.h.b16 %v2705
        %v3406 = vunpack.c.l.b16 %v2706
        %v3407 = vunpack.c.h.b16 %v2706
        %v3408 = vunpack.c.l.b16 %v2707
        %v3409 = vunpack.c.h.b16 %v2707
        %v3410 = vunpack.c.l.b16 %v2708
        %v3411 = vunpack.c.h.b16 %v2708
        %v3412 = vunpack.c.l.b16 %v2709
        %v3413 = vunpack.c.h.b16 %v2709
        %v3414 = vunpack.c.l.b16 %v2710
        %v3415 = vunpack.c.h.b16 %v2710
        %v3416 = vunpack.c.l.b16 %v2711
        %v3417 = vunpack.c.h.b16 %v2711
        %v3418 = vunpack.c.l.b16 %v2712
        %v3419 = vunpack.c.h.b16 %v2712
        %v3420 = vunpack.c.l.b16 %v2713
        %v3421 = vunpack.c.h.b16 %v2713
        %v3422 = vunpack.c.l.b16 %v2714
        %v3423 = vunpack.c.h.b16 %v2714
        %v3424 = vunpack.c.l.b16 %v2715
        %v3425 = vunpack.c.h.b16 %v2715
        %v3426 = vunpack.c.l.b16 %v2716
        %v3427 = vunpack.c.h.b16 %v2716
        %v3428 = vunpack.c.l.b16 %v2717
        %v3429 = vunpack.c.h.b16 %v2717
        %v3430 = vunpack.c.l.b16 %v2718
        %v3431 = vunpack.c.h.b16 %v2718
        %v3432 = vunpack.c.l.b16 %v2719
        %v3433 = vunpack.c.h.b16 %v2719
        %v3434 = vunpack.c.l.b16 %v2720
        %v3435 = vunpack.c.h.b16 %v2720
        %v3436 = vunpack.c.l.b16 %v2721
        %v3437 = vunpack.c.h.b16 %v2721
        %v3438 = vunpack.c.l.b16 %v2722
        %v3439 = vunpack.c.h.b16 %v2722
        %v3440 = vunpack.c.l.b16 %v2723
        %v3441 = vunpack.c.h.b16 %v2723
        %v3442 = vunpack.c.l.b16 %v2724
        %v3443 = vunpack.c.h.b16 %v2724
        %v3444 = vunpack.c.l.b16 %v2725
        %v3445 = vunpack.c.h.b16 %v2725
        %v3446 = vunpack.c.l.b16 %v2726
        %v3447 = vunpack.c.h.b16 %v2726
        %v3448 = vunpack.c.l.b16 %v2727
        %v3449 = vunpack.c.h.b16 %v2727
        %v3450 = vunpack.c.l.b16 %v2728
        %v3451 = vunpack.c.h.b16 %v2728
        %v3452 = vunpack.c.l.b16 %v2729
        %v3453 = vunpack.c.h.b16 %v2729
        %v3454 = vunpack.c.l.b16 %v2730
        %v3455 = vunpack.c.h.b16 %v2730
        %v3456 = vunpack.c.l.b16 %v2731
        %v3457 = vunpack.c.h.b16 %v2731
        %v3458 = vunpack.c.l.b16 %v2732
        %v3459 = vunpack.c.h.b16 %v2732
        %v3460 = vunpack.c.l.b16 %v2733
        %v3461 = vunpack.c.h.b16 %v2733
        %v3462 = vunpack.c.l.b16 %v2734
        %v3463 = vunpack.c.h.b16 %v2734
        %v3464 = vunpack.c.l.b16 %v2735
        %v3465 = vunpack.c.h.b16 %v2735
        %v3466 = vunpack.c.l.b16 %v2736
        %v3467 = vunpack.c.h.b16 %v2736
        %v3468 = vunpack.c.l.b16 %v2737
        %v3469 = vunpack.c.h.b16 %v2737
        %v3470 = vunpack.c.l.b16 %v2738
        %v3471 = vunpack.c.h.b16 %v2738
        %v3472 = vunpack.c.l.b16 %v2739
        %v3473 = vunpack.c.h.b16 %v2739
        %v3474 = vunpack.c.l.b16 %v2740
        %v3475 = vunpack.c.h.b16 %v2740
        %v3476 = vunpack.c.l.b16 %v2741
        %v3477 = vunpack.c.h.b16 %v2741
        %v3478 = vunpack.c.l.b16 %v2742
        %v3479 = vunpack.c.h.b16 %v2742
        %v3480 = vunpack.c.l.b16 %v2743
        %v3481 = vunpack.c.h.b16 %v2743
        %v3482 = vunpack.c.l.b16 %v2744
        %v3483 = vunpack.c.h.b16 %v2744
        %v3484 = vunpack.c.l.b16 %v2745
        %v3485 = vunpack.c.h.b16 %v2745
        %v3486 = vunpack.c.l.b16 %v2746
        %v3487 = vunpack.c.h.b16 %v2746
        %v3488 = vunpack.c.l.b16 %v2747
        %v3489 = vunpack.c.h.b16 %v2747
        %v3490 = vunpack.c.l.b16 %v2748
        %v3491 = vunpack.c.h.b16 %v2748
        %v3492 = vunpack.c.l.b16 %v2749
        %v3493 = vunpack.c.h.b16 %v2749
        %v3494 = vunpack.c.l.b16 %v2750
        %v3495 = vunpack.c.h.b16 %v2750
        %v3496 = vunpack.c.l.b16 %v2751
        %v3497 = vunpack.c.h.b16 %v2751
        %v3498 = vunpack.c.l.b16 %v2752
        %v3499 = vunpack.c.h.b16 %v2752
        %v3500 = vunpack.c.l.b16 %v2753
        %v3501 = vunpack.c.h.b16 %v2753
        %v3502 = vunpack.c.l.b16 %v2754
        %v3503 = vunpack.c.h.b16 %v2754
        %v3504 = vunpack.c.l.b16 %v2755
        %v3505 = vunpack.c.h.b16 %v2755
        %v3506 = vunpack.c.l.b16 %v2756
        %v3507 = vunpack.c.h.b16 %v2756
        %v3508 = vunpack.c.l.b16 %v2757
        %v3509 = vunpack.c.h.b16 %v2757
        %v3510 = vunpack.c.l.b16 %v2758
        %v3511 = vunpack.c.h.b16 %v2758
        %v3512 = vunpack.c.l.b16 %v2759
        %v3513 = vunpack.c.h.b16 %v2759
        %v3514 = vunpack.c.l.b16 %v2760
        %v3515 = vunpack.c.h.b16 %v2760
        %v3516 = vunpack.c.l.b16 %v2761
        %v3517 = vunpack.c.h.b16 %v2761
        %v3518 = vunpack.c.l.b16 %v2762
        %v3519 = vunpack.c.h.b16 %v2762
        %v3520 = vunpack.c.l.b16 %v2763
        %v3521 = vunpack.c.h.b16 %v2763
        %v3522 = vunpack.c.l.b16 %v2764
        %v3523 = vunpack.c.h.b16 %v2764
        %v3524 = vunpack.c.l.b16 %v2765
        %v3525 = vunpack.c.h.b16 %v2765
        %v3526 = vunpack.c.l.b16 %v2766
        %v3527 = vunpack.c.h.b16 %v2766
        %v3528 = vunpack.c.l.b16 %v2767
        %v3529 = vunpack.c.h.b16 %v2767
        %v3530 = vunpack.c.l.b16 %v2768
        %v3531 = vunpack.c.h.b16 %v2768
        %v3532 = vunpack.c.l.b16 %v2769
        %v3533 = vunpack.c.h.b16 %v2769
        %v3534 = vunpack.c.l.b16 %v2770
        %v3535 = vunpack.c.h.b16 %v2770
        %v3536 = vunpack.c.l.b16 %v2771
        %v3537 = vunpack.c.h.b16 %v2771
        %v3538 = vunpack.c.l.b16 %v2772
        %v3539 = vunpack.c.h.b16 %v2772
        %v3540 = vunpack.c.l.b16 %v2773
        %v3541 = vunpack.c.h.b16 %v2773
        %v3542 = vunpack.c.l.b16 %v2774
        %v3543 = vunpack.c.h.b16 %v2774
        %v3544 = vunpack.c.l.b16 %v2775
        %v3545 = vunpack.c.h.b16 %v2775
        %v3546 = vunpack.c.l.b16 %v2776
        %v3547 = vunpack.c.h.b16 %v2776
        %v3548 = vunpack.c.l.b16 %v2777
        %v3549 = vunpack.c.h.b16 %v2777
        %v3550 = vunpack.c.l.b16 %v2778
        %v3551 = vunpack.c.h.b16 %v2778
        %v3552 = vunpack.c.l.b16 %v2779
        %v3553 = vunpack.c.h.b16 %v2779
        %v3554 = vunpack.c.l.b16 %v2780
        %v3555 = vunpack.c.h.b16 %v2780
        %v3556 = vunpack.c.l.b16 %v2781
        %v3557 = vunpack.c.h.b16 %v2781
        %v3558 = vunpack.c.l.b16 %v2782
        %v3559 = vunpack.c.h.b16 %v2782
        %v3560 = vunpack.c.l.b16 %v2783
        %v3561 = vunpack.c.h.b16 %v2783
        %v3562 = vunpack.c.l.b16 %v2784
        %v3563 = vunpack.c.h.b16 %v2784
        %v3564 = vunpack.c.l.b16 %v2785
        %v3565 = vunpack.c.h.b16 %v2785
        %v3566 = vunpack.c.l.b16 %v2786
        %v3567 = vunpack.c.h.b16 %v2786
        %v3568 = vunpack.c.l.b16 %v2787
        %v3569 = vunpack.c.h.b16 %v2787
        %v3570 = vunpack.c.l.b16 %v2788
        %v3571 = vunpack.c.h.b16 %v2788
        %v3572 = vunpack.c.l.b16 %v2789
        %v3573 = vunpack.c.h.b16 %v2789
        %v3574 = vunpack.c.l.b16 %v2790
        %v3575 = vunpack.c.h.b16 %v2790
        %v3576 = vunpack.c.l.b16 %v2791
        %v3577 = vunpack.c.h.b16 %v2791
        %v3578 = vunpack.c.l.b16 %v2792
        %v3579 = vunpack.c.h.b16 %v2792
        %v3580 = vunpack.c.l.b16 %v2793
        %v3581 = vunpack.c.h.b16 %v2793
        %v3582 = vunpack.c.l.b16 %v2794
        %v3583 = vunpack.c.h.b16 %v2794
        %v3584 = vunpack.c.l.b16 %v2795
        %v3585 = vunpack.c.h.b16 %v2795
        %v3586 = vunpack.c.l.b16 %v2796
        %v3587 = vunpack.c.h.b16 %v2796
        %v3588 = vunpack.c.l.b16 %v2797
        %v3589 = vunpack.c.h.b16 %v2797
        %v3590 = vunpack.c.l.b16 %v2798
        %v3591 = vunpack.c.h.b16 %v2798
        %v3592 = vunpack.c.l.b16 %v2799
        %v3593 = vunpack.c.h.b16 %v2799
        %v3594 = vunpack.c.l.b16 %v2800
        %v3595 = vunpack.c.h.b16 %v2800
        %v3596 = vunpack.c.l.b16 %v2801
        %v3597 = vunpack.c.h.b16 %v2801
        %v3598 = vunpack.c.l.b16 %v2802
        %v3599 = vunpack.c.h.b16 %v2802
        %v3600 = vunpack.c.l.b16 %v2803
        %v3601 = vunpack.c.h.b16 %v2803
        %v3602 = vunpack.c.l.b16 %v2804
        %v3603 = vunpack.c.h.b16 %v2804
        %v3604 = vunpack.c.l.b16 %v2805
        %v3605 = vunpack.c.h.b16 %v2805
        %v3606 = vunpack.c.l.b16 %v2806
        %v3607 = vunpack.c.h.b16 %v2806
        %v3608 = vunpack.c.l.b16 %v2807
        %v3609 = vunpack.c.h.b16 %v2807
        %v3610 = vunpack.c.l.b16 %v2808
        %v3611 = vunpack.c.h.b16 %v2808
        %v3612 = vunpack.c.l.b16 %v2809
        %v3613 = vunpack.c.h.b16 %v2809
        %v3614 = vunpack.c.l.b16 %v2810
        %v3615 = vunpack.c.h.b16 %v2810
        %v3616 = vunpack.c.l.b16 %v2811
        %v3617 = vunpack.c.h.b16 %v2811
        %v3618 = vunpack.c.l.b16 %v2812
        %v3619 = vunpack.c.h.b16 %v2812
        %v3620 = vunpack.c.l.b16 %v2813
        %v3621 = vunpack.c.h.b16 %v2813
        %v3622 = vunpack.c.l.b16 %v2814
        %v3623 = vunpack.c.h.b16 %v2814
        %v3624 = vunpack.c.l.b16 %v2815
        %v3625 = vunpack.c.h.b16 %v2815
        %v3626 = vunpack.c.l.b16 %v2816
        %v3627 = vunpack.c.h.b16 %v2816
        %v3628 = vunpack.c.l.b16 %v2817
        %v3629 = vunpack.c.h.b16 %v2817
        %v3630 = vunpack.c.l.b16 %v2818
        %v3631 = vunpack.c.h.b16 %v2818
        %v3632 = vunpack.c.l.b16 %v2819
        %v3633 = vunpack.c.h.b16 %v2819
        %v3634 = vunpack.c.l.b16 %v2820
        %v3635 = vunpack.c.h.b16 %v2820
        %v3636 = vunpack.c.l.b16 %v2821
        %v3637 = vunpack.c.h.b16 %v2821
        %v3638 = vunpack.c.l.b16 %v2822
        %v3639 = vunpack.c.h.b16 %v2822
        %v3640 = vunpack.c.l.b16 %v2823
        %v3641 = vunpack.c.h.b16 %v2823
        %v3642 = vunpack.c.l.b16 %v2824
        %v3643 = vunpack.c.h.b16 %v2824
        %v3644 = vunpack.c.l.b16 %v2825
        %v3645 = vunpack.c.h.b16 %v2825
        %v3646 = vunpack.c.l.b16 %v2826
        %v3647 = vunpack.c.h.b16 %v2826
        %v3648 = vunpack.c.l.b16 %v2827
        %v3649 = vunpack.c.h.b16 %v2827
        %v3650 = vunpack.c.l.b16 %v2828
        %v3651 = vunpack.c.h.b16 %v2828
        %v3652 = vunpack.c.l.b16 %v2829
        %v3653 = vunpack.c.h.b16 %v2829
        %v3654 = vunpack.c.l.b16 %v2830
        %v3655 = vunpack.c.h.b16 %v2830
        %v3656 = vunpack.c.l.b16 %v2831
        %v3657 = vunpack.c.h.b16 %v2831
        %v3658 = vunpack.c.l.b16 %v2832
        %v3659 = vunpack.c.h.b16 %v2832
        %v3660 = vunpack.c.l.b16 %v2833
        %v3661 = vunpack.c.h.b16 %v2833
        %v3662 = vunpack.c.l.b16 %v2834
        %v3663 = vunpack.c.h.b16 %v2834
        %v3664 = vunpack.c.l.b16 %v2835
        %v3665 = vunpack.c.h.b16 %v2835
        %v3666 = vunpack.c.l.b16 %v2836
        %v3667 = vunpack.c.h.b16 %v2836
        %v3668 = vunpack.c.l.b16 %v2837
        %v3669 = vunpack.c.h.b16 %v2837
        %v3670 = vunpack.c.l.b16 %v2838
        %v3671 = vunpack.c.h.b16 %v2838
        %v3672 = vunpack.c.l.b16 %v2839
        %v3673 = vunpack.c.h.b16 %v2839
        %v3674 = vunpack.c.l.b16 %v2840
        %v3675 = vunpack.c.h.b16 %v2840
        %v3676 = vunpack.c.l.b16 %v2841
        %v3677 = vunpack.c.h.b16 %v2841
        %v3678 = vunpack.c.l.b16 %v2842
        %v3679 = vunpack.c.h.b16 %v2842
        %v3680 = vunpack.c.l.b16 %v2843
        %v3681 = vunpack.c.h.b16 %v2843
        %v3682 = vunpack.c.l.b16 %v2844
        %v3683 = vunpack.c.h.b16 %v2844
        %v3684 = vunpack.c.l.b16 %v2845
        %v3685 = vunpack.c.h.b16 %v2845
        %v3686 = vunpack.c.l.b16 %v2846
        %v3687 = vunpack.c.h.b16 %v2846
        %v3688 = vunpack.c.l.b16 %v2847
        %v3689 = vunpack.c.h.b16 %v2847
        %v3690 = vunpack.c.l.b16 %v2848
        %v3691 = vunpack.c.h.b16 %v2848
        %v3692 = vunpack.c.l.b16 %v2849
        %v3693 = vunpack.c.h.b16 %v2849
        %v3694 = vunpack.c.l.b16 %v2850
        %v3695 = vunpack.c.h.b16 %v2850
        %v3696 = vunpack.c.l.b16 %v2851
        %v3697 = vunpack.c.h.b16 %v2851
        %v3698 = vunpack.c.l.b16 %v2852
        %v3699 = vunpack.c.h.b16 %v2852
        %v3700 = vunpack.c.l.b16 %v2853
        %v3701 = vunpack.c.h.b16 %v2853
        %v3702 = vunpack.c.l.b16 %v2854
        %v3703 = vunpack.c.h.b16 %v2854
        %v3704 = vunpack.c.l.b16 %v2855
        %v3705 = vunpack.c.h.b16 %v2855
        %v3706 = vunpack.c.l.b16 %v2856
        %v3707 = vunpack.c.h.b16 %v2856
        %v3708 = vunpack.c.l.b16 %v2857
        %v3709 = vunpack.c.h.b16 %v2857
        %v3710 = vunpack.c.l.b16 %v2858
        %v3711 = vunpack.c.h.b16 %v2858
        %v3712 = vunpack.c.l.b16 %v2859
        %v3713 = vunpack.c.h.b16 %v2859
        %v3714 = vunpack.c.l.b16 %v2860
        %v3715 = vunpack.c.h.b16 %v2860
        %v3716 = vunpack.c.l.b16 %v2861
        %v3717 = vunpack.c.h.b16 %v2861
        %v3718 = vunpack.c.l.b16 %v2862
        %v3719 = vunpack.c.h.b16 %v2862
        %v3720 = vunpack.c.l.b16 %v2863
        %v3721 = vunpack.c.h.b16 %v2863
        %v3722 = vunpack.c.l.b16 %v2864
        %v3723 = vunpack.c.h.b16 %v2864
        %v3724 = vunpack.c.l.b16 %v2865
        %v3725 = vunpack.c.h.b16 %v2865
        %v3726 = vunpack.c.l.b16 %v2866
        %v3727 = vunpack.c.h.b16 %v2866
        %v3728 = vunpack.c.l.b16 %v2867
        %v3729 = vunpack.c.h.b16 %v2867
        %v3730 = vunpack.c.l.b16 %v2868
        %v3731 = vunpack.c.h.b16 %v2868
        %v3732 = vunpack.c.l.b16 %v2869
        %v3733 = vunpack.c.h.b16 %v2869
        %v3734 = vunpack.c.l.b16 %v2870
        %v3735 = vunpack.c.h.b16 %v2870
        %v3736 = vunpack.c.l.b16 %v2871
        %v3737 = vunpack.c.h.b16 %v2871
        %v3738 = vunpack.c.l.b16 %v2872
        %v3739 = vunpack.c.h.b16 %v2872
        %v3740 = vunpack.c.l.b16 %v2873
        %v3741 = vunpack.c.h.b16 %v2873
        %v3742 = vunpack.c.l.b16 %v2874
        %v3743 = vunpack.c.h.b16 %v2874
        %v3744 = vunpack.c.l.b16 %v2875
        %v3745 = vunpack.c.h.b16 %v2875
        %v3746 = vunpack.c.l.b16 %v2876
        %v3747 = vunpack.c.h.b16 %v2876
        %v3748 = vunpack.c.l.b16 %v2877
        %v3749 = vunpack.c.h.b16 %v2877
        %v3750 = vunpack.c.l.b16 %v2878
        %v3751 = vunpack.c.h.b16 %v2878
        %v3752 = vunpack.c.l.b16 %v2879
        %v3753 = vunpack.c.h.b16 %v2879
        %v3754 = vunpack.c.l.b16 %v2880
        %v3755 = vunpack.c.h.b16 %v2880
        %v3756 = vunpack.c.l.b16 %v2881
        %v3757 = vunpack.c.h.b16 %v2881
        %v3758 = vunpack.c.l.b16 %v2882
        %v3759 = vunpack.c.h.b16 %v2882
        %v3760 = vunpack.c.l.b16 %v2883
        %v3761 = vunpack.c.h.b16 %v2883
        %v3762 = vpack.c.b16 %v3192, %v3186
        %v3763 = vpack.c.b16 %v3193, %v3187
        %v3764 = vpack.c.b16 %v3194, %v3188
        %v3765 = vpack.c.b16 %v3195, %v3189
        %v3766 = vpack.c.b16 %v3196, %v3190
        %v3767 = vpack.c.b16 %v3197, %v3191
        %v3768 = vpack.c.b16 %v3204, %v3198
        %v3769 = vpack.c.b16 %v3205, %v3199
        %v3770 = vpack.c.b16 %v3206, %v3200
        %v3771 = vpack.c.b16 %v3207, %v3201
        %v3772 = vpack.c.b16 %v3208, %v3202
        %v3773 = vpack.c.b16 %v3209, %v3203
        %v3774 = vpack.c.b16 %v3216, %v3210
        %v3775 = vpack.c.b16 %v3217, %v3211
        %v3776 = vpack.c.b16 %v3218, %v3212
        %v3777 = vpack.c.b16 %v3219, %v3213
        %v3778 = vpack.c.b16 %v3220, %v3214
        %v3779 = vpack.c.b16 %v3221, %v3215
        %v3780 = vpack.c.b16 %v3228, %v3222
        %v3781 = vpack.c.b16 %v3229, %v3223
        %v3782 = vpack.c.b16 %v3230, %v3224
        %v3783 = vpack.c.b16 %v3231, %v3225
        %v3784 = vpack.c.b16 %v3232, %v3226
        %v3785 = vpack.c.b16 %v3233, %v3227
        %v3786 = vpack.c.b16 %v3240, %v3234
        %v3787 = vpack.c.b16 %v3241, %v3235
        %v3788 = vpack.c.b16 %v3242, %v3236
        %v3789 = vpack.c.b16 %v3243, %v3237
        %v3790 = vpack.c.b16 %v3244, %v3238
        %v3791 = vpack.c.b16 %v3245, %v3239
        %v3792 = vpack.c.b16 %v3252, %v3246
        %v3793 = vpack.c.b16 %v3253, %v3247
        %v3794 = vpack.c.b16 %v3254, %v3248
        %v3795 = vpack.c.b16 %v3255, %v3249
        %v3796 = vpack.c.b16 %v3256, %v3250
        %v3797 = vpack.c.b16 %v3257, %v3251
        %v3798 = vpack.c.b16 %v3264, %v3258
        %v3799 = vpack.c.b16 %v3265, %v3259
        %v3800 = vpack.c.b16 %v3266, %v3260
        %v3801 = vpack.c.b16 %v3267, %v3261
        %v3802 = vpack.c.b16 %v3268, %v3262
        %v3803 = vpack.c.b16 %v3269, %v3263
        %v3804 = vpack.c.b16 %v3276, %v3270
        %v3805 = vpack.c.b16 %v3277, %v3271
        %v3806 = vpack.c.b16 %v3278, %v3272
        %v3807 = vpack.c.b16 %v3279, %v3273
        %v3808 = vpack.c.b16 %v3280, %v3274
        %v3809 = vpack.c.b16 %v3281, %v3275
        %v3810 = vpack.c.b16 %v3288, %v3282
        %v3811 = vpack.c.b16 %v3289, %v3283
        %v3812 = vpack.c.b16 %v3290, %v3284
        %v3813 = vpack.c.b16 %v3291, %v3285
        %v3814 = vpack.c.b16 %v3292, %v3286
        %v3815 = vpack.c.b16 %v3293, %v3287
        %v3816 = vpack.c.b16 %v3300, %v3294
        %v3817 = vpack.c.b16 %v3301, %v3295
        %v3818 = vpack.c.b16 %v3302, %v3296
        %v3819 = vpack.c.b16 %v3303, %v3297
        %v3820 = vpack.c.b16 %v3304, %v3298
        %v3821 = vpack.c.b16 %v3305, %v3299
        %v3822 = vpack.c.b16 %v3312, %v3306
        %v3823 = vpack.c.b16 %v3313, %v3307
        %v3824 = vpack.c.b16 %v3314, %v3308
        %v3825 = vpack.c.b16 %v3315, %v3309
        %v3826 = vpack.c.b16 %v3316, %v3310
        %v3827 = vpack.c.b16 %v3317, %v3311
        %v3828 = vpack.c.b16 %v3324, %v3318
        %v3829 = vpack.c.b16 %v3325, %v3319
        %v3830 = vpack.c.b16 %v3326, %v3320
        %v3831 = vpack.c.b16 %v3327, %v3321
        %v3832 = vpack.c.b16 %v3328, %v3322
        %v3833 = vpack.c.b16 %v3329, %v3323
        %v3834 = vpack.c.b16 %v3336, %v3330
        %v3835 = vpack.c.b16 %v3337, %v3331
        %v3836 = vpack.c.b16 %v3338, %v3332
        %v3837 = vpack.c.b16 %v3339, %v3333
        %v3838 = vpack.c.b16 %v3340, %v3334
        %v3839 = vpack.c.b16 %v3341, %v3335
        %v3840 = vpack.c.b16 %v3348, %v3342
        %v3841 = vpack.c.b16 %v3349, %v3343
        %v3842 = vpack.c.b16 %v3350, %v3344
        %v3843 = vpack.c.b16 %v3351, %v3345
        %v3844 = vpack.c.b16 %v3352, %v3346
        %v3845 = vpack.c.b16 %v3353, %v3347
        %v3846 = vpack.c.b16 %v3360, %v3354
        %v3847 = vpack.c.b16 %v3361, %v3355
        %v3848 = vpack.c.b16 %v3362, %v3356
        %v3849 = vpack.c.b16 %v3363, %v3357
        %v3850 = vpack.c.b16 %v3364, %v3358
        %v3851 = vpack.c.b16 %v3365, %v3359
        %v3852 = vpack.c.b16 %v3372, %v3366
        %v3853 = vpack.c.b16 %v3373, %v3367
        %v3854 = vpack.c.b16 %v3374, %v3368
        %v3855 = vpack.c.b16 %v3375, %v3369
        %v3856 = vpack.c.b16 %v3376, %v3370
        %v3857 = vpack.c.b16 %v3377, %v3371
        %v3858 = vpack.c.b16 %v3384, %v3378
        %v3859 = vpack.c.b16 %v3385, %v3379
        %v3860 = vpack.c.b16 %v3386, %v3380
        %v3861 = vpack.c.b16 %v3387, %v3381
        %v3862 = vpack.c.b16 %v3388, %v3382
        %v3863 = vpack.c.b16 %v3389, %v3383
        %v3864 = vpack.c.b16 %v3396, %v3390
        %v3865 = vpack.c.b16 %v3397, %v3391
        %v3866 = vpack.c.b16 %v3398, %v3392
        %v3867 = vpack.c.b16 %v3399, %v3393
        %v3868 = vpack.c.b16 %v3400, %v3394
        %v3869 = vpack.c.b16 %v3401, %v3395
        %v3870 = vpack.c.b16 %v3408, %v3402
        %v3871 = vpack.c.b16 %v3409, %v3403
        %v3872 = vpack.c.b16 %v3410, %v3404
        %v3873 = vpack.c.b16 %v3411, %v3405
        %v3874 = vpack.c.b16 %v3412, %v3406
        %v3875 = vpack.c.b16 %v3413, %v3407
        %v3876 = vpack.c.b16 %v3420, %v3414
        %v3877 = vpack.c.b16 %v3421, %v3415
        %v3878 = vpack.c.b16 %v3422, %v3416
        %v3879 = vpack.c.b16 %v3423, %v3417
        %v3880 = vpack.c.b16 %v3424, %v3418
        %v3881 = vpack.c.b16 %v3425, %v3419
        %v3882 = vpack.c.b16 %v3432, %v3426
        %v3883 = vpack.c.b16 %v3433, %v3427
        %v3884 = vpack.c.b16 %v3434, %v3428
        %v3885 = vpack.c.b16 %v3435, %v3429
        %v3886 = vpack.c.b16 %v3436, %v3430
        %v3887 = vpack.c.b16 %v3437, %v3431
        %v3888 = vpack.c.b16 %v3444, %v3438
        %v3889 = vpack.c.b16 %v3445, %v3439
        %v3890 = vpack.c.b16 %v3446, %v3440
        %v3891 = vpack.c.b16 %v3447, %v3441
        %v3892 = vpack.c.b16 %v3448, %v3442
        %v3893 = vpack.c.b16 %v3449, %v3443
        %v3894 = vpack.c.b16 %v3456, %v3450
        %v3895 = vpack.c.b16 %v3457, %v3451
        %v3896 = vpack.c.b16 %v3458, %v3452
        %v3897 = vpack.c.b16 %v3459, %v3453
        %v3898 = vpack.c.b16 %v3460, %v3454
        %v3899 = vpack.c.b16 %v3461, %v3455
        %v3900 = vpack.c.b16 %v3468, %v3462
        %v3901 = vpack.c.b16 %v3469, %v3463
        %v3902 = vpack.c.b16 %v3470, %v3464
        %v3903 = vpack.c.b16 %v3471, %v3465
        %v3904 = vpack.c.b16 %v3472, %v3466
        %v3905 = vpack.c.b16 %v3473, %v3467
        %v3906 = vpack.c.b16 %v3480, %v3474
        %v3907 = vpack.c.b16 %v3481, %v3475
        %v3908 = vpack.c.b16 %v3482, %v3476
        %v3909 = vpack.c.b16 %v3483, %v3477
        %v3910 = vpack.c.b16 %v3484, %v3478
        %v3911 = vpack.c.b16 %v3485, %v3479
        %v3912 = vpack.c.b16 %v3492, %v3486
        %v3913 = vpack.c.b16 %v3493, %v3487
        %v3914 = vpack.c.b16 %v3494, %v3488
        %v3915 = vpack.c.b16 %v3495, %v3489
        %v3916 = vpack.c.b16 %v3496, %v3490
        %v3917 = vpack.c.b16 %v3497, %v3491
        %v3918 = vpack.c.b16 %v3504, %v3498
        %v3919 = vpack.c.b16 %v3505, %v3499
        %v3920 = vpack.c.b16 %v3506, %v3500
        %v3921 = vpack.c.b16 %v3507, %v3501
        %v3922 = vpack.c.b16 %v3508, %v3502
        %v3923 = vpack.c.b16 %v3509, %v3503
        %v3924 = vpack.c.b16 %v3516, %v3510
        %v3925 = vpack.c.b16 %v3517, %v3511
        %v3926 = vpack.c.b16 %v3518, %v3512
        %v3927 = vpack.c.b16 %v3519, %v3513
        %v3928 = vpack.c.b16 %v3520, %v3514
        %v3929 = vpack.c.b16 %v3521, %v3515
        %v3930 = vpack.c.b16 %v3528, %v3522
        %v3931 = vpack.c.b16 %v3529, %v3523
        %v3932 = vpack.c.b16 %v3530, %v3524
        %v3933 = vpack.c.b16 %v3531, %v3525
        %v3934 = vpack.c.b16 %v3532, %v3526
        %v3935 = vpack.c.b16 %v3533, %v3527
        %v3936 = vpack.c.b16 %v3540, %v3534
        %v3937 = vpack.c.b16 %v3541, %v3535
        %v3938 = vpack.c.b16 %v3542, %v3536
        %v3939 = vpack.c.b16 %v3543, %v3537
        %v3940 = vpack.c.b16 %v3544, %v3538
        %v3941 = vpack.c.b16 %v3545, %v3539
        %v3942 = vpack.c.b16 %v3552, %v3546
        %v3943 = vpack.c.b16 %v3553, %v3547
        %v3944 = vpack.c.b16 %v3554, %v3548
        %v3945 = vpack.c.b16 %v3555, %v3549
        %v3946 = vpack.c.b16 %v3556, %v3550
        %v3947 = vpack.c.b16 %v3557, %v3551
        %v3948 = vpack.c.b16 %v3564, %v3558
        %v3949 = vpack.c.b16 %v3565, %v3559
        %v3950 = vpack.c.b16 %v3566, %v3560
        %v3951 = vpack.c.b16 %v3567, %v3561
        %v3952 = vpack.c.b16 %v3568, %v3562
        %v3953 = vpack.c.b16 %v3569, %v3563
        %v3954 = vpack.c.b16 %v3576, %v3570
        %v3955 = vpack.c.b16 %v3577, %v3571
        %v3956 = vpack.c.b16 %v3578, %v3572
        %v3957 = vpack.c.b16 %v3579, %v3573
        %v3958 = vpack.c.b16 %v3580, %v3574
        %v3959 = vpack.c.b16 %v3581, %v3575
        %v3960 = vpack.c.b16 %v3588, %v3582
        %v3961 = vpack.c.b16 %v3589, %v3583
        %v3962 = vpack.c.b16 %v3590, %v3584
        %v3963 = vpack.c.b16 %v3591, %v3585
        %v3964 = vpack.c.b16 %v3592, %v3586
        %v3965 = vpack.c.b16 %v3593, %v3587
        %v3966 = vpack.c.b16 %v3600, %v3594
        %v3967 = vpack.c.b16 %v3601, %v3595
        %v3968 = vpack.c.b16 %v3602, %v3596
        %v3969 = vpack.c.b16 %v3603, %v3597
        %v3970 = vpack.c.b16 %v3604, %v3598
        %v3971 = vpack.c.b16 %v3605, %v3599
        %v3972 = vpack.c.b16 %v3612, %v3606
        %v3973 = vpack.c.b16 %v3613, %v3607
        %v3974 = vpack.c.b16 %v3614, %v3608
        %v3975 = vpack.c.b16 %v3615, %v3609
        %v3976 = vpack.c.b16 %v3616, %v3610
        %v3977 = vpack.c.b16 %v3617, %v3611
        %v3978 = vpack.c.b16 %v3624, %v3618
        %v3979 = vpack.c.b16 %v3625, %v3619
        %v3980 = vpack.c.b16 %v3626, %v3620
        %v3981 = vpack.c.b16 %v3627, %v3621
        %v3982 = vpack.c.b16 %v3628, %v3622
        %v3983 = vpack.c.b16 %v3629, %v3623
        %v3984 = vpack.c.b16 %v3636, %v3630
        %v3985 = vpack.c.b16 %v3637, %v3631
        %v3986 = vpack.c.b16 %v3638, %v3632
        %v3987 = vpack.c.b16 %v3639, %v3633
        %v3988 = vpack.c.b16 %v3640, %v3634
        %v3989 = vpack.c.b16 %v3641, %v3635
        %v3990 = vpack.c.b16 %v3648, %v3642
        %v3991 = vpack.c.b16 %v3649, %v3643
        %v3992 = vpack.c.b16 %v3650, %v3644
        %v3993 = vpack.c.b16 %v3651, %v3645
        %v3994 = vpack.c.b16 %v3652, %v3646
        %v3995 = vpack.c.b16 %v3653, %v3647
        %v3996 = vpack.c.b16 %v3660, %v3654
        %v3997 = vpack.c.b16 %v3661, %v3655
        %v3998 = vpack.c.b16 %v3662, %v3656
        %v3999 = vpack.c.b16 %v3663, %v3657
        %v4000 = vpack.c.b16 %v3664, %v3658
        %v4001 = vpack.c.b16 %v3665, %v3659
        %v4002 = vpack.c.b16 %v3672, %v3666
        %v4003 = vpack.c.b16 %v3673, %v3667
        %v4004 = vpack.c.b16 %v3674, %v3668
        %v4005 = vpack.c.b16 %v3675, %v3669
        %v4006 = vpack.c.b16 %v3676, %v3670
        %v4007 = vpack.c.b16 %v3677, %v3671
        %v4008 = vpack.c.b16 %v3684, %v3678
        %v4009 = vpack.c.b16 %v3685, %v3679
        %v4010 = vpack.c.b16 %v3686, %v3680
        %v4011 = vpack.c.b16 %v3687, %v3681
        %v4012 = vpack.c.b16 %v3688, %v3682
        %v4013 = vpack.c.b16 %v3689, %v3683
        %v4014 = vpack.c.b16 %v3696, %v3690
        %v4015 = vpack.c.b16 %v3697, %v3691
        %v4016 = vpack.c.b16 %v3698, %v3692
        %v4017 = vpack.c.b16 %v3699, %v3693
        %v4018 = vpack.c.b16 %v3700, %v3694
        %v4019 = vpack.c.b16 %v3701, %v3695
        %v4020 = vpack.c.b16 %v3708, %v3702
        %v4021 = vpack.c.b16 %v3709, %v3703
        %v4022 = vpack.c.b16 %v3710, %v3704
        %v4023 = vpack.c.b16 %v3711, %v3705
        %v4024 = vpack.c.b16 %v3712, %v3706
        %v4025 = vpack.c.b16 %v3713, %v3707
        %v4026 = vpack.c.b16 %v3720, %v3714
        %v4027 = vpack.c.b16 %v3721, %v3715
        %v4028 = vpack.c.b16 %v3722, %v3716
        %v4029 = vpack.c.b16 %v3723, %v3717
        %v4030 = vpack.c.b16 %v3724, %v3718
        %v4031 = vpack.c.b16 %v3725, %v3719
        %v4032 = vpack.c.b16 %v3732, %v3726
        %v4033 = vpack.c.b16 %v3733, %v3727
        %v4034 = vpack.c.b16 %v3734, %v3728
        %v4035 = vpack.c.b16 %v3735, %v3729
        %v4036 = vpack.c.b16 %v3736, %v3730
        %v4037 = vpack.c.b16 %v3737, %v3731
        %v4038 = vpack.c.b16 %v3744, %v3738
        %v4039 = vpack.c.b16 %v3745, %v3739
        %v4040 = vpack.c.b16 %v3746, %v3740
        %v4041 = vpack.c.b16 %v3747, %v3741
        %v4042 = vpack.c.b16 %v3748, %v3742
        %v4043 = vpack.c.b16 %v3749, %v3743
        %v4044 = vpack.c.b16 %v3756, %v3750
        %v4045 = vpack.c.b16 %v3757, %v3751
        %v4046 = vpack.c.b16 %v3758, %v3752
        %v4047 = vpack.c.b16 %v3759, %v3753
        %v4048 = vpack.c.b16 %v3760, %v3754
        %v4049 = vpack.c.b16 %v3761, %v3755
        %4338 = vmatpush.bf16.msra.mxu0 %v3804
        %4339 = vmatpush.bf16.msra.mxu0 %v3798
        %4340 = vmatpush.bf16.msra.mxu0 %v3792
        %4341 = vmatpush.bf16.msra.mxu0 %v3786
        %4342 = vmatpush.bf16.msra.mxu0 %v3780
        %4343 = vmatpush.bf16.msra.mxu0 %v3774
        %4344 = vmatpush.bf16.msra.mxu0 %v3768
        %4345 = vmatpush.bf16.msra.mxu0 %v3762
        %4346 = vmatmul.bf16.gmra.mxu0 %v2590
        %v4347 = vpop.f32.mrf.mxu0
        %v4348 = vadd.f32 %v2886, %v4347
        %v4349 = vpop.f32.mrf.mxu0
        %4350 = vdwg.mxu0
        %4351 = vmatpush.bf16.msra.mxu0 %v3852
        %4352 = vmatpush.bf16.msra.mxu0 %v3846
        %4353 = vmatpush.bf16.msra.mxu0 %v3840
        %4354 = vmatpush.bf16.msra.mxu0 %v3834
        %4355 = vmatpush.bf16.msra.mxu0 %v3828
        %4356 = vmatpush.bf16.msra.mxu0 %v3822
        %4357 = vmatpush.bf16.msra.mxu0 %v3816
        %4358 = vmatpush.bf16.msra.mxu0 %v3810
        %4359 = vmatmul.bf16.gmra.mxu0 %v2591
        %v4360 = vpop.f32.mrf.mxu0
        %v4361 = vadd.f32 %v4348, %v4360
        %v4362 = vpop.f32.mrf.mxu0
        %4363 = vdwg.mxu0
        %4364 = vmatpush.bf16.msra.mxu0 %v3900
        %4365 = vmatpush.bf16.msra.mxu0 %v3894
        %4366 = vmatpush.bf16.msra.mxu0 %v3888
        %4367 = vmatpush.bf16.msra.mxu0 %v3882
        %4368 = vmatpush.bf16.msra.mxu0 %v3876
        %4369 = vmatpush.bf16.msra.mxu0 %v3870
        %4370 = vmatpush.bf16.msra.mxu0 %v3864
        %4371 = vmatpush.bf16.msra.mxu0 %v3858
        %4372 = vmatmul.bf16.gmra.mxu0 %v2592
        %v4373 = vpop.f32.mrf.mxu0
        %v4374 = vadd.f32 %v4361, %v4373
        %v4375 = vpop.f32.mrf.mxu0
        %4376 = vdwg.mxu0
        %4377 = vmatpush.bf16.msra.mxu0 %v3948
        %4378 = vmatpush.bf16.msra.mxu0 %v3942
        %4379 = vmatpush.bf16.msra.mxu0 %v3936
        %4380 = vmatpush.bf16.msra.mxu0 %v3930
        %4381 = vmatpush.bf16.msra.mxu0 %v3924
        %4382 = vmatpush.bf16.msra.mxu0 %v3918
        %4383 = vmatpush.bf16.msra.mxu0 %v3912
        %4384 = vmatpush.bf16.msra.mxu0 %v3906
        %4385 = vmatmul.bf16.gmra.mxu0 %v2593
        %v4386 = vpop.f32.mrf.mxu0
        %v4387 = vadd.f32 %v4374, %v4386
        %v4388 = vpop.f32.mrf.mxu0
        %4389 = vdwg.mxu0
        %4390 = vmatpush.bf16.msra.mxu0 %v3996
        %4391 = vmatpush.bf16.msra.mxu0 %v3990
        %4392 = vmatpush.bf16.msra.mxu0 %v3984
        %4393 = vmatpush.bf16.msra.mxu0 %v3978
        %4394 = vmatpush.bf16.msra.mxu0 %v3972
        %4395 = vmatpush.bf16.msra.mxu0 %v3966
        %4396 = vmatpush.bf16.msra.mxu0 %v3960
        %4397 = vmatpush.bf16.msra.mxu0 %v3954
        %4398 = vmatmul.bf16.gmra.mxu0 %v2594
        %v4399 = vpop.f32.mrf.mxu0
        %v4400 = vadd.f32 %v4387, %v4399
        %v4401 = vpop.f32.mrf.mxu0
        %4402 = vdwg.mxu0
        %4403 = vmatpush.bf16.msra.mxu0 %v4044
        %4404 = vmatpush.bf16.msra.mxu0 %v4038
        %4405 = vmatpush.bf16.msra.mxu0 %v4032
        %4406 = vmatpush.bf16.msra.mxu0 %v4026
        %4407 = vmatpush.bf16.msra.mxu0 %v4020
        %4408 = vmatpush.bf16.msra.mxu0 %v4014
        %4409 = vmatpush.bf16.msra.mxu0 %v4008
        %4410 = vmatpush.bf16.msra.mxu0 %v4002
        %4411 = vmatmul.bf16.gmra.mxu0 %v2595
        %v4412 = vpop.f32.mrf.mxu0
        %v4413 = vadd.f32 %v4400, %v4412
        %v4414 = vpop.f32.mrf.mxu0
        %4415 = vdwg.mxu0
        %4416 = vmatpush.bf16.msra.mxu0 %v3805
        %4417 = vmatpush.bf16.msra.mxu0 %v3799
        %4418 = vmatpush.bf16.msra.mxu0 %v3793
        %4419 = vmatpush.bf16.msra.mxu0 %v3787
        %4420 = vmatpush.bf16.msra.mxu0 %v3781
        %4421 = vmatpush.bf16.msra.mxu0 %v3775
        %4422 = vmatpush.bf16.msra.mxu0 %v3769
        %4423 = vmatpush.bf16.msra.mxu0 %v3763
        %4424 = vmatmul.bf16.gmra.mxu0 %v2590
        %v4425 = vpop.f32.mrf.mxu0
        %v4426 = vadd.f32 %v2887, %v4425
        %v4427 = vpop.f32.mrf.mxu0
        %4428 = vdwg.mxu0
        %4429 = vmatpush.bf16.msra.mxu0 %v3853
        %4430 = vmatpush.bf16.msra.mxu0 %v3847
        %4431 = vmatpush.bf16.msra.mxu0 %v3841
        %4432 = vmatpush.bf16.msra.mxu0 %v3835
        %4433 = vmatpush.bf16.msra.mxu0 %v3829
        %4434 = vmatpush.bf16.msra.mxu0 %v3823
        %4435 = vmatpush.bf16.msra.mxu0 %v3817
        %4436 = vmatpush.bf16.msra.mxu0 %v3811
        %4437 = vmatmul.bf16.gmra.mxu0 %v2591
        %v4438 = vpop.f32.mrf.mxu0
        %v4439 = vadd.f32 %v4426, %v4438
        %v4440 = vpop.f32.mrf.mxu0
        %4441 = vdwg.mxu0
        %4442 = vmatpush.bf16.msra.mxu0 %v3901
        %4443 = vmatpush.bf16.msra.mxu0 %v3895
        %4444 = vmatpush.bf16.msra.mxu0 %v3889
        %4445 = vmatpush.bf16.msra.mxu0 %v3883
        %4446 = vmatpush.bf16.msra.mxu0 %v3877
        %4447 = vmatpush.bf16.msra.mxu0 %v3871
        %4448 = vmatpush.bf16.msra.mxu0 %v3865
        %4449 = vmatpush.bf16.msra.mxu0 %v3859
        %4450 = vmatmul.bf16.gmra.mxu0 %v2592
        %v4451 = vpop.f32.mrf.mxu0
        %v4452 = vadd.f32 %v4439, %v4451
        %v4453 = vpop.f32.mrf.mxu0
        %4454 = vdwg.mxu0
        %4455 = vmatpush.bf16.msra.mxu0 %v3949
        %4456 = vmatpush.bf16.msra.mxu0 %v3943
        %4457 = vmatpush.bf16.msra.mxu0 %v3937
        %4458 = vmatpush.bf16.msra.mxu0 %v3931
        %4459 = vmatpush.bf16.msra.mxu0 %v3925
        %4460 = vmatpush.bf16.msra.mxu0 %v3919
        %4461 = vmatpush.bf16.msra.mxu0 %v3913
        %4462 = vmatpush.bf16.msra.mxu0 %v3907
        %4463 = vmatmul.bf16.gmra.mxu0 %v2593
        %v4464 = vpop.f32.mrf.mxu0
        %v4465 = vadd.f32 %v4452, %v4464
        %v4466 = vpop.f32.mrf.mxu0
        %4467 = vdwg.mxu0
        %4468 = vmatpush.bf16.msra.mxu0 %v3997
        %4469 = vmatpush.bf16.msra.mxu0 %v3991
        %4470 = vmatpush.bf16.msra.mxu0 %v3985
        %4471 = vmatpush.bf16.msra.mxu0 %v3979
        %4472 = vmatpush.bf16.msra.mxu0 %v3973
        %4473 = vmatpush.bf16.msra.mxu0 %v3967
        %4474 = vmatpush.bf16.msra.mxu0 %v3961
        %4475 = vmatpush.bf16.msra.mxu0 %v3955
        %4476 = vmatmul.bf16.gmra.mxu0 %v2594
        %v4477 = vpop.f32.mrf.mxu0
        %v4478 = vadd.f32 %v4465, %v4477
        %v4479 = vpop.f32.mrf.mxu0
        %4480 = vdwg.mxu0
        %4481 = vmatpush.bf16.msra.mxu0 %v4045
        %4482 = vmatpush.bf16.msra.mxu0 %v4039
        %4483 = vmatpush.bf16.msra.mxu0 %v4033
        %4484 = vmatpush.bf16.msra.mxu0 %v4027
        %4485 = vmatpush.bf16.msra.mxu0 %v4021
        %4486 = vmatpush.bf16.msra.mxu0 %v4015
        %4487 = vmatpush.bf16.msra.mxu0 %v4009
        %4488 = vmatpush.bf16.msra.mxu0 %v4003
        %4489 = vmatmul.bf16.gmra.mxu0 %v2595
        %v4490 = vpop.f32.mrf.mxu0
        %v4491 = vadd.f32 %v4478, %v4490
        %v4492 = vpop.f32.mrf.mxu0
        %4493 = vdwg.mxu0
        %4494 = vmatpush.bf16.msra.mxu0 %v3806
        %4495 = vmatpush.bf16.msra.mxu0 %v3800
        %4496 = vmatpush.bf16.msra.mxu0 %v3794
        %4497 = vmatpush.bf16.msra.mxu0 %v3788
        %4498 = vmatpush.bf16.msra.mxu0 %v3782
        %4499 = vmatpush.bf16.msra.mxu0 %v3776
        %4500 = vmatpush.bf16.msra.mxu0 %v3770
        %4501 = vmatpush.bf16.msra.mxu0 %v3764
        %4502 = vmatmul.bf16.gmra.mxu0 %v2590
        %v4503 = vpop.f32.mrf.mxu0
        %v4504 = vadd.f32 %v2888, %v4503
        %v4505 = vpop.f32.mrf.mxu0
        %4506 = vdwg.mxu0
        %4507 = vmatpush.bf16.msra.mxu0 %v3854
        %4508 = vmatpush.bf16.msra.mxu0 %v3848
        %4509 = vmatpush.bf16.msra.mxu0 %v3842
        %4510 = vmatpush.bf16.msra.mxu0 %v3836
        %4511 = vmatpush.bf16.msra.mxu0 %v3830
        %4512 = vmatpush.bf16.msra.mxu0 %v3824
        %4513 = vmatpush.bf16.msra.mxu0 %v3818
        %4514 = vmatpush.bf16.msra.mxu0 %v3812
        %4515 = vmatmul.bf16.gmra.mxu0 %v2591
        %v4516 = vpop.f32.mrf.mxu0
        %v4517 = vadd.f32 %v4504, %v4516
        %v4518 = vpop.f32.mrf.mxu0
        %4519 = vdwg.mxu0
        %4520 = vmatpush.bf16.msra.mxu0 %v3902
        %4521 = vmatpush.bf16.msra.mxu0 %v3896
        %4522 = vmatpush.bf16.msra.mxu0 %v3890
        %4523 = vmatpush.bf16.msra.mxu0 %v3884
        %4524 = vmatpush.bf16.msra.mxu0 %v3878
        %4525 = vmatpush.bf16.msra.mxu0 %v3872
        %4526 = vmatpush.bf16.msra.mxu0 %v3866
        %4527 = vmatpush.bf16.msra.mxu0 %v3860
        %4528 = vmatmul.bf16.gmra.mxu0 %v2592
        %v4529 = vpop.f32.mrf.mxu0
        %v4530 = vadd.f32 %v4517, %v4529
        %v4531 = vpop.f32.mrf.mxu0
        %4532 = vdwg.mxu0
        %4533 = vmatpush.bf16.msra.mxu0 %v3950
        %4534 = vmatpush.bf16.msra.mxu0 %v3944
        %4535 = vmatpush.bf16.msra.mxu0 %v3938
        %4536 = vmatpush.bf16.msra.mxu0 %v3932
        %4537 = vmatpush.bf16.msra.mxu0 %v3926
        %4538 = vmatpush.bf16.msra.mxu0 %v3920
        %4539 = vmatpush.bf16.msra.mxu0 %v3914
        %4540 = vmatpush.bf16.msra.mxu0 %v3908
        %4541 = vmatmul.bf16.gmra.mxu0 %v2593
        %v4542 = vpop.f32.mrf.mxu0
        %v4543 = vadd.f32 %v4530, %v4542
        %v4544 = vpop.f32.mrf.mxu0
        %4545 = vdwg.mxu0
        %4546 = vmatpush.bf16.msra.mxu0 %v3998
        %4547 = vmatpush.bf16.msra.mxu0 %v3992
        %4548 = vmatpush.bf16.msra.mxu0 %v3986
        %4549 = vmatpush.bf16.msra.mxu0 %v3980
        %4550 = vmatpush.bf16.msra.mxu0 %v3974
        %4551 = vmatpush.bf16.msra.mxu0 %v3968
        %4552 = vmatpush.bf16.msra.mxu0 %v3962
        %4553 = vmatpush.bf16.msra.mxu0 %v3956
        %4554 = vmatmul.bf16.gmra.mxu0 %v2594
        %v4555 = vpop.f32.mrf.mxu0
        %v4556 = vadd.f32 %v4543, %v4555
        %v4557 = vpop.f32.mrf.mxu0
        %4558 = vdwg.mxu0
        %4559 = vmatpush.bf16.msra.mxu0 %v4046
        %4560 = vmatpush.bf16.msra.mxu0 %v4040
        %4561 = vmatpush.bf16.msra.mxu0 %v4034
        %4562 = vmatpush.bf16.msra.mxu0 %v4028
        %4563 = vmatpush.bf16.msra.mxu0 %v4022
        %4564 = vmatpush.bf16.msra.mxu0 %v4016
        %4565 = vmatpush.bf16.msra.mxu0 %v4010
        %4566 = vmatpush.bf16.msra.mxu0 %v4004
        %4567 = vmatmul.bf16.gmra.mxu0 %v2595
        %v4568 = vpop.f32.mrf.mxu0
        %v4569 = vadd.f32 %v4556, %v4568
        %v4570 = vpop.f32.mrf.mxu0
        %4571 = vdwg.mxu0
        %4572 = vmatpush.bf16.msra.mxu0 %v3807
        %4573 = vmatpush.bf16.msra.mxu0 %v3801
        %4574 = vmatpush.bf16.msra.mxu0 %v3795
        %4575 = vmatpush.bf16.msra.mxu0 %v3789
        %4576 = vmatpush.bf16.msra.mxu0 %v3783
        %4577 = vmatpush.bf16.msra.mxu0 %v3777
        %4578 = vmatpush.bf16.msra.mxu0 %v3771
        %4579 = vmatpush.bf16.msra.mxu0 %v3765
        %4580 = vmatmul.bf16.gmra.mxu0 %v2590
        %v4581 = vpop.f32.mrf.mxu0
        %v4582 = vadd.f32 %v2889, %v4581
        %v4583 = vpop.f32.mrf.mxu0
        %4584 = vdwg.mxu0
        %4585 = vmatpush.bf16.msra.mxu0 %v3855
        %4586 = vmatpush.bf16.msra.mxu0 %v3849
        %4587 = vmatpush.bf16.msra.mxu0 %v3843
        %4588 = vmatpush.bf16.msra.mxu0 %v3837
        %4589 = vmatpush.bf16.msra.mxu0 %v3831
        %4590 = vmatpush.bf16.msra.mxu0 %v3825
        %4591 = vmatpush.bf16.msra.mxu0 %v3819
        %4592 = vmatpush.bf16.msra.mxu0 %v3813
        %4593 = vmatmul.bf16.gmra.mxu0 %v2591
        %v4594 = vpop.f32.mrf.mxu0
        %v4595 = vadd.f32 %v4582, %v4594
        %v4596 = vpop.f32.mrf.mxu0
        %4597 = vdwg.mxu0
        %4598 = vmatpush.bf16.msra.mxu0 %v3903
        %4599 = vmatpush.bf16.msra.mxu0 %v3897
        %4600 = vmatpush.bf16.msra.mxu0 %v3891
        %4601 = vmatpush.bf16.msra.mxu0 %v3885
        %4602 = vmatpush.bf16.msra.mxu0 %v3879
        %4603 = vmatpush.bf16.msra.mxu0 %v3873
        %4604 = vmatpush.bf16.msra.mxu0 %v3867
        %4605 = vmatpush.bf16.msra.mxu0 %v3861
        %4606 = vmatmul.bf16.gmra.mxu0 %v2592
        %v4607 = vpop.f32.mrf.mxu0
        %v4608 = vadd.f32 %v4595, %v4607
        %v4609 = vpop.f32.mrf.mxu0
        %4610 = vdwg.mxu0
        %4611 = vmatpush.bf16.msra.mxu0 %v3951
        %4612 = vmatpush.bf16.msra.mxu0 %v3945
        %4613 = vmatpush.bf16.msra.mxu0 %v3939
        %4614 = vmatpush.bf16.msra.mxu0 %v3933
        %4615 = vmatpush.bf16.msra.mxu0 %v3927
        %4616 = vmatpush.bf16.msra.mxu0 %v3921
        %4617 = vmatpush.bf16.msra.mxu0 %v3915
        %4618 = vmatpush.bf16.msra.mxu0 %v3909
        %4619 = vmatmul.bf16.gmra.mxu0 %v2593
        %v4620 = vpop.f32.mrf.mxu0
        %v4621 = vadd.f32 %v4608, %v4620
        %v4622 = vpop.f32.mrf.mxu0
        %4623 = vdwg.mxu0
        %4624 = vmatpush.bf16.msra.mxu0 %v3999
        %4625 = vmatpush.bf16.msra.mxu0 %v3993
        %4626 = vmatpush.bf16.msra.mxu0 %v3987
        %4627 = vmatpush.bf16.msra.mxu0 %v3981
        %4628 = vmatpush.bf16.msra.mxu0 %v3975
        %4629 = vmatpush.bf16.msra.mxu0 %v3969
        %4630 = vmatpush.bf16.msra.mxu0 %v3963
        %4631 = vmatpush.bf16.msra.mxu0 %v3957
        %4632 = vmatmul.bf16.gmra.mxu0 %v2594
        %v4633 = vpop.f32.mrf.mxu0
        %v4634 = vadd.f32 %v4621, %v4633
        %v4635 = vpop.f32.mrf.mxu0
        %4636 = vdwg.mxu0
        %4637 = vmatpush.bf16.msra.mxu0 %v4047
        %4638 = vmatpush.bf16.msra.mxu0 %v4041
        %4639 = vmatpush.bf16.msra.mxu0 %v4035
        %4640 = vmatpush.bf16.msra.mxu0 %v4029
        %4641 = vmatpush.bf16.msra.mxu0 %v4023
        %4642 = vmatpush.bf16.msra.mxu0 %v4017
        %4643 = vmatpush.bf16.msra.mxu0 %v4011
        %4644 = vmatpush.bf16.msra.mxu0 %v4005
        %4645 = vmatmul.bf16.gmra.mxu0 %v2595
        %v4646 = vpop.f32.mrf.mxu0
        %v4647 = vadd.f32 %v4634, %v4646
        %v4648 = vpop.f32.mrf.mxu0
        %4649 = vdwg.mxu0
        %4650 = vmatpush.bf16.msra.mxu0 %v3808
        %4651 = vmatpush.bf16.msra.mxu0 %v3802
        %4652 = vmatpush.bf16.msra.mxu0 %v3796
        %4653 = vmatpush.bf16.msra.mxu0 %v3790
        %4654 = vmatpush.bf16.msra.mxu0 %v3784
        %4655 = vmatpush.bf16.msra.mxu0 %v3778
        %4656 = vmatpush.bf16.msra.mxu0 %v3772
        %4657 = vmatpush.bf16.msra.mxu0 %v3766
        %4658 = vmatmul.bf16.gmra.mxu0 %v2590
        %v4659 = vpop.f32.mrf.mxu0
        %v4660 = vadd.f32 %v2890, %v4659
        %v4661 = vpop.f32.mrf.mxu0
        %4662 = vdwg.mxu0
        %4663 = vmatpush.bf16.msra.mxu0 %v3856
        %4664 = vmatpush.bf16.msra.mxu0 %v3850
        %4665 = vmatpush.bf16.msra.mxu0 %v3844
        %4666 = vmatpush.bf16.msra.mxu0 %v3838
        %4667 = vmatpush.bf16.msra.mxu0 %v3832
        %4668 = vmatpush.bf16.msra.mxu0 %v3826
        %4669 = vmatpush.bf16.msra.mxu0 %v3820
        %4670 = vmatpush.bf16.msra.mxu0 %v3814
        %4671 = vmatmul.bf16.gmra.mxu0 %v2591
        %v4672 = vpop.f32.mrf.mxu0
        %v4673 = vadd.f32 %v4660, %v4672
        %v4674 = vpop.f32.mrf.mxu0
        %4675 = vdwg.mxu0
        %4676 = vmatpush.bf16.msra.mxu0 %v3904
        %4677 = vmatpush.bf16.msra.mxu0 %v3898
        %4678 = vmatpush.bf16.msra.mxu0 %v3892
        %4679 = vmatpush.bf16.msra.mxu0 %v3886
        %4680 = vmatpush.bf16.msra.mxu0 %v3880
        %4681 = vmatpush.bf16.msra.mxu0 %v3874
        %4682 = vmatpush.bf16.msra.mxu0 %v3868
        %4683 = vmatpush.bf16.msra.mxu0 %v3862
        %4684 = vmatmul.bf16.gmra.mxu0 %v2592
        %v4685 = vpop.f32.mrf.mxu0
        %v4686 = vadd.f32 %v4673, %v4685
        %v4687 = vpop.f32.mrf.mxu0
        %4688 = vdwg.mxu0
        %4689 = vmatpush.bf16.msra.mxu0 %v3952
        %4690 = vmatpush.bf16.msra.mxu0 %v3946
        %4691 = vmatpush.bf16.msra.mxu0 %v3940
        %4692 = vmatpush.bf16.msra.mxu0 %v3934
        %4693 = vmatpush.bf16.msra.mxu0 %v3928
        %4694 = vmatpush.bf16.msra.mxu0 %v3922
        %4695 = vmatpush.bf16.msra.mxu0 %v3916
        %4696 = vmatpush.bf16.msra.mxu0 %v3910
        %4697 = vmatmul.bf16.gmra.mxu0 %v2593
        %v4698 = vpop.f32.mrf.mxu0
        %v4699 = vadd.f32 %v4686, %v4698
        %v4700 = vpop.f32.mrf.mxu0
        %4701 = vdwg.mxu0
        %4702 = vmatpush.bf16.msra.mxu0 %v4000
        %4703 = vmatpush.bf16.msra.mxu0 %v3994
        %4704 = vmatpush.bf16.msra.mxu0 %v3988
        %4705 = vmatpush.bf16.msra.mxu0 %v3982
        %4706 = vmatpush.bf16.msra.mxu0 %v3976
        %4707 = vmatpush.bf16.msra.mxu0 %v3970
        %4708 = vmatpush.bf16.msra.mxu0 %v3964
        %4709 = vmatpush.bf16.msra.mxu0 %v3958
        %4710 = vmatmul.bf16.gmra.mxu0 %v2594
        %v4711 = vpop.f32.mrf.mxu0
        %v4712 = vadd.f32 %v4699, %v4711
        %v4713 = vpop.f32.mrf.mxu0
        %4714 = vdwg.mxu0
        %4715 = vmatpush.bf16.msra.mxu0 %v4048
        %4716 = vmatpush.bf16.msra.mxu0 %v4042
        %4717 = vmatpush.bf16.msra.mxu0 %v4036
        %4718 = vmatpush.bf16.msra.mxu0 %v4030
        %4719 = vmatpush.bf16.msra.mxu0 %v4024
        %4720 = vmatpush.bf16.msra.mxu0 %v4018
        %4721 = vmatpush.bf16.msra.mxu0 %v4012
        %4722 = vmatpush.bf16.msra.mxu0 %v4006
        %4723 = vmatmul.bf16.gmra.mxu0 %v2595
        %v4724 = vpop.f32.mrf.mxu0
        %v4725 = vadd.f32 %v4712, %v4724
        %v4726 = vpop.f32.mrf.mxu0
        %4727 = vdwg.mxu0
        %4728 = vmatpush.bf16.msra.mxu0 %v3809
        %4729 = vmatpush.bf16.msra.mxu0 %v3803
        %4730 = vmatpush.bf16.msra.mxu0 %v3797
        %4731 = vmatpush.bf16.msra.mxu0 %v3791
        %4732 = vmatpush.bf16.msra.mxu0 %v3785
        %4733 = vmatpush.bf16.msra.mxu0 %v3779
        %4734 = vmatpush.bf16.msra.mxu0 %v3773
        %4735 = vmatpush.bf16.msra.mxu0 %v3767
        %4736 = vmatmul.bf16.gmra.mxu0 %v2590
        %v4737 = vpop.f32.mrf.mxu0
        %v4738 = vadd.f32 %v2891, %v4737
        %v4739 = vpop.f32.mrf.mxu0
        %4740 = vdwg.mxu0
        %4741 = vmatpush.bf16.msra.mxu0 %v3857
        %4742 = vmatpush.bf16.msra.mxu0 %v3851
        %4743 = vmatpush.bf16.msra.mxu0 %v3845
        %4744 = vmatpush.bf16.msra.mxu0 %v3839
        %4745 = vmatpush.bf16.msra.mxu0 %v3833
        %4746 = vmatpush.bf16.msra.mxu0 %v3827
        %4747 = vmatpush.bf16.msra.mxu0 %v3821
        %4748 = vmatpush.bf16.msra.mxu0 %v3815
        %4749 = vmatmul.bf16.gmra.mxu0 %v2591
        %v4750 = vpop.f32.mrf.mxu0
        %v4751 = vadd.f32 %v4738, %v4750
        %v4752 = vpop.f32.mrf.mxu0
        %4753 = vdwg.mxu0
        %4754 = vmatpush.bf16.msra.mxu0 %v3905
        %4755 = vmatpush.bf16.msra.mxu0 %v3899
        %4756 = vmatpush.bf16.msra.mxu0 %v3893
        %4757 = vmatpush.bf16.msra.mxu0 %v3887
        %4758 = vmatpush.bf16.msra.mxu0 %v3881
        %4759 = vmatpush.bf16.msra.mxu0 %v3875
        %4760 = vmatpush.bf16.msra.mxu0 %v3869
        %4761 = vmatpush.bf16.msra.mxu0 %v3863
        %4762 = vmatmul.bf16.gmra.mxu0 %v2592
        %v4763 = vpop.f32.mrf.mxu0
        %v4764 = vadd.f32 %v4751, %v4763
        %v4765 = vpop.f32.mrf.mxu0
        %4766 = vdwg.mxu0
        %4767 = vmatpush.bf16.msra.mxu0 %v3953
        %4768 = vmatpush.bf16.msra.mxu0 %v3947
        %4769 = vmatpush.bf16.msra.mxu0 %v3941
        %4770 = vmatpush.bf16.msra.mxu0 %v3935
        %4771 = vmatpush.bf16.msra.mxu0 %v3929
        %4772 = vmatpush.bf16.msra.mxu0 %v3923
        %4773 = vmatpush.bf16.msra.mxu0 %v3917
        %4774 = vmatpush.bf16.msra.mxu0 %v3911
        %4775 = vmatmul.bf16.gmra.mxu0 %v2593
        %v4776 = vpop.f32.mrf.mxu0
        %v4777 = vadd.f32 %v4764, %v4776
        %v4778 = vpop.f32.mrf.mxu0
        %4779 = vdwg.mxu0
        %4780 = vmatpush.bf16.msra.mxu0 %v4001
        %4781 = vmatpush.bf16.msra.mxu0 %v3995
        %4782 = vmatpush.bf16.msra.mxu0 %v3989
        %4783 = vmatpush.bf16.msra.mxu0 %v3983
        %4784 = vmatpush.bf16.msra.mxu0 %v3977
        %4785 = vmatpush.bf16.msra.mxu0 %v3971
        %4786 = vmatpush.bf16.msra.mxu0 %v3965
        %4787 = vmatpush.bf16.msra.mxu0 %v3959
        %4788 = vmatmul.bf16.gmra.mxu0 %v2594
        %v4789 = vpop.f32.mrf.mxu0
        %v4790 = vadd.f32 %v4777, %v4789
        %v4791 = vpop.f32.mrf.mxu0
        %4792 = vdwg.mxu0
        %4793 = vmatpush.bf16.msra.mxu0 %v4049
        %4794 = vmatpush.bf16.msra.mxu0 %v4043
        %4795 = vmatpush.bf16.msra.mxu0 %v4037
        %4796 = vmatpush.bf16.msra.mxu0 %v4031
        %4797 = vmatpush.bf16.msra.mxu0 %v4025
        %4798 = vmatpush.bf16.msra.mxu0 %v4019
        %4799 = vmatpush.bf16.msra.mxu0 %v4013
        %4800 = vmatpush.bf16.msra.mxu0 %v4007
        %4801 = vmatmul.bf16.gmra.mxu0 %v2595
        %v4802 = vpop.f32.mrf.mxu0
        %v4803 = vadd.f32 %v4790, %v4802
        %v4804 = vpop.f32.mrf.mxu0
        %4805 = vdwg.mxu0
        %v4806 = vtanh.pop %v4413
        %v4807 = vtanh.pop %v4491
        %v4808 = vtanh.pop %v4569
        %v4809 = vtanh.pop %v4647
        %v4810 = vtanh.pop %v4725
        %v4811 = vtanh.pop %v4803
        %v4812 = vpack.c.bf16 %v4806, %v4806
        %v4813 = vpack.c.bf16 %v4807, %v4807
        %v4814 = vpack.c.bf16 %v4808, %v4808
        %v4815 = vpack.c.bf16 %v4809, %v4809
        %v4816 = vpack.c.bf16 %v4810, %v4810
        %v4817 = vpack.c.bf16 %v4811, %v4811
        %v4818 = vld [vmem:[#allocation11] sm:$0xff]
        %v4819 = vld [vmem:[#allocation11 + $0x8] sm:$0xff]
        %v4820 = vld [vmem:[#allocation11 + $0x10] sm:$0xff]
        %v4821 = vld [vmem:[#allocation11 + $0x18] sm:$0xff]
        %v4822 = vld [vmem:[#allocation11 + $0x20] sm:$0xff]
        %v4823 = vld [vmem:[#allocation11 + $0x28] sm:$0xff]
        %v4824 = vld [vmem:[#allocation11 + $0x30] sm:$0xff]
        %v4825 = vld [vmem:[#allocation11 + $0x38] sm:$0xff]
        %v4826 = vld [vmem:[#allocation11 + $0x40] sm:$0xff]
        %v4827 = vld [vmem:[#allocation11 + $0x48] sm:$0xff]
        %v4828 = vld [vmem:[#allocation11 + $0x50] sm:$0xff]
        %v4829 = vld [vmem:[#allocation11 + $0x58] sm:$0xff]
        %v4830 = vld [vmem:[#allocation11 + $0x60] sm:$0xff]
        %v4831 = vld [vmem:[#allocation11 + $0x68] sm:$0xff]
        %v4832 = vld [vmem:[#allocation11 + $0x70] sm:$0xff]
        %v4833 = vld [vmem:[#allocation11 + $0x78] sm:$0xff]
        %v4834 = vld [vmem:[#allocation11 + $0x80] sm:$0xff]
        %v4835 = vld [vmem:[#allocation11 + $0x88] sm:$0xff]
        %v4836 = vld [vmem:[#allocation11 + $0x90] sm:$0xff]
        %v4837 = vld [vmem:[#allocation11 + $0x98] sm:$0xff]
        %v4838 = vld [vmem:[#allocation11 + $0xa0] sm:$0xff]
        %v4839 = vld [vmem:[#allocation11 + $0xa8] sm:$0xff]
        %v4840 = vld [vmem:[#allocation11 + $0xb0] sm:$0xff]
        %v4841 = vld [vmem:[#allocation11 + $0xb8] sm:$0xff]
        %v4842 = vld [vmem:[#allocation11 + $0xc0] sm:$0xff]
        %v4843 = vld [vmem:[#allocation11 + $0xc8] sm:$0xff]
        %v4844 = vld [vmem:[#allocation11 + $0xd0] sm:$0xff]
        %v4845 = vld [vmem:[#allocation11 + $0xd8] sm:$0xff]
        %v4846 = vld [vmem:[#allocation11 + $0xe0] sm:$0xff]
        %v4847 = vld [vmem:[#allocation11 + $0xe8] sm:$0xff]
        %v4848 = vld [vmem:[#allocation11 + $0xf0] sm:$0xff]
        %v4849 = vld [vmem:[#allocation11 + $0xf8] sm:$0xff]
        %v4850 = vld [vmem:[#allocation11 + $0x100] sm:$0xff]
        %v4851 = vld [vmem:[#allocation11 + $0x108] sm:$0xff]
        %v4852 = vld [vmem:[#allocation11 + $0x110] sm:$0xff]
        %v4853 = vld [vmem:[#allocation11 + $0x118] sm:$0xff]
        %v4854 = vld [vmem:[#allocation11 + $0x120] sm:$0xff]
        %v4855 = vld [vmem:[#allocation11 + $0x128] sm:$0xff]
        %v4856 = vld [vmem:[#allocation11 + $0x130] sm:$0xff]
        %v4857 = vld [vmem:[#allocation11 + $0x138] sm:$0xff]
        %v4858 = vld [vmem:[#allocation11 + $0x140] sm:$0xff]
        %v4859 = vld [vmem:[#allocation11 + $0x148] sm:$0xff]
        %v4860 = vld [vmem:[#allocation11 + $0x150] sm:$0xff]
        %v4861 = vld [vmem:[#allocation11 + $0x158] sm:$0xff]
        %v4862 = vld [vmem:[#allocation11 + $0x160] sm:$0xff]
        %v4863 = vld [vmem:[#allocation11 + $0x168] sm:$0xff]
        %v4864 = vld [vmem:[#allocation11 + $0x170] sm:$0xff]
        %v4865 = vld [vmem:[#allocation11 + $0x178] sm:$0xff]
        %v4866 = vld [vmem:[#allocation11 + $0x180] sm:$0xff]
        %v4867 = vld [vmem:[#allocation11 + $0x188] sm:$0xff]
        %v4868 = vld [vmem:[#allocation11 + $0x190] sm:$0xff]
        %v4869 = vld [vmem:[#allocation11 + $0x198] sm:$0xff]
        %v4870 = vld [vmem:[#allocation11 + $0x1a0] sm:$0xff]
        %v4871 = vld [vmem:[#allocation11 + $0x1a8] sm:$0xff]
        %v4872 = vld [vmem:[#allocation11 + $0x1b0] sm:$0xff]
        %v4873 = vld [vmem:[#allocation11 + $0x1b8] sm:$0xff]
        %v4874 = vld [vmem:[#allocation11 + $0x1c0] sm:$0xff]
        %v4875 = vld [vmem:[#allocation11 + $0x1c8] sm:$0xff]
        %v4876 = vld [vmem:[#allocation11 + $0x1d0] sm:$0xff]
        %v4877 = vld [vmem:[#allocation11 + $0x1d8] sm:$0xff]
        %v4878 = vld [vmem:[#allocation11 + $0x1e0] sm:$0xff]
        %v4879 = vld [vmem:[#allocation11 + $0x1e8] sm:$0xff]
        %v4880 = vld [vmem:[#allocation11 + $0x1f0] sm:$0xff]
        %v4881 = vld [vmem:[#allocation11 + $0x1f8] sm:$0xff]
        %v4882 = vld [vmem:[#allocation11 + $0x200] sm:$0xff]
        %v4883 = vld [vmem:[#allocation11 + $0x208] sm:$0xff]
        %v4884 = vld [vmem:[#allocation11 + $0x210] sm:$0xff]
        %v4885 = vld [vmem:[#allocation11 + $0x218] sm:$0xff]
        %v4886 = vld [vmem:[#allocation11 + $0x220] sm:$0xff]
        %v4887 = vld [vmem:[#allocation11 + $0x228] sm:$0xff]
        %v4888 = vld [vmem:[#allocation11 + $0x230] sm:$0xff]
        %v4889 = vld [vmem:[#allocation11 + $0x238] sm:$0xff]
        %v4890 = vld [vmem:[#allocation11 + $0x240] sm:$0xff]
        %v4891 = vld [vmem:[#allocation11 + $0x248] sm:$0xff]
        %v4892 = vld [vmem:[#allocation11 + $0x250] sm:$0xff]
        %v4893 = vld [vmem:[#allocation11 + $0x258] sm:$0xff]
        %v4894 = vld [vmem:[#allocation11 + $0x260] sm:$0xff]
        %v4895 = vld [vmem:[#allocation11 + $0x268] sm:$0xff]
        %v4896 = vld [vmem:[#allocation11 + $0x270] sm:$0xff]
        %v4897 = vld [vmem:[#allocation11 + $0x278] sm:$0xff]
        %v4898 = vld [vmem:[#allocation11 + $0x280] sm:$0xff]
        %v4899 = vld [vmem:[#allocation11 + $0x288] sm:$0xff]
        %v4900 = vld [vmem:[#allocation11 + $0x290] sm:$0xff]
        %v4901 = vld [vmem:[#allocation11 + $0x298] sm:$0xff]
        %v4902 = vld [vmem:[#allocation11 + $0x2a0] sm:$0xff]
        %v4903 = vld [vmem:[#allocation11 + $0x2a8] sm:$0xff]
        %v4904 = vld [vmem:[#allocation11 + $0x2b0] sm:$0xff]
        %v4905 = vld [vmem:[#allocation11 + $0x2b8] sm:$0xff]
        %v4906 = vld [vmem:[#allocation11 + $0x2c0] sm:$0xff]
        %v4907 = vld [vmem:[#allocation11 + $0x2c8] sm:$0xff]
        %v4908 = vld [vmem:[#allocation11 + $0x2d0] sm:$0xff]
        %v4909 = vld [vmem:[#allocation11 + $0x2d8] sm:$0xff]
        %v4910 = vld [vmem:[#allocation11 + $0x2e0] sm:$0xff]
        %v4911 = vld [vmem:[#allocation11 + $0x2e8] sm:$0xff]
        %v4912 = vld [vmem:[#allocation11 + $0x2f0] sm:$0xff]
        %v4913 = vld [vmem:[#allocation11 + $0x2f8] sm:$0xff]
        %v4914 = vld [vmem:[#allocation13] sm:$0x3]
        %v4916 = vperm.slane %v4914, 0
        %v4917 = vperm.slane %v4914, 1
        %v5016 = vunpack.c.l.b16 %v4818
        %v5017 = vunpack.c.h.b16 %v4818
        %v5018 = vunpack.c.l.b16 %v4819
        %v5019 = vunpack.c.h.b16 %v4819
        %v5020 = vunpack.c.l.b16 %v4820
        %v5021 = vunpack.c.h.b16 %v4820
        %v5022 = vunpack.c.l.b16 %v4821
        %v5023 = vunpack.c.h.b16 %v4821
        %v5024 = vunpack.c.l.b16 %v4822
        %v5025 = vunpack.c.h.b16 %v4822
        %v5026 = vunpack.c.l.b16 %v4823
        %v5027 = vunpack.c.h.b16 %v4823
        %v5028 = vunpack.c.l.b16 %v4824
        %v5029 = vunpack.c.h.b16 %v4824
        %v5030 = vunpack.c.l.b16 %v4825
        %v5031 = vunpack.c.h.b16 %v4825
        %v5032 = vunpack.c.l.b16 %v4826
        %v5033 = vunpack.c.h.b16 %v4826
        %v5034 = vunpack.c.l.b16 %v4827
        %v5035 = vunpack.c.h.b16 %v4827
        %v5036 = vunpack.c.l.b16 %v4828
        %v5037 = vunpack.c.h.b16 %v4828
        %v5038 = vunpack.c.l.b16 %v4829
        %v5039 = vunpack.c.h.b16 %v4829
        %v5040 = vunpack.c.l.b16 %v4830
        %v5041 = vunpack.c.h.b16 %v4830
        %v5042 = vunpack.c.l.b16 %v4831
        %v5043 = vunpack.c.h.b16 %v4831
        %v5044 = vunpack.c.l.b16 %v4832
        %v5045 = vunpack.c.h.b16 %v4832
        %v5046 = vunpack.c.l.b16 %v4833
        %v5047 = vunpack.c.h.b16 %v4833
        %v5048 = vunpack.c.l.b16 %v4834
        %v5049 = vunpack.c.h.b16 %v4834
        %v5050 = vunpack.c.l.b16 %v4835
        %v5051 = vunpack.c.h.b16 %v4835
        %v5052 = vunpack.c.l.b16 %v4836
        %v5053 = vunpack.c.h.b16 %v4836
        %v5054 = vunpack.c.l.b16 %v4837
        %v5055 = vunpack.c.h.b16 %v4837
        %v5056 = vunpack.c.l.b16 %v4838
        %v5057 = vunpack.c.h.b16 %v4838
        %v5058 = vunpack.c.l.b16 %v4839
        %v5059 = vunpack.c.h.b16 %v4839
        %v5060 = vunpack.c.l.b16 %v4840
        %v5061 = vunpack.c.h.b16 %v4840
        %v5062 = vunpack.c.l.b16 %v4841
        %v5063 = vunpack.c.h.b16 %v4841
        %v5064 = vunpack.c.l.b16 %v4842
        %v5065 = vunpack.c.h.b16 %v4842
        %v5066 = vunpack.c.l.b16 %v4843
        %v5067 = vunpack.c.h.b16 %v4843
        %v5068 = vunpack.c.l.b16 %v4844
        %v5069 = vunpack.c.h.b16 %v4844
        %v5070 = vunpack.c.l.b16 %v4845
        %v5071 = vunpack.c.h.b16 %v4845
        %v5072 = vunpack.c.l.b16 %v4846
        %v5073 = vunpack.c.h.b16 %v4846
        %v5074 = vunpack.c.l.b16 %v4847
        %v5075 = vunpack.c.h.b16 %v4847
        %v5076 = vunpack.c.l.b16 %v4848
        %v5077 = vunpack.c.h.b16 %v4848
        %v5078 = vunpack.c.l.b16 %v4849
        %v5079 = vunpack.c.h.b16 %v4849
        %v5080 = vunpack.c.l.b16 %v4850
        %v5081 = vunpack.c.h.b16 %v4850
        %v5082 = vunpack.c.l.b16 %v4851
        %v5083 = vunpack.c.h.b16 %v4851
        %v5084 = vunpack.c.l.b16 %v4852
        %v5085 = vunpack.c.h.b16 %v4852
        %v5086 = vunpack.c.l.b16 %v4853
        %v5087 = vunpack.c.h.b16 %v4853
        %v5088 = vunpack.c.l.b16 %v4854
        %v5089 = vunpack.c.h.b16 %v4854
        %v5090 = vunpack.c.l.b16 %v4855
        %v5091 = vunpack.c.h.b16 %v4855
        %v5092 = vunpack.c.l.b16 %v4856
        %v5093 = vunpack.c.h.b16 %v4856
        %v5094 = vunpack.c.l.b16 %v4857
        %v5095 = vunpack.c.h.b16 %v4857
        %v5096 = vunpack.c.l.b16 %v4858
        %v5097 = vunpack.c.h.b16 %v4858
        %v5098 = vunpack.c.l.b16 %v4859
        %v5099 = vunpack.c.h.b16 %v4859
        %v5100 = vunpack.c.l.b16 %v4860
        %v5101 = vunpack.c.h.b16 %v4860
        %v5102 = vunpack.c.l.b16 %v4861
        %v5103 = vunpack.c.h.b16 %v4861
        %v5104 = vunpack.c.l.b16 %v4862
        %v5105 = vunpack.c.h.b16 %v4862
        %v5106 = vunpack.c.l.b16 %v4863
        %v5107 = vunpack.c.h.b16 %v4863
        %v5108 = vunpack.c.l.b16 %v4864
        %v5109 = vunpack.c.h.b16 %v4864
        %v5110 = vunpack.c.l.b16 %v4865
        %v5111 = vunpack.c.h.b16 %v4865
        %v5112 = vunpack.c.l.b16 %v4866
        %v5113 = vunpack.c.h.b16 %v4866
        %v5114 = vunpack.c.l.b16 %v4867
        %v5115 = vunpack.c.h.b16 %v4867
        %v5116 = vunpack.c.l.b16 %v4868
        %v5117 = vunpack.c.h.b16 %v4868
        %v5118 = vunpack.c.l.b16 %v4869
        %v5119 = vunpack.c.h.b16 %v4869
        %v5120 = vunpack.c.l.b16 %v4870
        %v5121 = vunpack.c.h.b16 %v4870
        %v5122 = vunpack.c.l.b16 %v4871
        %v5123 = vunpack.c.h.b16 %v4871
        %v5124 = vunpack.c.l.b16 %v4872
        %v5125 = vunpack.c.h.b16 %v4872
        %v5126 = vunpack.c.l.b16 %v4873
        %v5127 = vunpack.c.h.b16 %v4873
        %v5128 = vunpack.c.l.b16 %v4874
        %v5129 = vunpack.c.h.b16 %v4874
        %v5130 = vunpack.c.l.b16 %v4875
        %v5131 = vunpack.c.h.b16 %v4875
        %v5132 = vunpack.c.l.b16 %v4876
        %v5133 = vunpack.c.h.b16 %v4876
        %v5134 = vunpack.c.l.b16 %v4877
        %v5135 = vunpack.c.h.b16 %v4877
        %v5136 = vunpack.c.l.b16 %v4878
        %v5137 = vunpack.c.h.b16 %v4878
        %v5138 = vunpack.c.l.b16 %v4879
        %v5139 = vunpack.c.h.b16 %v4879
        %v5140 = vunpack.c.l.b16 %v4880
        %v5141 = vunpack.c.h.b16 %v4880
        %v5142 = vunpack.c.l.b16 %v4881
        %v5143 = vunpack.c.h.b16 %v4881
        %v5144 = vunpack.c.l.b16 %v4882
        %v5145 = vunpack.c.h.b16 %v4882
        %v5146 = vunpack.c.l.b16 %v4883
        %v5147 = vunpack.c.h.b16 %v4883
        %v5148 = vunpack.c.l.b16 %v4884
        %v5149 = vunpack.c.h.b16 %v4884
        %v5150 = vunpack.c.l.b16 %v4885
        %v5151 = vunpack.c.h.b16 %v4885
        %v5152 = vunpack.c.l.b16 %v4886
        %v5153 = vunpack.c.h.b16 %v4886
        %v5154 = vunpack.c.l.b16 %v4887
        %v5155 = vunpack.c.h.b16 %v4887
        %v5156 = vunpack.c.l.b16 %v4888
        %v5157 = vunpack.c.h.b16 %v4888
        %v5158 = vunpack.c.l.b16 %v4889
        %v5159 = vunpack.c.h.b16 %v4889
        %v5160 = vunpack.c.l.b16 %v4890
        %v5161 = vunpack.c.h.b16 %v4890
        %v5162 = vunpack.c.l.b16 %v4891
        %v5163 = vunpack.c.h.b16 %v4891
        %v5164 = vunpack.c.l.b16 %v4892
        %v5165 = vunpack.c.h.b16 %v4892
        %v5166 = vunpack.c.l.b16 %v4893
        %v5167 = vunpack.c.h.b16 %v4893
        %v5168 = vunpack.c.l.b16 %v4894
        %v5169 = vunpack.c.h.b16 %v4894
        %v5170 = vunpack.c.l.b16 %v4895
        %v5171 = vunpack.c.h.b16 %v4895
        %v5172 = vunpack.c.l.b16 %v4896
        %v5173 = vunpack.c.h.b16 %v4896
        %v5174 = vunpack.c.l.b16 %v4897
        %v5175 = vunpack.c.h.b16 %v4897
        %v5176 = vunpack.c.l.b16 %v4898
        %v5177 = vunpack.c.h.b16 %v4898
        %v5178 = vunpack.c.l.b16 %v4899
        %v5179 = vunpack.c.h.b16 %v4899
        %v5180 = vunpack.c.l.b16 %v4900
        %v5181 = vunpack.c.h.b16 %v4900
        %v5182 = vunpack.c.l.b16 %v4901
        %v5183 = vunpack.c.h.b16 %v4901
        %v5184 = vunpack.c.l.b16 %v4902
        %v5185 = vunpack.c.h.b16 %v4902
        %v5186 = vunpack.c.l.b16 %v4903
        %v5187 = vunpack.c.h.b16 %v4903
        %v5188 = vunpack.c.l.b16 %v4904
        %v5189 = vunpack.c.h.b16 %v4904
        %v5190 = vunpack.c.l.b16 %v4905
        %v5191 = vunpack.c.h.b16 %v4905
        %v5192 = vunpack.c.l.b16 %v4906
        %v5193 = vunpack.c.h.b16 %v4906
        %v5194 = vunpack.c.l.b16 %v4907
        %v5195 = vunpack.c.h.b16 %v4907
        %v5196 = vunpack.c.l.b16 %v4908
        %v5197 = vunpack.c.h.b16 %v4908
        %v5198 = vunpack.c.l.b16 %v4909
        %v5199 = vunpack.c.h.b16 %v4909
        %v5200 = vunpack.c.l.b16 %v4910
        %v5201 = vunpack.c.h.b16 %v4910
        %v5202 = vunpack.c.l.b16 %v4911
        %v5203 = vunpack.c.h.b16 %v4911
        %v5204 = vunpack.c.l.b16 %v4912
        %v5205 = vunpack.c.h.b16 %v4912
        %v5206 = vunpack.c.l.b16 %v4913
        %v5207 = vunpack.c.h.b16 %v4913
        %v5208 = vpack.c.b16 %v5018, %v5016
        %v5209 = vpack.c.b16 %v5019, %v5017
        %v5210 = vpack.c.b16 %v5022, %v5020
        %v5211 = vpack.c.b16 %v5023, %v5021
        %v5212 = vpack.c.b16 %v5026, %v5024
        %v5213 = vpack.c.b16 %v5027, %v5025
        %v5214 = vpack.c.b16 %v5030, %v5028
        %v5215 = vpack.c.b16 %v5031, %v5029
        %v5216 = vpack.c.b16 %v5034, %v5032
        %v5217 = vpack.c.b16 %v5035, %v5033
        %v5218 = vpack.c.b16 %v5038, %v5036
        %v5219 = vpack.c.b16 %v5039, %v5037
        %v5220 = vpack.c.b16 %v5042, %v5040
        %v5221 = vpack.c.b16 %v5043, %v5041
        %v5222 = vpack.c.b16 %v5046, %v5044
        %v5223 = vpack.c.b16 %v5047, %v5045
        %v5224 = vpack.c.b16 %v5050, %v5048
        %v5225 = vpack.c.b16 %v5051, %v5049
        %v5226 = vpack.c.b16 %v5054, %v5052
        %v5227 = vpack.c.b16 %v5055, %v5053
        %v5228 = vpack.c.b16 %v5058, %v5056
        %v5229 = vpack.c.b16 %v5059, %v5057
        %v5230 = vpack.c.b16 %v5062, %v5060
        %v5231 = vpack.c.b16 %v5063, %v5061
        %v5232 = vpack.c.b16 %v5066, %v5064
        %v5233 = vpack.c.b16 %v5067, %v5065
        %v5234 = vpack.c.b16 %v5070, %v5068
        %v5235 = vpack.c.b16 %v5071, %v5069
        %v5236 = vpack.c.b16 %v5074, %v5072
        %v5237 = vpack.c.b16 %v5075, %v5073
        %v5238 = vpack.c.b16 %v5078, %v5076
        %v5239 = vpack.c.b16 %v5079, %v5077
        %v5240 = vpack.c.b16 %v5082, %v5080
        %v5241 = vpack.c.b16 %v5083, %v5081
        %v5242 = vpack.c.b16 %v5086, %v5084
        %v5243 = vpack.c.b16 %v5087, %v5085
        %v5244 = vpack.c.b16 %v5090, %v5088
        %v5245 = vpack.c.b16 %v5091, %v5089
        %v5246 = vpack.c.b16 %v5094, %v5092
        %v5247 = vpack.c.b16 %v5095, %v5093
        %v5248 = vpack.c.b16 %v5098, %v5096
        %v5249 = vpack.c.b16 %v5099, %v5097
        %v5250 = vpack.c.b16 %v5102, %v5100
        %v5251 = vpack.c.b16 %v5103, %v5101
        %v5252 = vpack.c.b16 %v5106, %v5104
        %v5253 = vpack.c.b16 %v5107, %v5105
        %v5254 = vpack.c.b16 %v5110, %v5108
        %v5255 = vpack.c.b16 %v5111, %v5109
        %v5256 = vpack.c.b16 %v5114, %v5112
        %v5257 = vpack.c.b16 %v5115, %v5113
        %v5258 = vpack.c.b16 %v5118, %v5116
        %v5259 = vpack.c.b16 %v5119, %v5117
        %v5260 = vpack.c.b16 %v5122, %v5120
        %v5261 = vpack.c.b16 %v5123, %v5121
        %v5262 = vpack.c.b16 %v5126, %v5124
        %v5263 = vpack.c.b16 %v5127, %v5125
        %v5264 = vpack.c.b16 %v5130, %v5128
        %v5265 = vpack.c.b16 %v5131, %v5129
        %v5266 = vpack.c.b16 %v5134, %v5132
        %v5267 = vpack.c.b16 %v5135, %v5133
        %v5268 = vpack.c.b16 %v5138, %v5136
        %v5269 = vpack.c.b16 %v5139, %v5137
        %v5270 = vpack.c.b16 %v5142, %v5140
        %v5271 = vpack.c.b16 %v5143, %v5141
        %v5272 = vpack.c.b16 %v5146, %v5144
        %v5273 = vpack.c.b16 %v5147, %v5145
        %v5274 = vpack.c.b16 %v5150, %v5148
        %v5275 = vpack.c.b16 %v5151, %v5149
        %v5276 = vpack.c.b16 %v5154, %v5152
        %v5277 = vpack.c.b16 %v5155, %v5153
        %v5278 = vpack.c.b16 %v5158, %v5156
        %v5279 = vpack.c.b16 %v5159, %v5157
        %v5280 = vpack.c.b16 %v5162, %v5160
        %v5281 = vpack.c.b16 %v5163, %v5161
        %v5282 = vpack.c.b16 %v5166, %v5164
        %v5283 = vpack.c.b16 %v5167, %v5165
        %v5284 = vpack.c.b16 %v5170, %v5168
        %v5285 = vpack.c.b16 %v5171, %v5169
        %v5286 = vpack.c.b16 %v5174, %v5172
        %v5287 = vpack.c.b16 %v5175, %v5173
        %v5288 = vpack.c.b16 %v5178, %v5176
        %v5289 = vpack.c.b16 %v5179, %v5177
        %v5290 = vpack.c.b16 %v5182, %v5180
        %v5291 = vpack.c.b16 %v5183, %v5181
        %v5292 = vpack.c.b16 %v5186, %v5184
        %v5293 = vpack.c.b16 %v5187, %v5185
        %v5294 = vpack.c.b16 %v5190, %v5188
        %v5295 = vpack.c.b16 %v5191, %v5189
        %v5296 = vpack.c.b16 %v5194, %v5192
        %v5297 = vpack.c.b16 %v5195, %v5193
        %v5298 = vpack.c.b16 %v5198, %v5196
        %v5299 = vpack.c.b16 %v5199, %v5197
        %v5300 = vpack.c.b16 %v5202, %v5200
        %v5301 = vpack.c.b16 %v5203, %v5201
        %v5302 = vpack.c.b16 %v5206, %v5204
        %v5303 = vpack.c.b16 %v5207, %v5205
        %5400 = vmatpush.bf16.msra.mxu0 %v5222
        %5401 = vmatpush.bf16.msra.mxu0 %v5220
        %5402 = vmatpush.bf16.msra.mxu0 %v5218
        %5403 = vmatpush.bf16.msra.mxu0 %v5216
        %5404 = vmatpush.bf16.msra.mxu0 %v5214
        %5405 = vmatpush.bf16.msra.mxu0 %v5212
        %5406 = vmatpush.bf16.msra.mxu0 %v5210
        %5407 = vmatpush.bf16.msra.mxu0 %v5208
        %5408 = vmatmul.bf16.gmra.mxu0 %v4812
        %v5409 = vpop.f32.mrf.mxu0
        %v5410 = vadd.f32 %v4916, %v5409
        %v5411 = vpop.f32.mrf.mxu0
        %5412 = vdwg.mxu0
        %5413 = vmatpush.bf16.msra.mxu0 %v5238
        %5414 = vmatpush.bf16.msra.mxu0 %v5236
        %5415 = vmatpush.bf16.msra.mxu0 %v5234
        %5416 = vmatpush.bf16.msra.mxu0 %v5232
        %5417 = vmatpush.bf16.msra.mxu0 %v5230
        %5418 = vmatpush.bf16.msra.mxu0 %v5228
        %5419 = vmatpush.bf16.msra.mxu0 %v5226
        %5420 = vmatpush.bf16.msra.mxu0 %v5224
        %5421 = vmatmul.bf16.gmra.mxu0 %v4813
        %v5422 = vpop.f32.mrf.mxu0
        %v5423 = vadd.f32 %v5410, %v5422
        %v5424 = vpop.f32.mrf.mxu0
        %5425 = vdwg.mxu0
        %5426 = vmatpush.bf16.msra.mxu0 %v5254
        %5427 = vmatpush.bf16.msra.mxu0 %v5252
        %5428 = vmatpush.bf16.msra.mxu0 %v5250
        %5429 = vmatpush.bf16.msra.mxu0 %v5248
        %5430 = vmatpush.bf16.msra.mxu0 %v5246
        %5431 = vmatpush.bf16.msra.mxu0 %v5244
        %5432 = vmatpush.bf16.msra.mxu0 %v5242
        %5433 = vmatpush.bf16.msra.mxu0 %v5240
        %5434 = vmatmul.bf16.gmra.mxu0 %v4814
        %v5435 = vpop.f32.mrf.mxu0
        %v5436 = vadd.f32 %v5423, %v5435
        %v5437 = vpop.f32.mrf.mxu0
        %5438 = vdwg.mxu0
        %5439 = vmatpush.bf16.msra.mxu0 %v5270
        %5440 = vmatpush.bf16.msra.mxu0 %v5268
        %5441 = vmatpush.bf16.msra.mxu0 %v5266
        %5442 = vmatpush.bf16.msra.mxu0 %v5264
        %5443 = vmatpush.bf16.msra.mxu0 %v5262
        %5444 = vmatpush.bf16.msra.mxu0 %v5260
        %5445 = vmatpush.bf16.msra.mxu0 %v5258
        %5446 = vmatpush.bf16.msra.mxu0 %v5256
        %5447 = vmatmul.bf16.gmra.mxu0 %v4815
        %v5448 = vpop.f32.mrf.mxu0
        %v5449 = vadd.f32 %v5436, %v5448
        %v5450 = vpop.f32.mrf.mxu0
        %5451 = vdwg.mxu0
        %5452 = vmatpush.bf16.msra.mxu0 %v5286
        %5453 = vmatpush.bf16.msra.mxu0 %v5284
        %5454 = vmatpush.bf16.msra.mxu0 %v5282
        %5455 = vmatpush.bf16.msra.mxu0 %v5280
        %5456 = vmatpush.bf16.msra.mxu0 %v5278
        %5457 = vmatpush.bf16.msra.mxu0 %v5276
        %5458 = vmatpush.bf16.msra.mxu0 %v5274
        %5459 = vmatpush.bf16.msra.mxu0 %v5272
        %5460 = vmatmul.bf16.gmra.mxu0 %v4816
        %v5461 = vpop.f32.mrf.mxu0
        %v5462 = vadd.f32 %v5449, %v5461
        %v5463 = vpop.f32.mrf.mxu0
        %5464 = vdwg.mxu0
        %5465 = vmatpush.bf16.msra.mxu0 %v5302
        %5466 = vmatpush.bf16.msra.mxu0 %v5300
        %5467 = vmatpush.bf16.msra.mxu0 %v5298
        %5468 = vmatpush.bf16.msra.mxu0 %v5296
        %5469 = vmatpush.bf16.msra.mxu0 %v5294
        %5470 = vmatpush.bf16.msra.mxu0 %v5292
        %5471 = vmatpush.bf16.msra.mxu0 %v5290
        %5472 = vmatpush.bf16.msra.mxu0 %v5288
        %5473 = vmatmul.bf16.gmra.mxu0 %v4817
        %v5474 = vpop.f32.mrf.mxu0
        %v5475 = vadd.f32 %v5462, %v5474
        %v5476 = vpop.f32.mrf.mxu0
        %5477 = vdwg.mxu0
        %5478 = vmatpush.bf16.msra.mxu0 %v5223
        %5479 = vmatpush.bf16.msra.mxu0 %v5221
        %5480 = vmatpush.bf16.msra.mxu0 %v5219
        %5481 = vmatpush.bf16.msra.mxu0 %v5217
        %5482 = vmatpush.bf16.msra.mxu0 %v5215
        %5483 = vmatpush.bf16.msra.mxu0 %v5213
        %5484 = vmatpush.bf16.msra.mxu0 %v5211
        %5485 = vmatpush.bf16.msra.mxu0 %v5209
        %5486 = vmatmul.bf16.gmra.mxu0 %v4812
        %v5487 = vpop.f32.mrf.mxu0
        %v5488 = vadd.f32 %v4917, %v5487
        %v5489 = vpop.f32.mrf.mxu0
        %5490 = vdwg.mxu0
        %5491 = vmatpush.bf16.msra.mxu0 %v5239
        %5492 = vmatpush.bf16.msra.mxu0 %v5237
        %5493 = vmatpush.bf16.msra.mxu0 %v5235
        %5494 = vmatpush.bf16.msra.mxu0 %v5233
        %5495 = vmatpush.bf16.msra.mxu0 %v5231
        %5496 = vmatpush.bf16.msra.mxu0 %v5229
        %5497 = vmatpush.bf16.msra.mxu0 %v5227
        %5498 = vmatpush.bf16.msra.mxu0 %v5225
        %5499 = vmatmul.bf16.gmra.mxu0 %v4813
        %v5500 = vpop.f32.mrf.mxu0
        %v5501 = vadd.f32 %v5488, %v5500
        %v5502 = vpop.f32.mrf.mxu0
        %5503 = vdwg.mxu0
        %5504 = vmatpush.bf16.msra.mxu0 %v5255
        %5505 = vmatpush.bf16.msra.mxu0 %v5253
        %5506 = vmatpush.bf16.msra.mxu0 %v5251
        %5507 = vmatpush.bf16.msra.mxu0 %v5249
        %5508 = vmatpush.bf16.msra.mxu0 %v5247
        %5509 = vmatpush.bf16.msra.mxu0 %v5245
        %5510 = vmatpush.bf16.msra.mxu0 %v5243
        %5511 = vmatpush.bf16.msra.mxu0 %v5241
        %5512 = vmatmul.bf16.gmra.mxu0 %v4814
        %v5513 = vpop.f32.mrf.mxu0
        %v5514 = vadd.f32 %v5501, %v5513
        %v5515 = vpop.f32.mrf.mxu0
        %5516 = vdwg.mxu0
        %5517 = vmatpush.bf16.msra.mxu0 %v5271
        %5518 = vmatpush.bf16.msra.mxu0 %v5269
        %5519 = vmatpush.bf16.msra.mxu0 %v5267
        %5520 = vmatpush.bf16.msra.mxu0 %v5265
        %5521 = vmatpush.bf16.msra.mxu0 %v5263
        %5522 = vmatpush.bf16.msra.mxu0 %v5261
        %5523 = vmatpush.bf16.msra.mxu0 %v5259
        %5524 = vmatpush.bf16.msra.mxu0 %v5257
        %5525 = vmatmul.bf16.gmra.mxu0 %v4815
        %v5526 = vpop.f32.mrf.mxu0
        %v5527 = vadd.f32 %v5514, %v5526
        %v5528 = vpop.f32.mrf.mxu0
        %5529 = vdwg.mxu0
        %5530 = vmatpush.bf16.msra.mxu0 %v5287
        %5531 = vmatpush.bf16.msra.mxu0 %v5285
        %5532 = vmatpush.bf16.msra.mxu0 %v5283
        %5533 = vmatpush.bf16.msra.mxu0 %v5281
        %5534 = vmatpush.bf16.msra.mxu0 %v5279
        %5535 = vmatpush.bf16.msra.mxu0 %v5277
        %5536 = vmatpush.bf16.msra.mxu0 %v5275
        %5537 = vmatpush.bf16.msra.mxu0 %v5273
        %5538 = vmatmul.bf16.gmra.mxu0 %v4816
        %v5539 = vpop.f32.mrf.mxu0
        %v5540 = vadd.f32 %v5527, %v5539
        %v5541 = vpop.f32.mrf.mxu0
        %5542 = vdwg.mxu0
        %5543 = vmatpush.bf16.msra.mxu0 %v5303
        %5544 = vmatpush.bf16.msra.mxu0 %v5301
        %5545 = vmatpush.bf16.msra.mxu0 %v5299
        %5546 = vmatpush.bf16.msra.mxu0 %v5297
        %5547 = vmatpush.bf16.msra.mxu0 %v5295
        %5548 = vmatpush.bf16.msra.mxu0 %v5293
        %5549 = vmatpush.bf16.msra.mxu0 %v5291
        %5550 = vmatpush.bf16.msra.mxu0 %v5289
        %5551 = vmatmul.bf16.gmra.mxu0 %v4817
        %v5552 = vpop.f32.mrf.mxu0
        %v5553 = vadd.f32 %v5540, %v5552
        %v5554 = vpop.f32.mrf.mxu0
        %5555 = vdwg.mxu0
        %5556 = vst [vmem:[%s412] sm:$0xff] %v5475
        %5557 = vst [vmem:[%s412 + $0x8] sm:$0xff] %v5553
        %s5558 = sand.u32 %s194, 1
        %s5559 = scalar_lea.sflag [#allocation4], %s5558
        %s5560 = sand.u32 %s194, 1
        %s5561 = smul.addr %s5560, 16
        %s5562 = scalar_lea.vmem [#allocation14], %s5561
        // Predicated region
        $region77: #{tpu_custom_call.1} parent=47 // pred_check
          %p5563 = pneg %p204
        $region78: #{tpu_custom_call.1} parent=47 // pred_check_branch
          %5565 = sbr.rel (%p5563) target = $region80
        $region79: #{tpu_custom_call.1} parent=47 // pred_region
          %5567 = vsyncadd %s5559, 0
          %s5568 = smul.addr %s29, 2
          %s5569 = smul.addr %s5568, 8
          %s5570 = scalar_lea.hbm %s7, %s5569
          %s5572 = sshll.u32 %s5562, 4
          %s5573 = int_to_ptr.vmem [resolvable:$true] %s5572
          %s5574 = sshll.u32 %s5570, 4
          %s5575 = int_to_ptr.hbm [resolvable:$true] %s5574
          %5577 = dma.vmem_to_hbm [thread:$0]  %s5573, 256, %s5575, %s5559
        $region80: #{tpu_custom_call.1} parent=47 // pred_fallthru
          _
      $region48: #{tpu_custom_call.1} parent=5 // pred_fallthru
        _
      %p5578 = scmp.le.s32.totalorder 2, %s24
      // Predicated region
      $region81: #{tpu_custom_call.1} parent=5 // pred_check
        %p5579 = pneg %p5578
      $region82: #{tpu_custom_call.1} parent=5 // pred_check_branch
        %5581 = sbr.rel (%p5579) target = $region84
      $region83: #{tpu_custom_call.1} parent=5 // pred_region
        %s5582 = ssub.s32 %s24, 2
        // Predicated region
        $region85: #{tpu_custom_call.1} parent=83 // pred_check
          %p5583 = pneg %p210
        $region86: #{tpu_custom_call.1} parent=83 // pred_check_branch
          %5585 = sbr.rel (%p5583) target = $region88
        $region87: #{tpu_custom_call.1} parent=83 // pred_region
          %s5586 = sand.u32 %s195, 1
          %s5587 = scalar_lea.sflag [#allocation4], %s5586
          %s5588 = sand.u32 %s195, 1
          %s5589 = smul.addr %s5588, 16
          %s5590 = scalar_lea.vmem [#allocation14], %s5589
          %5592 = dma.done %s5587, 256
        $region88: #{tpu_custom_call.1} parent=83 // pred_fallthru
          _
      $region84: #{tpu_custom_call.1} parent=5 // pred_fallthru
        _
    $region6: #{tpu_custom_call.1} parent=1 // loop_footer
      %s28 = sadd.s32 1, %s24
    $region7: #{tpu_custom_call.1} parent=1 // loop_footer_branch
      %23 = sbr.rel target = $region3
    $region8: #{tpu_custom_call.1} parent=1 // loop_exit
      _
    %5593 = vsyncpa [#allocation3], 1
    %s5594 = scalar_lea.sflag [#allocation3], 1
    %5595 = vsyncpa %s5594, 1
    %5596 = vsyncpa [#allocation6], 1
    %s5597 = scalar_lea.sflag [#allocation6], 1
    %5598 = vsyncpa %s5597, 1
    %5599 = vsyncpa [#allocation9], 1
    %5600 = vsyncpa [#allocation12], 1
    %5601 = vsyncpa [#allocation4], 1
    %s5602 = scalar_lea.sflag [#allocation4], 1
    %5603 = vsyncpa %s5602, 1

</llo_original>
